<compile_context>
chip_gen: v6e
topology: v6e:2x2x1
jax: 0.10.0
libtpu: 0.0.40
codegen_flags: <defaults>
</compile_context>

<pallas_src>
import math
import jax
import jax.numpy as jnp
from jax.experimental import pallas as pl
from jax.experimental.pallas import tpu as pltpu


def _round_up(a, b):
    return (a + b - 1) // b * b


# ---------------------------------------------------------------------------
# Pallas kernels
# ---------------------------------------------------------------------------
def _make_conv_relu_pool_kernel(tm):
    """Fused conv (single im2col matmul over all 4 pool-parity slabs) + bias + ReLU
    + 2x2 max-pool for one tile of `tm` pooled output rows."""

    def kernel(p_ref, w_ref, b_ref, o_ref):
        # p_ref: (4*tm, K) bf16 -- rows [k*tm:(k+1)*tm] belong to pool corner k
        # w_ref: (K, Cout) bf16 ; b_ref: (1, Cout) f32 ; o_ref: (tm, Cout) bf16
        r = jnp.dot(p_ref[...], w_ref[...], preferred_element_type=jnp.float32)
        m = jnp.maximum(jnp.maximum(r[0 * tm:1 * tm], r[1 * tm:2 * tm]),
                        jnp.maximum(r[2 * tm:3 * tm], r[3 * tm:4 * tm]))
        # relu(max_k(lin_k) + b) == 2x2-maxpool(relu(conv + b))
        o_ref[...] = jnp.maximum(m + b_ref[...], 0.0).astype(o_ref.dtype)

    return kernel


def _make_tail_kernel(tn, wq):
    """Fused conv3(3x3)+ReLU+pool + conv4(1x5)+ReLU + fc1/fc2/fc3 + LogSoftmax for
    one batch tile of `tn` samples.  `wq` = pooled conv3 width (must be 5)."""
    g = wq * tn  # rows per parity slab; rows ordered (width-position, sample)

    def kernel(p_ref, w3_ref, b3_ref, w4_ref, b4_ref,
               f1w_ref, f1b_ref, f2w_ref, f2b_ref, f3w_ref, f3b_ref, o_ref):
        # conv3 as ONE matmul over the 4 parity slabs, then pool + bias + ReLU.
        r = jnp.dot(p_ref[...], w3_ref[...], preferred_element_type=jnp.float32)
        m = jnp.maximum(jnp.maximum(r[0 * g:1 * g], r[1 * g:2 * g]),
                        jnp.maximum(r[2 * g:3 * g], r[3 * g:4 * g]))
        pooled = jnp.maximum(m + b3_ref[...], 0.0).astype(jnp.bfloat16)   # (wq*tn, 64)

        # conv4 (1x5): sum over the 5 pooled width positions of (tn,64)@(64,128).
        w4 = w4_ref[...]                                                   # (320, 128)
        h = jnp.dot(pooled[0:tn], w4[0:64], preferred_element_type=jnp.float32)
        for wpos in range(1, wq):
            h = h + jnp.dot(pooled[wpos * tn:(wpos + 1) * tn],
                            w4[wpos * 64:(wpos + 1) * 64],
                            preferred_element_type=jnp.float32)
        h = jnp.maximum(h + b4_ref[...], 0.0).astype(jnp.bfloat16)         # (tn, 128)

        h = jnp.maximum(jnp.dot(h, f1w_ref[...], preferred_element_type=jnp.float32)
                        + f1b_ref[...], 0.0).astype(jnp.bfloat16)
        h = jnp.maximum(jnp.dot(h, f2w_ref[...], preferred_element_type=jnp.float32)
                        + f2b_ref[...], 0.0).astype(jnp.bfloat16)
        logits = (jnp.dot(h, f3w_ref[...], preferred_element_type=jnp.float32)
                  + f3b_ref[...])                                           # (tn, 48)

        z = logits - jnp.max(logits, axis=-1, keepdims=True)
        lse = jnp.log(jnp.sum(jnp.exp(z), axis=-1, keepdims=True))
        o_ref[...] = z - lse

    return kernel


# ---------------------------------------------------------------------------
# XLA-side glue: parity-grouped im2col (tiny tensors; fused by XLA)
# ---------------------------------------------------------------------------
def _parity_im2col(x, kh, kw, ph, pw):
    """x: (N, H, W, C) -> patches (4, M, K) grouped by 2x2-pool corner.

    Slab k = dh*2+dw; rows within a slab ordered (n, h_pooled, w_pooled);
    columns flattened in (dy, dx, cin) order (matches _conv_flat)."""
    n, h, w, c = x.shape
    xp = jnp.pad(x, ((0, 0), (ph, ph), (pw, pw), (0, 0)))
    ho = h + 2 * ph - kh + 1
    wo = w + 2 * pw - kw + 1
    # PyTorch MaxPool2d floors odd dims; this fused path assumes even conv output dims.
    assert ho % 2 == 0 and wo % 2 == 0, "pooling fusion assumes even conv output dims"
    cols = [xp[:, i:i + ho, j:j + wo, :] for i in range(kh) for j in range(kw)]
    k = kh * kw * c
    pat = jnp.stack(cols, axis=3).reshape(n, ho, wo, k)
    hq, wq = ho // 2, wo // 2
    pat = pat.reshape(n, hq, 2, wq, 2, k).transpose(2, 4, 0, 1, 3, 5)   # (dh,dw,n,hq,wq,k)
    return pat.reshape(4, n * hq * wq, k), hq, wq


def conv_relu_pool(x, wflat, bias, kh, kw, ph, pw):
    n = x.shape[0]
    pat, hq, wq = _parity_im2col(x, kh, kw, ph, pw)
    pat = pat.astype(jnp.bfloat16)
    m = n * hq * wq
    k = pat.shape[-1]
    cout = wflat.shape[1]

    # Tile the pooled-row axis; tm is sublane-aligned -> one (4*tm,K) matmul per tile.
    tm = min(_round_up(m, 8), 256)
    mp = _round_up(m, tm)
    nblk = mp // tm
    pat = jnp.pad(pat, ((0, 0), (0, mp - m), (0, 0)))
    # Group the 4 parity slabs contiguously inside each M-tile (all XLA-side; tiny).
    pat = pat.reshape(4, nblk, tm, k).transpose(1, 0, 2, 3).reshape(nblk, 4 * tm, k)

    cost = pl.CostEstimate(
        flops=2 * 4 * mp * k * cout,
        transcendentals=0,
        bytes_accessed=4 * mp * k * 2 + k * cout * 2 + cout * 4 + mp * cout * 2)

    out = pl.pallas_call(
        _make_conv_relu_pool_kernel(tm),
        out_shape=jax.ShapeDtypeStruct((nblk, tm, cout), jnp.bfloat16),
        grid=(nblk,),
        in_specs=[
            pl.BlockSpec((None, 4 * tm, k), lambda i: (i, 0, 0)),
            pl.BlockSpec((k, cout), lambda i: (0, 0)),
            pl.BlockSpec((1, cout), lambda i: (0, 0)),
        ],
        out_specs=pl.BlockSpec((None, tm, cout), lambda i: (i, 0, 0)),
        compiler_params=pltpu.CompilerParams(dimension_semantics=("parallel",)),
        cost_estimate=cost,
    )(pat, wflat, bias)
    return out.reshape(mp, cout)[:m].reshape(n, hq, wq, cout)


def tail_forward(h2, prep):
    """Fused conv3+ReLU+pool + conv4+ReLU + fc1/fc2/fc3 + LogSoftmax.

    h2: (N, 2, 10, 64) pooled conv2 output (NHWC)."""
    n = h2.shape[0]
    pat, hq, wq = _parity_im2col(h2, 3, 3, 1, 1)        # (4, N*1*5, 576)
    assert hq == 1 and wq == 5, "conv4 (1,5) needs pooled conv3 output of (1,5)"
    k = pat.shape[-1]

    if n <= 128:
        tn = _round_up(n, 8)
        np_ = tn
    else:
        tn = 128
        np_ = _round_up(n, 128)
    nb = np_ // tn

    # Reorder rows to (parity, width-position, sample) so conv4's five weight slices
    # hit contiguous, 8-aligned sample blocks in-kernel; pad sample axis to nb*tn.
    pat = pat.reshape(4, n, wq, k).transpose(0, 2, 1, 3)            # (4, 5, N, K)
    pat = jnp.pad(pat, ((0, 0), (0, 0), (0, np_ - n), (0, 0)))
    pat = (pat.reshape(4, wq, nb, tn, k).transpose(2, 0, 1, 3, 4)
              .reshape(nb, 4 * wq * tn, k).astype(jnp.bfloat16))

    flops = 2 * np_ * (4 * wq * k * 64 + wq * 64 * 128
                       + 128 * 128 + 128 * 128 + 128 * 48)
    wbytes = 2 * (k * 64 + 320 * 128 + 128 * 128 + 128 * 128 + 128 * 48)
    bbytes = 4 * (64 + 128 + 128 + 128 + 48)
    cost = pl.CostEstimate(
        flops=flops, transcendentals=np_ * 49,
        bytes_accessed=4 * wq * np_ * k * 2 + wbytes + bbytes + np_ * 48 * 4)

    def wspec(a):   # whole-array, VMEM-resident weight/bias block
        return pl.BlockSpec(a.shape, lambda i: (0,) * a.ndim)

    out = pl.pallas_call(
        _make_tail_kernel(tn, wq),
        out_shape=jax.ShapeDtypeStruct((np_, 48), jnp.float32),
        grid=(nb,),
        in_specs=[pl.BlockSpec((None, 4 * wq * tn, k), lambda i: (i, 0, 0)),
                  wspec(prep["w3f"]), wspec(prep["b3"]),
                  wspec(prep["w4f"]), wspec(prep["b4"]),
                  wspec(prep["fc1w"]), wspec(prep["fc1b"]),
                  wspec(prep["fc2w"]), wspec(prep["fc2b"]),
                  wspec(prep["fc3w"]), wspec(prep["fc3b"])],
        out_specs=pl.BlockSpec((tn, 48), lambda i: (i, 0)),
        compiler_params=pltpu.CompilerParams(dimension_semantics=("parallel",)),
        cost_estimate=cost,
    )(pat, prep["w3f"], prep["b3"], prep["w4f"], prep["b4"],
      prep["fc1w"], prep["fc1b"], prep["fc2w"], prep["fc2b"],
      prep["fc3w"], prep["fc3b"])
    return out[:n]


# ---------------------------------------------------------------------------
# Parameter init (deterministic, PyTorch-style uniform bounds) + one-time prep
# ---------------------------------------------------------------------------
def _init_conv(key, cout, cin, kh, kw):
    k1, k2 = jax.random.split(key)
    bound = 1.0 / math.sqrt(cin * kh * kw)
    w = jax.random.uniform(k1, (cout, cin, kh, kw), jnp.float32, -bound, bound)
    b = jax.random.uniform(k2, (cout,), jnp.float32, -bound, bound)
    return w, b


def _init_linear(key, fout, fin):
    k1, k2 = jax.random.split(key)
    bound = 1.0 / math.sqrt(fin)
    w = jax.random.uniform(k1, (fout, fin), jnp.float32, -bound, bound)
    b = jax.random.uniform(k2, (fout,), jnp.float32, -bound, bound)
    return w, b


def init_params(key):
    keys = jax.random.split(key, 7)
    p = {}
    p["w1"], p["b1"] = _init_conv(keys[0], 32, 1, 5, 5)
    p["w2"], p["b2"] = _init_conv(keys[1], 64, 32, 5, 5)
    p["w3"], p["b3"] = _init_conv(keys[2], 64, 64, 3, 3)
    p["w4"], p["b4"] = _init_conv(keys[3], 128, 64, 1, 5)
    p["fc1_w"], p["fc1_b"] = _init_linear(keys[4], 128, 128)
    p["fc2_w"], p["fc2_b"] = _init_linear(keys[5], 128, 128)
    p["fc3_w"], p["fc3_b"] = _init_linear(keys[6], 48, 128)
    return p


def _conv_flat(w):
    # (Cout, Cin, KH, KW) torch layout -> (KH*KW*Cin, Cout), bf16 for the MXU.
    co, ci, kh, kw = w.shape
    return jnp.transpose(w, (2, 3, 1, 0)).reshape(kh * kw * ci, co).astype(jnp.bfloat16)


def prepare_params(p):
    """One-time weight-layout prep: bf16 MXU operands, f32 biases, no per-forward transposes."""
    return {
        "w1f": _conv_flat(p["w1"]), "b1": p["b1"].reshape(1, -1).astype(jnp.float32),
        "w2f": _conv_flat(p["w2"]), "b2": p["b2"].reshape(1, -1).astype(jnp.float32),
        "w3f": _conv_flat(p["w3"]), "b3": p["b3"].reshape(1, -1).astype(jnp.float32),
        "w4f": _conv_flat(p["w4"]), "b4": p["b4"].reshape(1, -1).astype(jnp.float32),
        "fc1w": p["fc1_w"].T.astype(jnp.bfloat16),
        "fc1b": p["fc1_b"].reshape(1, -1).astype(jnp.float32),
        "fc2w": p["fc2_w"].T.astype(jnp.bfloat16),
        "fc2b": p["fc2_b"].reshape(1, -1).astype(jnp.float32),
        "fc3w": p["fc3_w"].T.astype(jnp.bfloat16),
        "fc3b": p["fc3_b"].reshape(1, -1).astype(jnp.float32),
    }


# ---------------------------------------------------------------------------
# Forward pass (mirrors MyNet.forward): 3 Pallas launches total
# ---------------------------------------------------------------------------
@jax.jit
def mynet_forward(prep, x):
    h = x[..., None].astype(jnp.float32)                            # (N, H, W, 1) NHWC
    h = conv_relu_pool(h, prep["w1f"], prep["b1"], 5, 5, 2, 2)      # (N, 4, 20, 32) bf16
    h = conv_relu_pool(h, prep["w2f"], prep["b2"], 5, 5, 2, 2)      # (N, 2, 10, 64) bf16
    return tail_forward(h, prep)                                    # (N, 48) f32 log-probs


if __name__ == "__main__":
    key = jax.random.PRNGKey(0)
    k_param, k_x = jax.random.split(key)
    params = init_params(k_param)
    prep = prepare_params(params)
    # (batch=2, H=8, W=40): after 3 pools -> (1,5); conv4 (1,5) -> (1,1) -> view(-1,128)
    x = jax.random.normal(k_x, (2, 8, 40), dtype=jnp.float32)
    out = jax.block_until_ready(mynet_forward(prep, x))
    assert out.shape == (2, 48)
    assert bool(jnp.all(jnp.isfinite(out)))
    # log-softmax rows should exponentiate to ~1
    assert bool(jnp.allclose(jnp.sum(jnp.exp(out), axis=1), 1.0, atol=1e-3))
    print("KERNEL_OK")
</pallas_src>

<mosaic_0001>
module attributes {stable_mosaic.version = 11 : i64} {
  func.func @kernel(%arg0: i32, %arg1: memref<1x640x25xbf16, #tpu.memory_space<vmem>>, %arg2: memref<25x32xbf16, #tpu.memory_space<vmem>>, %arg3: memref<1x32xf32, #tpu.memory_space<vmem>>, %arg4: memref<1x160x32xbf16, #tpu.memory_space<vmem>>) attributes {dimension_semantics = [#tpu.dimension_semantics<parallel>], iteration_bounds = array<i64: 1>, scalar_prefetch = 0 : i64, scratch_operands = 0 : i64, tpu.core_type = #tpu.core_type<tc>, window_params = [{transform_indices = @transform_0, window_bounds = array<i64: 1, 640, 25>}, {pipeline_mode = #tpu.pipeline_mode<synchronous>, transform_indices = @transform_1, window_bounds = array<i64: 25, 32>}, {pipeline_mode = #tpu.pipeline_mode<synchronous>, transform_indices = @transform_2, window_bounds = array<i64: 1, 32>}, {transform_indices = @transform_3, window_bounds = array<i64: 1, 160, 32>}]} {
    %c0 = arith.constant 0 : index
    %c0_0 = arith.constant 0 : index
    %c0_1 = arith.constant 0 : index
    %0 = vector.load %arg1[%c0, %c0_0, %c0_1] : memref<1x640x25xbf16, #tpu.memory_space<vmem>>, vector<1x640x25xbf16>
    %1 = vector.shape_cast %0 : vector<1x640x25xbf16> to vector<640x25xbf16>
    %c0_2 = arith.constant 0 : index
    %c0_3 = arith.constant 0 : index
    %2 = vector.load %arg2[%c0_2, %c0_3] : memref<25x32xbf16, #tpu.memory_space<vmem>>, vector<25x32xbf16>
    %cst = arith.constant dense<0.000000e+00> : vector<640x32xf32>
    %3 = tpu.matmul %1, %2, %cst {dimension_numbers = #tpu.dot_dimension_numbers<[1], [0], [0], [1], [0, 0, 1, 1], [], []>} : vector<640x25xbf16>, vector<25x32xbf16>, vector<640x32xf32> -> vector<640x32xf32>
    %4 = vector.extract_strided_slice %3 {offsets = [0, 0], sizes = [160, 32], strides = [1, 1]} : vector<640x32xf32> to vector<160x32xf32>
    %5 = vector.extract_strided_slice %3 {offsets = [160, 0], sizes = [160, 32], strides = [1, 1]} : vector<640x32xf32> to vector<160x32xf32>
    %6 = arith.maximumf %4, %5 : vector<160x32xf32>
    %7 = vector.extract_strided_slice %3 {offsets = [320, 0], sizes = [160, 32], strides = [1, 1]} : vector<640x32xf32> to vector<160x32xf32>
    %8 = vector.extract_strided_slice %3 {offsets = [480, 0], sizes = [160, 32], strides = [1, 1]} : vector<640x32xf32> to vector<160x32xf32>
    %9 = arith.maximumf %7, %8 : vector<160x32xf32>
    %10 = arith.maximumf %6, %9 : vector<160x32xf32>
    %c0_4 = arith.constant 0 : index
    %c0_5 = arith.constant 0 : index
    %11 = vector.load %arg3[%c0_4, %c0_5] : memref<1x32xf32, #tpu.memory_space<vmem>>, vector<1x32xf32>
    %12 = vector.broadcast %11 : vector<1x32xf32> to vector<160x32xf32>
    %13 = arith.addf %10, %12 : vector<160x32xf32>
    %cst_6 = arith.constant 0.000000e+00 : f32
    %14 = vector.broadcast %cst_6 : f32 to vector<160x32xf32>
    %15 = arith.maximumf %13, %14 : vector<160x32xf32>
    %16 = arith.truncf %15 : vector<160x32xf32> to vector<160x32xbf16>
    %c0_7 = arith.constant 0 : index
    %c0_8 = arith.constant 0 : index
    %c0_9 = arith.constant 0 : index
    %17 = vector.load %arg4[%c0_7, %c0_8, %c0_9] : memref<1x160x32xbf16, #tpu.memory_space<vmem>>, vector<1x160x32xbf16>
    %18 = vector.shape_cast %17 : vector<1x160x32xbf16> to vector<160x32xbf16>
    %19 = vector.shape_cast %16 : vector<160x32xbf16> to vector<1x160x32xbf16>
    tpu.vector_store %arg4[%c0_7, %c0_8, %c0_9], %19 {strides = array<i32>} : memref<1x160x32xbf16, #tpu.memory_space<vmem>>, vector<1x160x32xbf16>,
    return
  }
  func.func @transform_0(%arg0: i32) -> (i32, i32, i32) {
    %c0_i32 = arith.constant 0 : i32
    %c0_i32_0 = arith.constant 0 : i32
    %c0_i32_1 = arith.constant 0 : i32
    return %arg0, %c0_i32, %c0_i32_0 : i32, i32, i32
  }
  func.func @transform_1(%arg0: i32) -> (i32, i32) {
    %c0_i32 = arith.constant 0 : i32
    %c0_i32_0 = arith.constant 0 : i32
    %c0_i32_1 = arith.constant 0 : i32
    return %c0_i32, %c0_i32_0 : i32, i32
  }
  func.func @transform_2(%arg0: i32) -> (i32, i32) {
    %c0_i32 = arith.constant 0 : i32
    %c0_i32_0 = arith.constant 0 : i32
    %c0_i32_1 = arith.constant 0 : i32
    return %c0_i32, %c0_i32_0 : i32, i32
  }
  func.func @transform_3(%arg0: i32) -> (i32, i32, i32) {
    %c0_i32 = arith.constant 0 : i32
    %c0_i32_0 = arith.constant 0 : i32
    %c0_i32_1 = arith.constant 0 : i32
    return %arg0, %c0_i32, %c0_i32_0 : i32, i32, i32
  }
}

module attributes {stable_mosaic.version = 11 : i64} {
  func.func @kernel(%arg0: i32, %arg1: memref<1x160x800xbf16, #tpu.memory_space<vmem>>, %arg2: memref<800x64xbf16, #tpu.memory_space<vmem>>, %arg3: memref<1x64xf32, #tpu.memory_space<vmem>>, %arg4: memref<1x40x64xbf16, #tpu.memory_space<vmem>>) attributes {dimension_semantics = [#tpu.dimension_semantics<parallel>], iteration_bounds = array<i64: 1>, scalar_prefetch = 0 : i64, scratch_operands = 0 : i64, tpu.core_type = #tpu.core_type<tc>, window_params = [{transform_indices = @transform_0, window_bounds = array<i64: 1, 160, 800>}, {pipeline_mode = #tpu.pipeline_mode<synchronous>, transform_indices = @transform_1, window_bounds = array<i64: 800, 64>}, {pipeline_mode = #tpu.pipeline_mode<synchronous>, transform_indices = @transform_2, window_bounds = array<i64: 1, 64>}, {transform_indices = @transform_3, window_bounds = array<i64: 1, 40, 64>}]} {
    %c0 = arith.constant 0 : index
    %c0_0 = arith.constant 0 : index
    %c0_1 = arith.constant 0 : index
    %0 = vector.load %arg1[%c0, %c0_0, %c0_1] : memref<1x160x800xbf16, #tpu.memory_space<vmem>>, vector<1x160x800xbf16>
    %1 = vector.shape_cast %0 : vector<1x160x800xbf16> to vector<160x800xbf16>
    %c0_2 = arith.constant 0 : index
    %c0_3 = arith.constant 0 : index
    %2 = vector.load %arg2[%c0_2, %c0_3] : memref<800x64xbf16, #tpu.memory_space<vmem>>, vector<800x64xbf16>
    %cst = arith.constant dense<0.000000e+00> : vector<160x64xf32>
    %3 = tpu.matmul %1, %2, %cst {dimension_numbers = #tpu.dot_dimension_numbers<[1], [0], [0], [1], [0, 0, 1, 1], [], []>} : vector<160x800xbf16>, vector<800x64xbf16>, vector<160x64xf32> -> vector<160x64xf32>
    %4 = vector.extract_strided_slice %3 {offsets = [0, 0], sizes = [40, 64], strides = [1, 1]} : vector<160x64xf32> to vector<40x64xf32>
    %5 = vector.extract_strided_slice %3 {offsets = [40, 0], sizes = [40, 64], strides = [1, 1]} : vector<160x64xf32> to vector<40x64xf32>
    %6 = arith.maximumf %4, %5 : vector<40x64xf32>
    %7 = vector.extract_strided_slice %3 {offsets = [80, 0], sizes = [40, 64], strides = [1, 1]} : vector<160x64xf32> to vector<40x64xf32>
    %8 = vector.extract_strided_slice %3 {offsets = [120, 0], sizes = [40, 64], strides = [1, 1]} : vector<160x64xf32> to vector<40x64xf32>
    %9 = arith.maximumf %7, %8 : vector<40x64xf32>
    %10 = arith.maximumf %6, %9 : vector<40x64xf32>
    %c0_4 = arith.constant 0 : index
    %c0_5 = arith.constant 0 : index
    %11 = vector.load %arg3[%c0_4, %c0_5] : memref<1x64xf32, #tpu.memory_space<vmem>>, vector<1x64xf32>
    %12 = vector.broadcast %11 : vector<1x64xf32> to vector<40x64xf32>
    %13 = arith.addf %10, %12 : vector<40x64xf32>
    %cst_6 = arith.constant 0.000000e+00 : f32
    %14 = vector.broadcast %cst_6 : f32 to vector<40x64xf32>
    %15 = arith.maximumf %13, %14 : vector<40x64xf32>
    %16 = arith.truncf %15 : vector<40x64xf32> to vector<40x64xbf16>
    %c0_7 = arith.constant 0 : index
    %c0_8 = arith.constant 0 : index
    %c0_9 = arith.constant 0 : index
    %17 = vector.load %arg4[%c0_7, %c0_8, %c0_9] : memref<1x40x64xbf16, #tpu.memory_space<vmem>>, vector<1x40x64xbf16>
    %18 = vector.shape_cast %17 : vector<1x40x64xbf16> to vector<40x64xbf16>
    %19 = vector.shape_cast %16 : vector<40x64xbf16> to vector<1x40x64xbf16>
    tpu.vector_store %arg4[%c0_7, %c0_8, %c0_9], %19 {strides = array<i32>} : memref<1x40x64xbf16, #tpu.memory_space<vmem>>, vector<1x40x64xbf16>,
    return
  }
  func.func @transform_0(%arg0: i32) -> (i32, i32, i32) {
    %c0_i32 = arith.constant 0 : i32
    %c0_i32_0 = arith.constant 0 : i32
    %c0_i32_1 = arith.constant 0 : i32
    return %arg0, %c0_i32, %c0_i32_0 : i32, i32, i32
  }
  func.func @transform_1(%arg0: i32) -> (i32, i32) {
    %c0_i32 = arith.constant 0 : i32
    %c0_i32_0 = arith.constant 0 : i32
    %c0_i32_1 = arith.constant 0 : i32
    return %c0_i32, %c0_i32_0 : i32, i32
  }
  func.func @transform_2(%arg0: i32) -> (i32, i32) {
    %c0_i32 = arith.constant 0 : i32
    %c0_i32_0 = arith.constant 0 : i32
    %c0_i32_1 = arith.constant 0 : i32
    return %c0_i32, %c0_i32_0 : i32, i32
  }
  func.func @transform_3(%arg0: i32) -> (i32, i32, i32) {
    %c0_i32 = arith.constant 0 : i32
    %c0_i32_0 = arith.constant 0 : i32
    %c0_i32_1 = arith.constant 0 : i32
    return %arg0, %c0_i32, %c0_i32_0 : i32, i32, i32
  }
}

module attributes {stable_mosaic.version = 11 : i64} {
  func.func @kernel(%arg0: i32, %arg1: memref<1x160x576xbf16, #tpu.memory_space<vmem>>, %arg2: memref<576x64xbf16, #tpu.memory_space<vmem>>, %arg3: memref<1x64xf32, #tpu.memory_space<vmem>>, %arg4: memref<320x128xbf16, #tpu.memory_space<vmem>>, %arg5: memref<1x128xf32, #tpu.memory_space<vmem>>, %arg6: memref<128x128xbf16, #tpu.memory_space<vmem>>, %arg7: memref<1x128xf32, #tpu.memory_space<vmem>>, %arg8: memref<128x128xbf16, #tpu.memory_space<vmem>>, %arg9: memref<1x128xf32, #tpu.memory_space<vmem>>, %arg10: memref<128x48xbf16, #tpu.memory_space<vmem>>, %arg11: memref<1x48xf32, #tpu.memory_space<vmem>>, %arg12: memref<8x48xf32, #tpu.memory_space<vmem>>) attributes {dimension_semantics = [#tpu.dimension_semantics<parallel>], iteration_bounds = array<i64: 1>, scalar_prefetch = 0 : i64, scratch_operands = 0 : i64, tpu.core_type = #tpu.core_type<tc>, window_params = [{transform_indices = @transform_0, window_bounds = array<i64: 1, 160, 576>}, {pipeline_mode = #tpu.pipeline_mode<synchronous>, transform_indices = @transform_1, window_bounds = array<i64: 576, 64>}, {pipeline_mode = #tpu.pipeline_mode<synchronous>, transform_indices = @transform_2, window_bounds = array<i64: 1, 64>}, {pipeline_mode = #tpu.pipeline_mode<synchronous>, transform_indices = @transform_3, window_bounds = array<i64: 320, 128>}, {pipeline_mode = #tpu.pipeline_mode<synchronous>, transform_indices = @transform_4, window_bounds = array<i64: 1, 128>}, {pipeline_mode = #tpu.pipeline_mode<synchronous>, transform_indices = @transform_5, window_bounds = array<i64: 128, 128>}, {pipeline_mode = #tpu.pipeline_mode<synchronous>, transform_indices = @transform_6, window_bounds = array<i64: 1, 128>}, {pipeline_mode = #tpu.pipeline_mode<synchronous>, transform_indices = @transform_7, window_bounds = array<i64: 128, 128>}, {pipeline_mode = #tpu.pipeline_mode<synchronous>, transform_indices = @transform_8, window_bounds = array<i64: 1, 128>}, {pipeline_mode = #tpu.pipeline_mode<synchronous>, transform_indices = @transform_9, window_bounds = array<i64: 128, 48>}, {pipeline_mode = #tpu.pipeline_mode<synchronous>, transform_indices = @transform_10, window_bounds = array<i64: 1, 48>}, {transform_indices = @transform_11, window_bounds = array<i64: 8, 48>}]} {
    %c0 = arith.constant 0 : index
    %c0_0 = arith.constant 0 : index
    %c0_1 = arith.constant 0 : index
    %0 = vector.load %arg1[%c0, %c0_0, %c0_1] : memref<1x160x576xbf16, #tpu.memory_space<vmem>>, vector<1x160x576xbf16>
    %1 = vector.shape_cast %0 : vector<1x160x576xbf16> to vector<160x576xbf16>
    %c0_2 = arith.constant 0 : index
    %c0_3 = arith.constant 0 : index
    %2 = vector.load %arg2[%c0_2, %c0_3] : memref<576x64xbf16, #tpu.memory_space<vmem>>, vector<576x64xbf16>
    %cst = arith.constant dense<0.000000e+00> : vector<160x64xf32>
    %3 = tpu.matmul %1, %2, %cst {dimension_numbers = #tpu.dot_dimension_numbers<[1], [0], [0], [1], [0, 0, 1, 1], [], []>} : vector<160x576xbf16>, vector<576x64xbf16>, vector<160x64xf32> -> vector<160x64xf32>
    %4 = vector.extract_strided_slice %3 {offsets = [0, 0], sizes = [40, 64], strides = [1, 1]} : vector<160x64xf32> to vector<40x64xf32>
    %5 = vector.extract_strided_slice %3 {offsets = [40, 0], sizes = [40, 64], strides = [1, 1]} : vector<160x64xf32> to vector<40x64xf32>
    %6 = arith.maximumf %4, %5 : vector<40x64xf32>
    %7 = vector.extract_strided_slice %3 {offsets = [80, 0], sizes = [40, 64], strides = [1, 1]} : vector<160x64xf32> to vector<40x64xf32>
    %8 = vector.extract_strided_slice %3 {offsets = [120, 0], sizes = [40, 64], strides = [1, 1]} : vector<160x64xf32> to vector<40x64xf32>
    %9 = arith.maximumf %7, %8 : vector<40x64xf32>
    %10 = arith.maximumf %6, %9 : vector<40x64xf32>
    %c0_4 = arith.constant 0 : index
    %c0_5 = arith.constant 0 : index
    %11 = vector.load %arg3[%c0_4, %c0_5] : memref<1x64xf32, #tpu.memory_space<vmem>>, vector<1x64xf32>
    %12 = vector.broadcast %11 : vector<1x64xf32> to vector<40x64xf32>
    %13 = arith.addf %10, %12 : vector<40x64xf32>
    %cst_6 = arith.constant 0.000000e+00 : f32
    %14 = vector.broadcast %cst_6 : f32 to vector<40x64xf32>
    %15 = arith.maximumf %13, %14 : vector<40x64xf32>
    %16 = arith.truncf %15 : vector<40x64xf32> to vector<40x64xbf16>
    %c0_7 = arith.constant 0 : index
    %c0_8 = arith.constant 0 : index
    %17 = vector.load %arg4[%c0_7, %c0_8] : memref<320x128xbf16, #tpu.memory_space<vmem>>, vector<320x128xbf16>
    %18 = vector.extract_strided_slice %16 {offsets = [0, 0], sizes = [8, 64], strides = [1, 1]} : vector<40x64xbf16> to vector<8x64xbf16>
    %19 = vector.extract_strided_slice %17 {offsets = [0, 0], sizes = [64, 128], strides = [1, 1]} : vector<320x128xbf16> to vector<64x128xbf16>
    %cst_9 = arith.constant dense<0.000000e+00> : vector<8x128xf32>
    %20 = tpu.matmul %18, %19, %cst_9 {dimension_numbers = #tpu.dot_dimension_numbers<[1], [0], [0], [1], [0, 0, 1, 1], [], []>} : vector<8x64xbf16>, vector<64x128xbf16>, vector<8x128xf32> -> vector<8x128xf32>
    %21 = vector.extract_strided_slice %16 {offsets = [8, 0], sizes = [8, 64], strides = [1, 1]} : vector<40x64xbf16> to vector<8x64xbf16>
    %22 = vector.extract_strided_slice %17 {offsets = [64, 0], sizes = [64, 128], strides = [1, 1]} : vector<320x128xbf16> to vector<64x128xbf16>
    %cst_10 = arith.constant dense<0.000000e+00> : vector<8x128xf32>
    %23 = tpu.matmul %21, %22, %cst_10 {dimension_numbers = #tpu.dot_dimension_numbers<[1], [0], [0], [1], [0, 0, 1, 1], [], []>} : vector<8x64xbf16>, vector<64x128xbf16>, vector<8x128xf32> -> vector<8x128xf32>
    %24 = arith.addf %20, %23 : vector<8x128xf32>
    %25 = vector.extract_strided_slice %16 {offsets = [16, 0], sizes = [8, 64], strides = [1, 1]} : vector<40x64xbf16> to vector<8x64xbf16>
    %26 = vector.extract_strided_slice %17 {offsets = [128, 0], sizes = [64, 128], strides = [1, 1]} : vector<320x128xbf16> to vector<64x128xbf16>
    %cst_11 = arith.constant dense<0.000000e+00> : vector<8x128xf32>
    %27 = tpu.matmul %25, %26, %cst_11 {dimension_numbers = #tpu.dot_dimension_numbers<[1], [0], [0], [1], [0, 0, 1, 1], [], []>} : vector<8x64xbf16>, vector<64x128xbf16>, vector<8x128xf32> -> vector<8x128xf32>
    %28 = arith.addf %24, %27 : vector<8x128xf32>
    %29 = vector.extract_strided_slice %16 {offsets = [24, 0], sizes = [8, 64], strides = [1, 1]} : vector<40x64xbf16> to vector<8x64xbf16>
    %30 = vector.extract_strided_slice %17 {offsets = [192, 0], sizes = [64, 128], strides = [1, 1]} : vector<320x128xbf16> to vector<64x128xbf16>
    %cst_12 = arith.constant dense<0.000000e+00> : vector<8x128xf32>
    %31 = tpu.matmul %29, %30, %cst_12 {dimension_numbers = #tpu.dot_dimension_numbers<[1], [0], [0], [1], [0, 0, 1, 1], [], []>} : vector<8x64xbf16>, vector<64x128xbf16>, vector<8x128xf32> -> vector<8x128xf32>
    %32 = arith.addf %28, %31 : vector<8x128xf32>
    %33 = vector.extract_strided_slice %16 {offsets = [32, 0], sizes = [8, 64], strides = [1, 1]} : vector<40x64xbf16> to vector<8x64xbf16>
    %34 = vector.extract_strided_slice %17 {offsets = [256, 0], sizes = [64, 128], strides = [1, 1]} : vector<320x128xbf16> to vector<64x128xbf16>
    %cst_13 = arith.constant dense<0.000000e+00> : vector<8x128xf32>
    %35 = tpu.matmul %33, %34, %cst_13 {dimension_numbers = #tpu.dot_dimension_numbers<[1], [0], [0], [1], [0, 0, 1, 1], [], []>} : vector<8x64xbf16>, vector<64x128xbf16>, vector<8x128xf32> -> vector<8x128xf32>
    %36 = arith.addf %32, %35 : vector<8x128xf32>
    %c0_14 = arith.constant 0 : index
    %c0_15 = arith.constant 0 : index
    %37 = vector.load %arg5[%c0_14, %c0_15] : memref<1x128xf32, #tpu.memory_space<vmem>>, vector<1x128xf32>
    %38 = vector.broadcast %37 : vector<1x128xf32> to vector<8x128xf32>
    %39 = arith.addf %36, %38 : vector<8x128xf32>
    %cst_16 = arith.constant 0.000000e+00 : f32
    %40 = vector.broadcast %cst_16 : f32 to vector<8x128xf32>
    %41 = arith.maximumf %39, %40 : vector<8x128xf32>
    %42 = arith.truncf %41 : vector<8x128xf32> to vector<8x128xbf16>
    %c0_17 = arith.constant 0 : index
    %c0_18 = arith.constant 0 : index
    %43 = vector.load %arg6[%c0_17, %c0_18] : memref<128x128xbf16, #tpu.memory_space<vmem>>, vector<128x128xbf16>
    %cst_19 = arith.constant dense<0.000000e+00> : vector<8x128xf32>
    %44 = tpu.matmul %42, %43, %cst_19 {dimension_numbers = #tpu.dot_dimension_numbers<[1], [0], [0], [1], [0, 0, 1, 1], [], []>} : vector<8x128xbf16>, vector<128x128xbf16>, vector<8x128xf32> -> vector<8x128xf32>
    %c0_20 = arith.constant 0 : index
    %c0_21 = arith.constant 0 : index
    %45 = vector.load %arg7[%c0_20, %c0_21] : memref<1x128xf32, #tpu.memory_space<vmem>>, vector<1x128xf32>
    %46 = vector.broadcast %45 : vector<1x128xf32> to vector<8x128xf32>
    %47 = arith.addf %44, %46 : vector<8x128xf32>
    %cst_22 = arith.constant 0.000000e+00 : f32
    %48 = vector.broadcast %cst_22 : f32 to vector<8x128xf32>
    %49 = arith.maximumf %47, %48 : vector<8x128xf32>
    %50 = arith.truncf %49 : vector<8x128xf32> to vector<8x128xbf16>
    %c0_23 = arith.constant 0 : index
    %c0_24 = arith.constant 0 : index
    %51 = vector.load %arg8[%c0_23, %c0_24] : memref<128x128xbf16, #tpu.memory_space<vmem>>, vector<128x128xbf16>
    %cst_25 = arith.constant dense<0.000000e+00> : vector<8x128xf32>
    %52 = tpu.matmul %50, %51, %cst_25 {dimension_numbers = #tpu.dot_dimension_numbers<[1], [0], [0], [1], [0, 0, 1, 1], [], []>} : vector<8x128xbf16>, vector<128x128xbf16>, vector<8x128xf32> -> vector<8x128xf32>
    %c0_26 = arith.constant 0 : index
    %c0_27 = arith.constant 0 : index
    %53 = vector.load %arg9[%c0_26, %c0_27] : memref<1x128xf32, #tpu.memory_space<vmem>>, vector<1x128xf32>
    %54 = vector.broadcast %53 : vector<1x128xf32> to vector<8x128xf32>
    %55 = arith.addf %52, %54 : vector<8x128xf32>
    %cst_28 = arith.constant 0.000000e+00 : f32
    %56 = vector.broadcast %cst_28 : f32 to vector<8x128xf32>
    %57 = arith.maximumf %55, %56 : vector<8x128xf32>
    %58 = arith.truncf %57 : vector<8x128xf32> to vector<8x128xbf16>
    %c0_29 = arith.constant 0 : index
    %c0_30 = arith.constant 0 : index
    %59 = vector.load %arg10[%c0_29, %c0_30] : memref<128x48xbf16, #tpu.memory_space<vmem>>, vector<128x48xbf16>
    %cst_31 = arith.constant dense<0.000000e+00> : vector<8x48xf32>
    %60 = tpu.matmul %58, %59, %cst_31 {dimension_numbers = #tpu.dot_dimension_numbers<[1], [0], [0], [1], [0, 0, 1, 1], [], []>} : vector<8x128xbf16>, vector<128x48xbf16>, vector<8x48xf32> -> vector<8x48xf32>
    %c0_32 = arith.constant 0 : index
    %c0_33 = arith.constant 0 : index
    %61 = vector.load %arg11[%c0_32, %c0_33] : memref<1x48xf32, #tpu.memory_space<vmem>>, vector<1x48xf32>
    %62 = vector.broadcast %61 : vector<1x48xf32> to vector<8x48xf32>
    %63 = arith.addf %60, %62 : vector<8x48xf32>
    %cst_34 = arith.constant dense<0xFF800000> : vector<8xf32>
    %64 = vector.multi_reduction <maximumf>, %63, %cst_34 [1] : vector<8x48xf32> to vector<8xf32>
    %65 = vector.shape_cast %64 : vector<8xf32> to vector<8x1xf32>
    %66 = vector.broadcast %65 : vector<8x1xf32> to vector<8x48xf32>
    %67 = arith.subf %63, %66 : vector<8x48xf32>
    %68 = math.exp %67 : vector<8x48xf32>
    %cst_35 = arith.constant dense<0.000000e+00> : vector<8xf32>
    %69 = vector.multi_reduction <add>, %68, %cst_35 [1] : vector<8x48xf32> to vector<8xf32>
    %70 = vector.shape_cast %69 : vector<8xf32> to vector<8x1xf32>
    %71 = math.log %70 : vector<8x1xf32>
    %72 = vector.broadcast %71 : vector<8x1xf32> to vector<8x48xf32>
    %73 = arith.subf %67, %72 : vector<8x48xf32>
    %c0_36 = arith.constant 0 : index
    %c0_37 = arith.constant 0 : index
    %74 = vector.load %arg12[%c0_36, %c0_37] : memref<8x48xf32, #tpu.memory_space<vmem>>, vector<8x48xf32>
    tpu.vector_store %arg12[%c0_36, %c0_37], %73 {strides = array<i32>} : memref<8x48xf32, #tpu.memory_space<vmem>>, vector<8x48xf32>,
    return
  }
  func.func @transform_0(%arg0: i32) -> (i32, i32, i32) {
    %c0_i32 = arith.constant 0 : i32
    %c0_i32_0 = arith.constant 0 : i32
    %c0_i32_1 = arith.constant 0 : i32
    return %arg0, %c0_i32, %c0_i32_0 : i32, i32, i32
  }
  func.func @transform_1(%arg0: i32) -> (i32, i32) {
    %c0_i32 = arith.constant 0 : i32
    %c0_i32_0 = arith.constant 0 : i32
    %c0_i32_1 = arith.constant 0 : i32
    return %c0_i32, %c0_i32_0 : i32, i32
  }
  func.func @transform_2(%arg0: i32) -> (i32, i32) {
    %c0_i32 = arith.constant 0 : i32
    %c0_i32_0 = arith.constant 0 : i32
    %c0_i32_1 = arith.constant 0 : i32
    return %c0_i32, %c0_i32_0 : i32, i32
  }
  func.func @transform_3(%arg0: i32) -> (i32, i32) {
    %c0_i32 = arith.constant 0 : i32
    %c0_i32_0 = arith.constant 0 : i32
    %c0_i32_1 = arith.constant 0 : i32
    return %c0_i32, %c0_i32_0 : i32, i32
  }
  func.func @transform_4(%arg0: i32) -> (i32, i32) {
    %c0_i32 = arith.constant 0 : i32
    %c0_i32_0 = arith.constant 0 : i32
    %c0_i32_1 = arith.constant 0 : i32
    return %c0_i32, %c0_i32_0 : i32, i32
  }
  func.func @transform_5(%arg0: i32) -> (i32, i32) {
    %c0_i32 = arith.constant 0 : i32
    %c0_i32_0 = arith.constant 0 : i32
    %c0_i32_1 = arith.constant 0 : i32
    return %c0_i32, %c0_i32_0 : i32, i32
  }
  func.func @transform_6(%arg0: i32) -> (i32, i32) {
    %c0_i32 = arith.constant 0 : i32
    %c0_i32_0 = arith.constant 0 : i32
    %c0_i32_1 = arith.constant 0 : i32
    return %c0_i32, %c0_i32_0 : i32, i32
  }
  func.func @transform_7(%arg0: i32) -> (i32, i32) {
    %c0_i32 = arith.constant 0 : i32
    %c0_i32_0 = arith.constant 0 : i32
    %c0_i32_1 = arith.constant 0 : i32
    return %c0_i32, %c0_i32_0 : i32, i32
  }
  func.func @transform_8(%arg0: i32) -> (i32, i32) {
    %c0_i32 = arith.constant 0 : i32
    %c0_i32_0 = arith.constant 0 : i32
    %c0_i32_1 = arith.constant 0 : i32
    return %c0_i32, %c0_i32_0 : i32, i32
  }
  func.func @transform_9(%arg0: i32) -> (i32, i32) {
    %c0_i32 = arith.constant 0 : i32
    %c0_i32_0 = arith.constant 0 : i32
    %c0_i32_1 = arith.constant 0 : i32
    return %c0_i32, %c0_i32_0 : i32, i32
  }
  func.func @transform_10(%arg0: i32) -> (i32, i32) {
    %c0_i32 = arith.constant 0 : i32
    %c0_i32_0 = arith.constant 0 : i32
    %c0_i32_1 = arith.constant 0 : i32
    return %c0_i32, %c0_i32_0 : i32, i32
  }
  func.func @transform_11(%arg0: i32) -> (i32, i32) {
    %c0_i32 = arith.constant 0 : i32
    %c0_i32_0 = arith.constant 0 : i32
    return %arg0, %c0_i32 : i32, i32
  }
}

</mosaic_0001>

<llo_original>
// kernel: mynet_forward.3
$region0: #{mynet_forward.3}
  #allocation0 [shape = 'u32[]', space=smem, size = 0x4, offset = 0x4, fixed_abs, tag = 'smem constant byte address 0x4 - core index']
  #allocation1 [shape = 'u32[144,128]{1,0:T(1,128)}', space=vmem, size = 0x12000, scoped, tag = 'internal scratch']
  %s0 = inlined_call_operand.vmem [shape: bf16[1,640,25], index: 0, kind: input, shape index: {}]
  %s1 = inlined_call_operand.vmem [shape: bf16[25,32], index: 1, kind: input, shape index: {}]
  %s2 = inlined_call_operand.vmem [shape: f32[1,32], index: 2, kind: input, shape index: {}]
  %s3 = inlined_call_operand.vmem [shape: bf16[1,160,32], index: 3, kind: output, shape index: {}]
  %s4 = sld [smem:[#allocation0]]
  $region22: #{mynet_forward.3} parent=0
    _
  %s6 = ssub.s32 1, %s4
  %s7 = scalar_select 0, %s6, %s4
  // Predicated region
  $region2: #{mynet_forward.3} parent=0 // pred_check
    _
  $region3: #{mynet_forward.3} parent=0 // pred_check_branch
    %9 = sbr.rel (0) target = $region5
  $region4: #{mynet_forward.3} parent=0 // pred_region
    _
  $region5: #{mynet_forward.3} parent=0 // pred_fallthru
    _
  // Predicated region
  $region6: #{mynet_forward.3} parent=0 // pred_check
    _
  $region7: #{mynet_forward.3} parent=0 // pred_check_branch
    %11 = sbr.rel (0) target = $region9
  $region8: #{mynet_forward.3} parent=0 // pred_region
    _
  $region9: #{mynet_forward.3} parent=0 // pred_fallthru
    _
  // Predicated region
  $region10: #{mynet_forward.3} parent=0 // pred_check
    _
  $region11: #{mynet_forward.3} parent=0 // pred_check_branch
    %13 = sbr.rel (0) target = $region13
  $region12: #{mynet_forward.3} parent=0 // pred_region
    _
  $region13: #{mynet_forward.3} parent=0 // pred_fallthru
    _
  %v15 = vld [vmem:[%s0] sm:$0xf]
  %v16 = vld [vmem:[%s0 + $0x4] sm:$0xf]
  %v17 = vld [vmem:[%s0 + $0x8] sm:$0xf]
  %v18 = vld [vmem:[%s0 + $0xc] sm:$0xf]
  %v19 = vld [vmem:[%s0 + $0x10] sm:$0xf]
  %v20 = vld [vmem:[%s0 + $0x14] sm:$0xf]
  %v21 = vld [vmem:[%s0 + $0x18] sm:$0xf]
  %v22 = vld [vmem:[%s0 + $0x1c] sm:$0xf]
  %v23 = vld [vmem:[%s0 + $0x20] sm:$0xf]
  %v24 = vld [vmem:[%s0 + $0x24] sm:$0xf]
  %v25 = vld [vmem:[%s0 + $0x28] sm:$0xf]
  %v26 = vld [vmem:[%s0 + $0x2c] sm:$0xf]
  %v27 = vld [vmem:[%s0 + $0x30] sm:$0xf]
  %v28 = vld [vmem:[%s0 + $0x34] sm:$0xf]
  %v29 = vld [vmem:[%s0 + $0x38] sm:$0xf]
  %v30 = vld [vmem:[%s0 + $0x3c] sm:$0xf]
  %v31 = vld [vmem:[%s0 + $0x40] sm:$0xf]
  %v32 = vld [vmem:[%s0 + $0x44] sm:$0xf]
  %v33 = vld [vmem:[%s0 + $0x48] sm:$0xf]
  %v34 = vld [vmem:[%s0 + $0x4c] sm:$0xf]
  %v35 = vld [vmem:[%s0 + $0x50] sm:$0xf]
  %v36 = vld [vmem:[%s0 + $0x54] sm:$0xf]
  %v37 = vld [vmem:[%s0 + $0x58] sm:$0xf]
  %v38 = vld [vmem:[%s0 + $0x5c] sm:$0xf]
  %v39 = vld [vmem:[%s0 + $0x60] sm:$0xf]
  %v40 = vld [vmem:[%s0 + $0x64] sm:$0xf]
  %v41 = vld [vmem:[%s0 + $0x68] sm:$0xf]
  %v42 = vld [vmem:[%s0 + $0x6c] sm:$0xf]
  %v43 = vld [vmem:[%s0 + $0x70] sm:$0xf]
  %v44 = vld [vmem:[%s0 + $0x74] sm:$0xf]
  %v45 = vld [vmem:[%s0 + $0x78] sm:$0xf]
  %v46 = vld [vmem:[%s0 + $0x7c] sm:$0xf]
  %v47 = vld [vmem:[%s0 + $0x80] sm:$0xf]
  %v48 = vld [vmem:[%s0 + $0x84] sm:$0xf]
  %v49 = vld [vmem:[%s0 + $0x88] sm:$0xf]
  %v50 = vld [vmem:[%s0 + $0x8c] sm:$0xf]
  %v51 = vld [vmem:[%s0 + $0x90] sm:$0xf]
  %v52 = vld [vmem:[%s0 + $0x94] sm:$0xf]
  %v53 = vld [vmem:[%s0 + $0x98] sm:$0xf]
  %v54 = vld [vmem:[%s0 + $0x9c] sm:$0xf]
  %v55 = vld [vmem:[%s0 + $0xa0] sm:$0xf]
  %v56 = vld [vmem:[%s0 + $0xa4] sm:$0xf]
  %v57 = vld [vmem:[%s0 + $0xa8] sm:$0xf]
  %v58 = vld [vmem:[%s0 + $0xac] sm:$0xf]
  %v59 = vld [vmem:[%s0 + $0xb0] sm:$0xf]
  %v60 = vld [vmem:[%s0 + $0xb4] sm:$0xf]
  %v61 = vld [vmem:[%s0 + $0xb8] sm:$0xf]
  %v62 = vld [vmem:[%s0 + $0xbc] sm:$0xf]
  %v63 = vld [vmem:[%s0 + $0xc0] sm:$0xf]
  %v64 = vld [vmem:[%s0 + $0xc4] sm:$0xf]
  %v65 = vld [vmem:[%s0 + $0xc8] sm:$0xf]
  %v66 = vld [vmem:[%s0 + $0xcc] sm:$0xf]
  %v67 = vld [vmem:[%s0 + $0xd0] sm:$0xf]
  %v68 = vld [vmem:[%s0 + $0xd4] sm:$0xf]
  %v69 = vld [vmem:[%s0 + $0xd8] sm:$0xf]
  %v70 = vld [vmem:[%s0 + $0xdc] sm:$0xf]
  %v71 = vld [vmem:[%s0 + $0xe0] sm:$0xf]
  %v72 = vld [vmem:[%s0 + $0xe4] sm:$0xf]
  %v73 = vld [vmem:[%s0 + $0xe8] sm:$0xf]
  %v74 = vld [vmem:[%s0 + $0xec] sm:$0xf]
  %v75 = vld [vmem:[%s0 + $0xf0] sm:$0xf]
  %v76 = vld [vmem:[%s0 + $0xf4] sm:$0xf]
  %v77 = vld [vmem:[%s0 + $0xf8] sm:$0xf]
  %v78 = vld [vmem:[%s0 + $0xfc] sm:$0xf]
  %v79 = vld [vmem:[%s0 + $0x100] sm:$0xf]
  %v80 = vld [vmem:[%s0 + $0x104] sm:$0xf]
  %v81 = vld [vmem:[%s0 + $0x108] sm:$0xf]
  %v82 = vld [vmem:[%s0 + $0x10c] sm:$0xf]
  %v83 = vld [vmem:[%s0 + $0x110] sm:$0xf]
  %v84 = vld [vmem:[%s0 + $0x114] sm:$0xf]
  %v85 = vld [vmem:[%s0 + $0x118] sm:$0xf]
  %v86 = vld [vmem:[%s0 + $0x11c] sm:$0xf]
  %v87 = vld [vmem:[%s0 + $0x120] sm:$0xf]
  %v88 = vld [vmem:[%s0 + $0x124] sm:$0xf]
  %v89 = vld [vmem:[%s0 + $0x128] sm:$0xf]
  %v90 = vld [vmem:[%s0 + $0x12c] sm:$0xf]
  %v91 = vld [vmem:[%s0 + $0x130] sm:$0xf]
  %v92 = vld [vmem:[%s0 + $0x134] sm:$0xf]
  %v93 = vld [vmem:[%s0 + $0x138] sm:$0xf]
  %v94 = vld [vmem:[%s0 + $0x13c] sm:$0xf]
  %v95 = vld [vmem:[%s1] sm:$0xf]
  %v96 = vld [vmem:[%s1 + $0x4] sm:$0xf]
  %v97 = vld [vmem:[%s1 + $0x8] sm:$0xf]
  %v98 = vld [vmem:[%s1 + $0xc] sm:$0x1]
  %v179 = vunpack.c.l.b16 %v15
  %v180 = vunpack.c.l.b16 %v16
  %v181 = vunpack.c.l.b16 %v17
  %v182 = vunpack.c.l.b16 %v18
  %v183 = vunpack.c.l.b16 %v19
  %v184 = vunpack.c.l.b16 %v20
  %v185 = vunpack.c.l.b16 %v21
  %v186 = vunpack.c.l.b16 %v22
  %v187 = vunpack.c.l.b16 %v23
  %v188 = vunpack.c.l.b16 %v24
  %v189 = vunpack.c.l.b16 %v25
  %v190 = vunpack.c.l.b16 %v26
  %v191 = vunpack.c.l.b16 %v27
  %v192 = vunpack.c.l.b16 %v28
  %v193 = vunpack.c.l.b16 %v29
  %v194 = vunpack.c.l.b16 %v30
  %v195 = vunpack.c.l.b16 %v31
  %v196 = vunpack.c.l.b16 %v32
  %v197 = vunpack.c.l.b16 %v33
  %v198 = vunpack.c.l.b16 %v34
  %v199 = vunpack.c.l.b16 %v35
  %v200 = vunpack.c.l.b16 %v36
  %v201 = vunpack.c.l.b16 %v37
  %v202 = vunpack.c.l.b16 %v38
  %v203 = vunpack.c.l.b16 %v39
  %v204 = vunpack.c.l.b16 %v40
  %v205 = vunpack.c.l.b16 %v41
  %v206 = vunpack.c.l.b16 %v42
  %v207 = vunpack.c.l.b16 %v43
  %v208 = vunpack.c.l.b16 %v44
  %v209 = vunpack.c.l.b16 %v45
  %v210 = vunpack.c.l.b16 %v46
  %v211 = vunpack.c.l.b16 %v47
  %v212 = vunpack.c.l.b16 %v48
  %v213 = vunpack.c.l.b16 %v49
  %v214 = vunpack.c.l.b16 %v50
  %v215 = vunpack.c.l.b16 %v51
  %v216 = vunpack.c.l.b16 %v52
  %v217 = vunpack.c.l.b16 %v53
  %v218 = vunpack.c.l.b16 %v54
  %v219 = vunpack.c.l.b16 %v55
  %v220 = vunpack.c.l.b16 %v56
  %v221 = vunpack.c.l.b16 %v57
  %v222 = vunpack.c.l.b16 %v58
  %v223 = vunpack.c.l.b16 %v59
  %v224 = vunpack.c.l.b16 %v60
  %v225 = vunpack.c.l.b16 %v61
  %v226 = vunpack.c.l.b16 %v62
  %v227 = vunpack.c.l.b16 %v63
  %v228 = vunpack.c.l.b16 %v64
  %v229 = vunpack.c.l.b16 %v65
  %v230 = vunpack.c.l.b16 %v66
  %v231 = vunpack.c.l.b16 %v67
  %v232 = vunpack.c.l.b16 %v68
  %v233 = vunpack.c.l.b16 %v69
  %v234 = vunpack.c.l.b16 %v70
  %v235 = vunpack.c.l.b16 %v71
  %v236 = vunpack.c.l.b16 %v72
  %v237 = vunpack.c.l.b16 %v73
  %v238 = vunpack.c.l.b16 %v74
  %v239 = vunpack.c.l.b16 %v75
  %v240 = vunpack.c.l.b16 %v76
  %v241 = vunpack.c.l.b16 %v77
  %v242 = vunpack.c.l.b16 %v78
  %v243 = vunpack.c.l.b16 %v79
  %v244 = vunpack.c.l.b16 %v80
  %v245 = vunpack.c.l.b16 %v81
  %v246 = vunpack.c.l.b16 %v82
  %v247 = vunpack.c.l.b16 %v83
  %v248 = vunpack.c.l.b16 %v84
  %v249 = vunpack.c.l.b16 %v85
  %v250 = vunpack.c.l.b16 %v86
  %v251 = vunpack.c.l.b16 %v87
  %v252 = vunpack.c.l.b16 %v88
  %v253 = vunpack.c.l.b16 %v89
  %v254 = vunpack.c.l.b16 %v90
  %v255 = vunpack.c.l.b16 %v91
  %v256 = vunpack.c.l.b16 %v92
  %v257 = vunpack.c.l.b16 %v93
  %v258 = vunpack.c.l.b16 %v94
  %v259 = vpack.c.b16 %v180, %v179
  %v260 = vpack.c.b16 %v182, %v181
  %v261 = vpack.c.b16 %v184, %v183
  %v262 = vpack.c.b16 %v186, %v185
  %v263 = vpack.c.b16 %v188, %v187
  %v264 = vpack.c.b16 %v190, %v189
  %v265 = vpack.c.b16 %v192, %v191
  %v266 = vpack.c.b16 %v194, %v193
  %v267 = vpack.c.b16 %v196, %v195
  %v268 = vpack.c.b16 %v198, %v197
  %v269 = vpack.c.b16 %v200, %v199
  %v270 = vpack.c.b16 %v202, %v201
  %v271 = vpack.c.b16 %v204, %v203
  %v272 = vpack.c.b16 %v206, %v205
  %v273 = vpack.c.b16 %v208, %v207
  %v274 = vpack.c.b16 %v210, %v209
  %v275 = vpack.c.b16 %v212, %v211
  %v276 = vpack.c.b16 %v214, %v213
  %v277 = vpack.c.b16 %v216, %v215
  %v278 = vpack.c.b16 %v218, %v217
  %v279 = vpack.c.b16 %v220, %v219
  %v280 = vpack.c.b16 %v222, %v221
  %v281 = vpack.c.b16 %v224, %v223
  %v282 = vpack.c.b16 %v226, %v225
  %v283 = vpack.c.b16 %v228, %v227
  %v284 = vpack.c.b16 %v230, %v229
  %v285 = vpack.c.b16 %v232, %v231
  %v286 = vpack.c.b16 %v234, %v233
  %v287 = vpack.c.b16 %v236, %v235
  %v288 = vpack.c.b16 %v238, %v237
  %v289 = vpack.c.b16 %v240, %v239
  %v290 = vpack.c.b16 %v242, %v241
  %v291 = vpack.c.b16 %v244, %v243
  %v292 = vpack.c.b16 %v246, %v245
  %v293 = vpack.c.b16 %v248, %v247
  %v294 = vpack.c.b16 %v250, %v249
  %v295 = vpack.c.b16 %v252, %v251
  %v296 = vpack.c.b16 %v254, %v253
  %v297 = vpack.c.b16 %v256, %v255
  %v298 = vpack.c.b16 %v258, %v257
  %v303 = vunpack.c.l.b16 %v95
  %v304 = vunpack.c.l.b16 %v96
  %v305 = vunpack.c.l.b16 %v97
  %v306 = vunpack.c.l.b16 %v98
  %v307 = vpack.c.b16 %v304, %v303
  %v308 = vpack.c.b16 %v306, %v305
  %vm310 = vcmask 203776
  %v312 = vsel %vm310, %v259, 0
  %v315 = vsel %vm310, %v260, 0
  %v318 = vsel %vm310, %v261, 0
  %v321 = vsel %vm310, %v262, 0
  %v324 = vsel %vm310, %v263, 0
  %v327 = vsel %vm310, %v264, 0
  %v330 = vsel %vm310, %v265, 0
  %v333 = vsel %vm310, %v266, 0
  %v336 = vsel %vm310, %v267, 0
  %v339 = vsel %vm310, %v268, 0
  %v342 = vsel %vm310, %v269, 0
  %v345 = vsel %vm310, %v270, 0
  %v348 = vsel %vm310, %v271, 0
  %v351 = vsel %vm310, %v272, 0
  %v354 = vsel %vm310, %v273, 0
  %v357 = vsel %vm310, %v274, 0
  %v360 = vsel %vm310, %v275, 0
  %v363 = vsel %vm310, %v276, 0
  %v366 = vsel %vm310, %v277, 0
  %v369 = vsel %vm310, %v278, 0
  %v372 = vsel %vm310, %v279, 0
  %v375 = vsel %vm310, %v280, 0
  %v378 = vsel %vm310, %v281, 0
  %v381 = vsel %vm310, %v282, 0
  %v384 = vsel %vm310, %v283, 0
  %v387 = vsel %vm310, %v284, 0
  %v390 = vsel %vm310, %v285, 0
  %v393 = vsel %vm310, %v286, 0
  %v396 = vsel %vm310, %v287, 0
  %v399 = vsel %vm310, %v288, 0
  %v402 = vsel %vm310, %v289, 0
  %v405 = vsel %vm310, %v290, 0
  %v408 = vsel %vm310, %v291, 0
  %v411 = vsel %vm310, %v292, 0
  %v414 = vsel %vm310, %v293, 0
  %v417 = vsel %vm310, %v294, 0
  %v420 = vsel %vm310, %v295, 0
  %v423 = vsel %vm310, %v296, 0
  %v426 = vsel %vm310, %v297, 0
  %v429 = vsel %vm310, %v298, 0
  %vm431 = vcmask 1043456
  %vm432 = vcmask 1044480
  %v433 = vsel %vm431, 4294967295, 65535
  %v434 = vsel %vm432, %v433, 0
  %v436 = vand.u32 %v308, %v434
  %438 = vmatprep.subr.bf16.mxu0 0
  %439 = vmatpush1.bf16.msra.mxu0 0
  %440 = vmatprep.subr.bf16.mxu0 0
  %441 = vmatpush1.bf16.msra.mxu0 0
  %442 = vmatprep.subr.bf16.mxu0 0
  %443 = vmatpush1.bf16.msra.mxu0 0
  %444 = vmatprep.subr.bf16.mxu0 0
  %445 = vmatpush1.bf16.msra.mxu0 0
  %446 = vmatprep.subr.bf16.mxu0 0
  %447 = vmatpush1.bf16.msra.mxu0 0
  %448 = vmatprep.subr.bf16.mxu0 0
  %449 = vmatpush1.bf16.msra.mxu0 0
  %450 = vmatprep.subr.bf16.mxu0 0
  %451 = vmatpush1.bf16.msra.mxu0 %v436
  %452 = vmatprep.subr.bf16.mxu0 0
  %453 = vmatpush1.bf16.msra.mxu0 %v307
  %454 = vmatprep.subr.bf16.mxu0 0
  %455 = vmatpush2.bf16.msra.mxu0 0
  %456 = vmatprep.subr.bf16.mxu0 0
  %457 = vmatpush2.bf16.msra.mxu0 0
  %458 = vmatprep.subr.bf16.mxu0 0
  %459 = vmatpush2.bf16.msra.mxu0 0
  %460 = vmatprep.subr.bf16.mxu0 0
  %461 = vmatpush2.bf16.msra.mxu0 0
  %462 = vmatprep.subr.bf16.mxu0 0
  %463 = vmatpush2.bf16.msra.mxu0 0
  %464 = vmatprep.subr.bf16.mxu0 0
  %465 = vmatpush2.bf16.msra.mxu0 0
  %466 = vmatprep.subr.bf16.mxu0 0
  %467 = vmatpush2.bf16.msra.mxu0 0
  %468 = vmatprep.subr.bf16.mxu0 0
  %469 = vmatpush2.bf16.msra.mxu0 0
  %470 = vmatprep.mubr.bf16.mxu0 0
  %471 = vmatmul.mubr.bf16.gmra.mxu0 %v312
  %v472 = vpop.f32.mrf.mxu0
  %v473 = vadd.f32 0.0, %v472
  %v474 = vpop.f32.mrf.mxu0
  %v475 = vpop.f32.mrf.mxu0
  %v476 = vadd.f32 0.0, %v475
  %v477 = vpop.f32.mrf.mxu0
  %478 = vmatprep.mubr.bf16.mxu0 0
  %479 = vmatmul.mubr.bf16.gmra.mxu0 %v315
  %v480 = vpop.f32.mrf.mxu0
  %v481 = vadd.f32 0.0, %v480
  %v482 = vpop.f32.mrf.mxu0
  %v483 = vpop.f32.mrf.mxu0
  %v484 = vadd.f32 0.0, %v483
  %v485 = vpop.f32.mrf.mxu0
  %486 = vmatprep.mubr.bf16.mxu0 0
  %487 = vmatmul.mubr.bf16.gmra.mxu0 %v318
  %v488 = vpop.f32.mrf.mxu0
  %v489 = vadd.f32 0.0, %v488
  %v490 = vpop.f32.mrf.mxu0
  %v491 = vpop.f32.mrf.mxu0
  %v492 = vadd.f32 0.0, %v491
  %v493 = vpop.f32.mrf.mxu0
  %494 = vmatprep.mubr.bf16.mxu0 0
  %495 = vmatmul.mubr.bf16.gmra.mxu0 %v321
  %v496 = vpop.f32.mrf.mxu0
  %v497 = vadd.f32 0.0, %v496
  %v498 = vpop.f32.mrf.mxu0
  %v499 = vpop.f32.mrf.mxu0
  %v500 = vadd.f32 0.0, %v499
  %v501 = vpop.f32.mrf.mxu0
  %502 = vmatprep.mubr.bf16.mxu0 0
  %503 = vmatmul.mubr.bf16.gmra.mxu0 %v324
  %v504 = vpop.f32.mrf.mxu0
  %v505 = vadd.f32 0.0, %v504
  %v506 = vpop.f32.mrf.mxu0
  %v507 = vpop.f32.mrf.mxu0
  %v508 = vadd.f32 0.0, %v507
  %v509 = vpop.f32.mrf.mxu0
  %510 = vmatprep.mubr.bf16.mxu0 0
  %511 = vmatmul.mubr.bf16.gmra.mxu0 %v327
  %v512 = vpop.f32.mrf.mxu0
  %v513 = vadd.f32 0.0, %v512
  %v514 = vpop.f32.mrf.mxu0
  %v515 = vpop.f32.mrf.mxu0
  %v516 = vadd.f32 0.0, %v515
  %v517 = vpop.f32.mrf.mxu0
  %518 = vmatprep.mubr.bf16.mxu0 0
  %519 = vmatmul.mubr.bf16.gmra.mxu0 %v330
  %v520 = vpop.f32.mrf.mxu0
  %v521 = vadd.f32 0.0, %v520
  %v522 = vpop.f32.mrf.mxu0
  %v523 = vpop.f32.mrf.mxu0
  %v524 = vadd.f32 0.0, %v523
  %v525 = vpop.f32.mrf.mxu0
  %526 = vmatprep.mubr.bf16.mxu0 0
  %527 = vmatmul.mubr.bf16.gmra.mxu0 %v333
  %v528 = vpop.f32.mrf.mxu0
  %v529 = vadd.f32 0.0, %v528
  %v530 = vpop.f32.mrf.mxu0
  %v531 = vpop.f32.mrf.mxu0
  %v532 = vadd.f32 0.0, %v531
  %v533 = vpop.f32.mrf.mxu0
  %534 = vmatprep.mubr.bf16.mxu0 0
  %535 = vmatmul.mubr.bf16.gmra.mxu0 %v336
  %v536 = vpop.f32.mrf.mxu0
  %v537 = vadd.f32 0.0, %v536
  %v538 = vpop.f32.mrf.mxu0
  %v539 = vpop.f32.mrf.mxu0
  %v540 = vadd.f32 0.0, %v539
  %v541 = vpop.f32.mrf.mxu0
  %542 = vmatprep.mubr.bf16.mxu0 0
  %543 = vmatmul.mubr.bf16.gmra.mxu0 %v339
  %v544 = vpop.f32.mrf.mxu0
  %v545 = vadd.f32 0.0, %v544
  %v546 = vpop.f32.mrf.mxu0
  %v547 = vpop.f32.mrf.mxu0
  %v548 = vadd.f32 0.0, %v547
  %v549 = vpop.f32.mrf.mxu0
  %550 = vmatprep.mubr.bf16.mxu0 0
  %551 = vmatmul.mubr.bf16.gmra.mxu0 %v342
  %v552 = vpop.f32.mrf.mxu0
  %v553 = vadd.f32 0.0, %v552
  %v554 = vpop.f32.mrf.mxu0
  %v555 = vpop.f32.mrf.mxu0
  %v556 = vadd.f32 0.0, %v555
  %v557 = vpop.f32.mrf.mxu0
  %558 = vmatprep.mubr.bf16.mxu0 0
  %559 = vmatmul.mubr.bf16.gmra.mxu0 %v345
  %v560 = vpop.f32.mrf.mxu0
  %v561 = vadd.f32 0.0, %v560
  %v562 = vpop.f32.mrf.mxu0
  %v563 = vpop.f32.mrf.mxu0
  %v564 = vadd.f32 0.0, %v563
  %v565 = vpop.f32.mrf.mxu0
  %566 = vmatprep.mubr.bf16.mxu0 0
  %567 = vmatmul.mubr.bf16.gmra.mxu0 %v348
  %v568 = vpop.f32.mrf.mxu0
  %v569 = vadd.f32 0.0, %v568
  %v570 = vpop.f32.mrf.mxu0
  %v571 = vpop.f32.mrf.mxu0
  %v572 = vadd.f32 0.0, %v571
  %v573 = vpop.f32.mrf.mxu0
  %574 = vmatprep.mubr.bf16.mxu0 0
  %575 = vmatmul.mubr.bf16.gmra.mxu0 %v351
  %v576 = vpop.f32.mrf.mxu0
  %v577 = vadd.f32 0.0, %v576
  %v578 = vpop.f32.mrf.mxu0
  %v579 = vpop.f32.mrf.mxu0
  %v580 = vadd.f32 0.0, %v579
  %v581 = vpop.f32.mrf.mxu0
  %582 = vmatprep.mubr.bf16.mxu0 0
  %583 = vmatmul.mubr.bf16.gmra.mxu0 %v354
  %v584 = vpop.f32.mrf.mxu0
  %v585 = vadd.f32 0.0, %v584
  %v586 = vpop.f32.mrf.mxu0
  %v587 = vpop.f32.mrf.mxu0
  %v588 = vadd.f32 0.0, %v587
  %v589 = vpop.f32.mrf.mxu0
  %590 = vmatprep.mubr.bf16.mxu0 0
  %591 = vmatmul.mubr.bf16.gmra.mxu0 %v357
  %v592 = vpop.f32.mrf.mxu0
  %v593 = vadd.f32 0.0, %v592
  %v594 = vpop.f32.mrf.mxu0
  %v595 = vpop.f32.mrf.mxu0
  %v596 = vadd.f32 0.0, %v595
  %v597 = vpop.f32.mrf.mxu0
  %598 = vmatprep.mubr.bf16.mxu0 0
  %599 = vmatmul.mubr.bf16.gmra.mxu0 %v360
  %v600 = vpop.f32.mrf.mxu0
  %v601 = vadd.f32 0.0, %v600
  %v602 = vpop.f32.mrf.mxu0
  %v603 = vpop.f32.mrf.mxu0
  %v604 = vadd.f32 0.0, %v603
  %v605 = vpop.f32.mrf.mxu0
  %606 = vmatprep.mubr.bf16.mxu0 0
  %607 = vmatmul.mubr.bf16.gmra.mxu0 %v363
  %v608 = vpop.f32.mrf.mxu0
  %v609 = vadd.f32 0.0, %v608
  %v610 = vpop.f32.mrf.mxu0
  %v611 = vpop.f32.mrf.mxu0
  %v612 = vadd.f32 0.0, %v611
  %v613 = vpop.f32.mrf.mxu0
  %614 = vmatprep.mubr.bf16.mxu0 0
  %615 = vmatmul.mubr.bf16.gmra.mxu0 %v366
  %v616 = vpop.f32.mrf.mxu0
  %v617 = vadd.f32 0.0, %v616
  %v618 = vpop.f32.mrf.mxu0
  %v619 = vpop.f32.mrf.mxu0
  %v620 = vadd.f32 0.0, %v619
  %v621 = vpop.f32.mrf.mxu0
  %622 = vmatprep.mubr.bf16.mxu0 0
  %623 = vmatmul.mubr.bf16.gmra.mxu0 %v369
  %v624 = vpop.f32.mrf.mxu0
  %v625 = vadd.f32 0.0, %v624
  %v626 = vpop.f32.mrf.mxu0
  %v627 = vpop.f32.mrf.mxu0
  %v628 = vadd.f32 0.0, %v627
  %v629 = vpop.f32.mrf.mxu0
  %630 = vmatprep.mubr.bf16.mxu0 0
  %631 = vmatmul.mubr.bf16.gmra.mxu0 %v372
  %v632 = vpop.f32.mrf.mxu0
  %v633 = vadd.f32 0.0, %v632
  %v634 = vpop.f32.mrf.mxu0
  %v635 = vpop.f32.mrf.mxu0
  %v636 = vadd.f32 0.0, %v635
  %v637 = vpop.f32.mrf.mxu0
  %638 = vmatprep.mubr.bf16.mxu0 0
  %639 = vmatmul.mubr.bf16.gmra.mxu0 %v375
  %v640 = vpop.f32.mrf.mxu0
  %v641 = vadd.f32 0.0, %v640
  %v642 = vpop.f32.mrf.mxu0
  %v643 = vpop.f32.mrf.mxu0
  %v644 = vadd.f32 0.0, %v643
  %v645 = vpop.f32.mrf.mxu0
  %646 = vmatprep.mubr.bf16.mxu0 0
  %647 = vmatmul.mubr.bf16.gmra.mxu0 %v378
  %v648 = vpop.f32.mrf.mxu0
  %v649 = vadd.f32 0.0, %v648
  %v650 = vpop.f32.mrf.mxu0
  %v651 = vpop.f32.mrf.mxu0
  %v652 = vadd.f32 0.0, %v651
  %v653 = vpop.f32.mrf.mxu0
  %654 = vmatprep.mubr.bf16.mxu0 0
  %655 = vmatmul.mubr.bf16.gmra.mxu0 %v381
  %v656 = vpop.f32.mrf.mxu0
  %v657 = vadd.f32 0.0, %v656
  %v658 = vpop.f32.mrf.mxu0
  %v659 = vpop.f32.mrf.mxu0
  %v660 = vadd.f32 0.0, %v659
  %v661 = vpop.f32.mrf.mxu0
  %662 = vmatprep.mubr.bf16.mxu0 0
  %663 = vmatmul.mubr.bf16.gmra.mxu0 %v384
  %v664 = vpop.f32.mrf.mxu0
  %v665 = vadd.f32 0.0, %v664
  %v666 = vpop.f32.mrf.mxu0
  %v667 = vpop.f32.mrf.mxu0
  %v668 = vadd.f32 0.0, %v667
  %v669 = vpop.f32.mrf.mxu0
  %670 = vmatprep.mubr.bf16.mxu0 0
  %671 = vmatmul.mubr.bf16.gmra.mxu0 %v387
  %v672 = vpop.f32.mrf.mxu0
  %v673 = vadd.f32 0.0, %v672
  %v674 = vpop.f32.mrf.mxu0
  %v675 = vpop.f32.mrf.mxu0
  %v676 = vadd.f32 0.0, %v675
  %v677 = vpop.f32.mrf.mxu0
  %678 = vmatprep.mubr.bf16.mxu0 0
  %679 = vmatmul.mubr.bf16.gmra.mxu0 %v390
  %v680 = vpop.f32.mrf.mxu0
  %v681 = vadd.f32 0.0, %v680
  %v682 = vpop.f32.mrf.mxu0
  %v683 = vpop.f32.mrf.mxu0
  %v684 = vadd.f32 0.0, %v683
  %v685 = vpop.f32.mrf.mxu0
  %686 = vmatprep.mubr.bf16.mxu0 0
  %687 = vmatmul.mubr.bf16.gmra.mxu0 %v393
  %v688 = vpop.f32.mrf.mxu0
  %v689 = vadd.f32 0.0, %v688
  %v690 = vpop.f32.mrf.mxu0
  %v691 = vpop.f32.mrf.mxu0
  %v692 = vadd.f32 0.0, %v691
  %v693 = vpop.f32.mrf.mxu0
  %694 = vmatprep.mubr.bf16.mxu0 0
  %695 = vmatmul.mubr.bf16.gmra.mxu0 %v396
  %v696 = vpop.f32.mrf.mxu0
  %v697 = vadd.f32 0.0, %v696
  %v698 = vpop.f32.mrf.mxu0
  %v699 = vpop.f32.mrf.mxu0
  %v700 = vadd.f32 0.0, %v699
  %v701 = vpop.f32.mrf.mxu0
  %702 = vmatprep.mubr.bf16.mxu0 0
  %703 = vmatmul.mubr.bf16.gmra.mxu0 %v399
  %v704 = vpop.f32.mrf.mxu0
  %v705 = vadd.f32 0.0, %v704
  %v706 = vpop.f32.mrf.mxu0
  %v707 = vpop.f32.mrf.mxu0
  %v708 = vadd.f32 0.0, %v707
  %v709 = vpop.f32.mrf.mxu0
  %710 = vmatprep.mubr.bf16.mxu0 0
  %711 = vmatmul.mubr.bf16.gmra.mxu0 %v402
  %v712 = vpop.f32.mrf.mxu0
  %v713 = vadd.f32 0.0, %v712
  %v714 = vpop.f32.mrf.mxu0
  %v715 = vpop.f32.mrf.mxu0
  %v716 = vadd.f32 0.0, %v715
  %v717 = vpop.f32.mrf.mxu0
  %718 = vmatprep.mubr.bf16.mxu0 0
  %719 = vmatmul.mubr.bf16.gmra.mxu0 %v405
  %v720 = vpop.f32.mrf.mxu0
  %v721 = vadd.f32 0.0, %v720
  %v722 = vpop.f32.mrf.mxu0
  %v723 = vpop.f32.mrf.mxu0
  %v724 = vadd.f32 0.0, %v723
  %v725 = vpop.f32.mrf.mxu0
  %726 = vmatprep.mubr.bf16.mxu0 0
  %727 = vmatmul.mubr.bf16.gmra.mxu0 %v408
  %v728 = vpop.f32.mrf.mxu0
  %v729 = vadd.f32 0.0, %v728
  %v730 = vpop.f32.mrf.mxu0
  %v731 = vpop.f32.mrf.mxu0
  %v732 = vadd.f32 0.0, %v731
  %v733 = vpop.f32.mrf.mxu0
  %734 = vmatprep.mubr.bf16.mxu0 0
  %735 = vmatmul.mubr.bf16.gmra.mxu0 %v411
  %v736 = vpop.f32.mrf.mxu0
  %v737 = vadd.f32 0.0, %v736
  %v738 = vpop.f32.mrf.mxu0
  %v739 = vpop.f32.mrf.mxu0
  %v740 = vadd.f32 0.0, %v739
  %v741 = vpop.f32.mrf.mxu0
  %742 = vmatprep.mubr.bf16.mxu0 0
  %743 = vmatmul.mubr.bf16.gmra.mxu0 %v414
  %v744 = vpop.f32.mrf.mxu0
  %v745 = vadd.f32 0.0, %v744
  %v746 = vpop.f32.mrf.mxu0
  %v747 = vpop.f32.mrf.mxu0
  %v748 = vadd.f32 0.0, %v747
  %v749 = vpop.f32.mrf.mxu0
  %750 = vmatprep.mubr.bf16.mxu0 0
  %751 = vmatmul.mubr.bf16.gmra.mxu0 %v417
  %v752 = vpop.f32.mrf.mxu0
  %v753 = vadd.f32 0.0, %v752
  %v754 = vpop.f32.mrf.mxu0
  %v755 = vpop.f32.mrf.mxu0
  %v756 = vadd.f32 0.0, %v755
  %v757 = vpop.f32.mrf.mxu0
  %758 = vmatprep.mubr.bf16.mxu0 0
  %759 = vmatmul.mubr.bf16.gmra.mxu0 %v420
  %v760 = vpop.f32.mrf.mxu0
  %v761 = vadd.f32 0.0, %v760
  %v762 = vpop.f32.mrf.mxu0
  %v763 = vpop.f32.mrf.mxu0
  %v764 = vadd.f32 0.0, %v763
  %v765 = vpop.f32.mrf.mxu0
  %766 = vmatprep.mubr.bf16.mxu0 0
  %767 = vmatmul.mubr.bf16.gmra.mxu0 %v423
  %v768 = vpop.f32.mrf.mxu0
  %v769 = vadd.f32 0.0, %v768
  %v770 = vpop.f32.mrf.mxu0
  %v771 = vpop.f32.mrf.mxu0
  %v772 = vadd.f32 0.0, %v771
  %v773 = vpop.f32.mrf.mxu0
  %774 = vmatprep.mubr.bf16.mxu0 0
  %775 = vmatmul.mubr.bf16.gmra.mxu0 %v426
  %v776 = vpop.f32.mrf.mxu0
  %v777 = vadd.f32 0.0, %v776
  %v778 = vpop.f32.mrf.mxu0
  %v779 = vpop.f32.mrf.mxu0
  %v780 = vadd.f32 0.0, %v779
  %v781 = vpop.f32.mrf.mxu0
  %782 = vmatprep.mubr.bf16.mxu0 0
  %783 = vmatmul.mubr.bf16.gmra.mxu0 %v429
  %v784 = vpop.f32.mrf.mxu0
  %v785 = vadd.f32 0.0, %v784
  %v786 = vpop.f32.mrf.mxu0
  %v787 = vpop.f32.mrf.mxu0
  %v788 = vadd.f32 0.0, %v787
  %v789 = vpop.f32.mrf.mxu0
  %790 = vdwg.mxu0
  %v791 = vmax.f32 %v473, %v553
  %v792 = vmax.f32 %v476, %v556
  %v793 = vmax.f32 %v481, %v561
  %v794 = vmax.f32 %v484, %v564
  %v795 = vmax.f32 %v489, %v569
  %v796 = vmax.f32 %v492, %v572
  %v797 = vmax.f32 %v497, %v577
  %v798 = vmax.f32 %v500, %v580
  %v799 = vmax.f32 %v505, %v585
  %v800 = vmax.f32 %v508, %v588
  %v801 = vmax.f32 %v513, %v593
  %v802 = vmax.f32 %v516, %v596
  %v803 = vmax.f32 %v521, %v601
  %v804 = vmax.f32 %v524, %v604
  %v805 = vmax.f32 %v529, %v609
  %v806 = vmax.f32 %v532, %v612
  %v807 = vmax.f32 %v537, %v617
  %v808 = vmax.f32 %v540, %v620
  %v809 = vmax.f32 %v545, %v625
  %v810 = vmax.f32 %v548, %v628
  %v811 = vmax.f32 %v633, %v713
  %v812 = vmax.f32 %v636, %v716
  %v813 = vmax.f32 %v641, %v721
  %v814 = vmax.f32 %v644, %v724
  %v815 = vmax.f32 %v649, %v729
  %v816 = vmax.f32 %v652, %v732
  %v817 = vmax.f32 %v657, %v737
  %v818 = vmax.f32 %v660, %v740
  %v819 = vmax.f32 %v665, %v745
  %v820 = vmax.f32 %v668, %v748
  %v821 = vmax.f32 %v673, %v753
  %v822 = vmax.f32 %v676, %v756
  %v823 = vmax.f32 %v681, %v761
  %v824 = vmax.f32 %v684, %v764
  %v825 = vmax.f32 %v689, %v769
  %v826 = vmax.f32 %v692, %v772
  %v827 = vmax.f32 %v697, %v777
  %v828 = vmax.f32 %v700, %v780
  %v829 = vmax.f32 %v705, %v785
  %v830 = vmax.f32 %v708, %v788
  %v831 = vmax.f32 %v791, %v811
  %v832 = vmax.f32 %v792, %v812
  %v833 = vmax.f32 %v793, %v813
  %v834 = vmax.f32 %v794, %v814
  %v835 = vmax.f32 %v795, %v815
  %v836 = vmax.f32 %v796, %v816
  %v837 = vmax.f32 %v797, %v817
  %v838 = vmax.f32 %v798, %v818
  %v839 = vmax.f32 %v799, %v819
  %v840 = vmax.f32 %v800, %v820
  %v841 = vmax.f32 %v801, %v821
  %v842 = vmax.f32 %v802, %v822
  %v843 = vmax.f32 %v803, %v823
  %v844 = vmax.f32 %v804, %v824
  %v845 = vmax.f32 %v805, %v825
  %v846 = vmax.f32 %v806, %v826
  %v847 = vmax.f32 %v807, %v827
  %v848 = vmax.f32 %v808, %v828
  %v849 = vmax.f32 %v809, %v829
  %v850 = vmax.f32 %v810, %v830
  %v851 = vld [vmem:[%s2] sm:$0x1]
  %v853 = vlaneseq
  %v854 = vshrl.u32 %v853, 7
  %v855 = vsub.s32 0, %v854
  %v856 = vrot.slane %v851, %v855
  %v858 = vadd.f32 %v831, %v856
  %v859 = vadd.f32 %v832, %v856
  %v860 = vadd.f32 %v833, %v856
  %v861 = vadd.f32 %v834, %v856
  %v862 = vadd.f32 %v835, %v856
  %v863 = vadd.f32 %v836, %v856
  %v864 = vadd.f32 %v837, %v856
  %v865 = vadd.f32 %v838, %v856
  %v866 = vadd.f32 %v839, %v856
  %v867 = vadd.f32 %v840, %v856
  %v868 = vadd.f32 %v841, %v856
  %v869 = vadd.f32 %v842, %v856
  %v870 = vadd.f32 %v843, %v856
  %v871 = vadd.f32 %v844, %v856
  %v872 = vadd.f32 %v845, %v856
  %v873 = vadd.f32 %v846, %v856
  %v874 = vadd.f32 %v847, %v856
  %v875 = vadd.f32 %v848, %v856
  %v876 = vadd.f32 %v849, %v856
  %v877 = vadd.f32 %v850, %v856
  %v878 = vmax.f32 %v858, 0.0
  %v879 = vmax.f32 %v859, 0.0
  %v880 = vmax.f32 %v860, 0.0
  %v881 = vmax.f32 %v861, 0.0
  %v882 = vmax.f32 %v862, 0.0
  %v883 = vmax.f32 %v863, 0.0
  %v884 = vmax.f32 %v864, 0.0
  %v885 = vmax.f32 %v865, 0.0
  %v886 = vmax.f32 %v866, 0.0
  %v887 = vmax.f32 %v867, 0.0
  %v888 = vmax.f32 %v868, 0.0
  %v889 = vmax.f32 %v869, 0.0
  %v890 = vmax.f32 %v870, 0.0
  %v891 = vmax.f32 %v871, 0.0
  %v892 = vmax.f32 %v872, 0.0
  %v893 = vmax.f32 %v873, 0.0
  %v894 = vmax.f32 %v874, 0.0
  %v895 = vmax.f32 %v875, 0.0
  %v896 = vmax.f32 %v876, 0.0
  %v897 = vmax.f32 %v877, 0.0
  %v898 = vpack.c.bf16 %v879, %v878
  %v899 = vpack.c.bf16 %v881, %v880
  %v900 = vpack.c.bf16 %v883, %v882
  %v901 = vpack.c.bf16 %v885, %v884
  %v902 = vpack.c.bf16 %v887, %v886
  %v903 = vpack.c.bf16 %v889, %v888
  %v904 = vpack.c.bf16 %v891, %v890
  %v905 = vpack.c.bf16 %v893, %v892
  %v906 = vpack.c.bf16 %v895, %v894
  %v907 = vpack.c.bf16 %v897, %v896
  %v918 = vunpack.c.l.b16 %v898
  %v919 = vunpack.c.h.b16 %v898
  %v920 = vunpack.c.l.b16 %v899
  %v921 = vunpack.c.h.b16 %v899
  %v922 = vunpack.c.l.b16 %v900
  %v923 = vunpack.c.h.b16 %v900
  %v924 = vunpack.c.l.b16 %v901
  %v925 = vunpack.c.h.b16 %v901
  %v926 = vunpack.c.l.b16 %v902
  %v927 = vunpack.c.h.b16 %v902
  %v928 = vunpack.c.l.b16 %v903
  %v929 = vunpack.c.h.b16 %v903
  %v930 = vunpack.c.l.b16 %v904
  %v931 = vunpack.c.h.b16 %v904
  %v932 = vunpack.c.l.b16 %v905
  %v933 = vunpack.c.h.b16 %v905
  %v934 = vunpack.c.l.b16 %v906
  %v935 = vunpack.c.h.b16 %v906
  %v936 = vunpack.c.l.b16 %v907
  %v937 = vunpack.c.h.b16 %v907
  %v938 = vpack.c.b16 %v918, %v918
  %v939 = vpack.c.b16 %v919, %v919
  %v940 = vpack.c.b16 %v920, %v920
  %v941 = vpack.c.b16 %v921, %v921
  %v942 = vpack.c.b16 %v922, %v922
  %v943 = vpack.c.b16 %v923, %v923
  %v944 = vpack.c.b16 %v924, %v924
  %v945 = vpack.c.b16 %v925, %v925
  %v946 = vpack.c.b16 %v926, %v926
  %v947 = vpack.c.b16 %v927, %v927
  %v948 = vpack.c.b16 %v928, %v928
  %v949 = vpack.c.b16 %v929, %v929
  %v950 = vpack.c.b16 %v930, %v930
  %v951 = vpack.c.b16 %v931, %v931
  %v952 = vpack.c.b16 %v932, %v932
  %v953 = vpack.c.b16 %v933, %v933
  %v954 = vpack.c.b16 %v934, %v934
  %v955 = vpack.c.b16 %v935, %v935
  %v956 = vpack.c.b16 %v936, %v936
  %v957 = vpack.c.b16 %v937, %v937
  %vm978 = vcmask 257024
  %979 = vst.msk [vmem:[%s3] sm:$0xf] %vm978, %v938
  %980 = vst.msk [vmem:[%s3 + $0x4] sm:$0xf] %vm978, %v939
  %981 = vst.msk [vmem:[%s3 + $0x8] sm:$0xf] %vm978, %v940
  %982 = vst.msk [vmem:[%s3 + $0xc] sm:$0xf] %vm978, %v941
  %983 = vst.msk [vmem:[%s3 + $0x10] sm:$0xf] %vm978, %v942
  %984 = vst.msk [vmem:[%s3 + $0x14] sm:$0xf] %vm978, %v943
  %985 = vst.msk [vmem:[%s3 + $0x18] sm:$0xf] %vm978, %v944
  %986 = vst.msk [vmem:[%s3 + $0x1c] sm:$0xf] %vm978, %v945
  %987 = vst.msk [vmem:[%s3 + $0x20] sm:$0xf] %vm978, %v946
  %988 = vst.msk [vmem:[%s3 + $0x24] sm:$0xf] %vm978, %v947
  %989 = vst.msk [vmem:[%s3 + $0x28] sm:$0xf] %vm978, %v948
  %990 = vst.msk [vmem:[%s3 + $0x2c] sm:$0xf] %vm978, %v949
  %991 = vst.msk [vmem:[%s3 + $0x30] sm:$0xf] %vm978, %v950
  %992 = vst.msk [vmem:[%s3 + $0x34] sm:$0xf] %vm978, %v951
  %993 = vst.msk [vmem:[%s3 + $0x38] sm:$0xf] %vm978, %v952
  %994 = vst.msk [vmem:[%s3 + $0x3c] sm:$0xf] %vm978, %v953
  %995 = vst.msk [vmem:[%s3 + $0x40] sm:$0xf] %vm978, %v954
  %996 = vst.msk [vmem:[%s3 + $0x44] sm:$0xf] %vm978, %v955
  %997 = vst.msk [vmem:[%s3 + $0x48] sm:$0xf] %vm978, %v956
  %998 = vst.msk [vmem:[%s3 + $0x4c] sm:$0xf] %vm978, %v957
  // Predicated region
  $region14: #{mynet_forward.3} parent=0 // pred_check
    _
  $region15: #{mynet_forward.3} parent=0 // pred_check_branch
    %1000 = sbr.rel (0) target = $region17
  $region16: #{mynet_forward.3} parent=0 // pred_region
    _
  $region17: #{mynet_forward.3} parent=0 // pred_fallthru
    _
  // Predicated region
  $region18: #{mynet_forward.3} parent=0 // pred_check
    _
  $region19: #{mynet_forward.3} parent=0 // pred_check_branch
    %1002 = sbr.rel (0) target = $region21
  $region20: #{mynet_forward.3} parent=0 // pred_region
    _
  $region21: #{mynet_forward.3} parent=0 // pred_fallthru
    _

// kernel: mynet_forward.4
$region0: #{mynet_forward.4}
  #allocation0 [shape = 'u32[]', space=smem, size = 0x4, offset = 0x4, fixed_abs, tag = 'smem constant byte address 0x4 - core index']
  #allocation1 [shape = 'u32[144,128]{1,0:T(1,128)}', space=vmem, size = 0x12000, scoped, tag = 'internal scratch']
  %s0 = inlined_call_operand.vmem [shape: bf16[1,160,800], index: 0, kind: input, shape index: {}]
  %s1 = inlined_call_operand.vmem [shape: bf16[800,64], index: 1, kind: input, shape index: {}]
  %s2 = inlined_call_operand.vmem [shape: f32[1,64], index: 2, kind: input, shape index: {}]
  %s3 = inlined_call_operand.vmem [shape: bf16[1,40,64], index: 3, kind: output, shape index: {}]
  %s4 = sld [smem:[#allocation0]]
  $region22: #{mynet_forward.4} parent=0
    _
  %s6 = ssub.s32 1, %s4
  %s7 = scalar_select 0, %s6, %s4
  // Predicated region
  $region2: #{mynet_forward.4} parent=0 // pred_check
    _
  $region3: #{mynet_forward.4} parent=0 // pred_check_branch
    %9 = sbr.rel (0) target = $region5
  $region4: #{mynet_forward.4} parent=0 // pred_region
    _
  $region5: #{mynet_forward.4} parent=0 // pred_fallthru
    _
  // Predicated region
  $region6: #{mynet_forward.4} parent=0 // pred_check
    _
  $region7: #{mynet_forward.4} parent=0 // pred_check_branch
    %11 = sbr.rel (0) target = $region9
  $region8: #{mynet_forward.4} parent=0 // pred_region
    _
  $region9: #{mynet_forward.4} parent=0 // pred_fallthru
    _
  // Predicated region
  $region10: #{mynet_forward.4} parent=0 // pred_check
    _
  $region11: #{mynet_forward.4} parent=0 // pred_check_branch
    %13 = sbr.rel (0) target = $region13
  $region12: #{mynet_forward.4} parent=0 // pred_region
    _
  $region13: #{mynet_forward.4} parent=0 // pred_fallthru
    _
  %v15 = vld [vmem:[%s0] sm:$0xff]
  %v16 = vld [vmem:[%s0 + $0x8] sm:$0xff]
  %v17 = vld [vmem:[%s0 + $0x10] sm:$0xff]
  %v18 = vld [vmem:[%s0 + $0x18] sm:$0xf]
  %v19 = vld [vmem:[%s0 + $0x1c] sm:$0xff]
  %v20 = vld [vmem:[%s0 + $0x24] sm:$0xff]
  %v21 = vld [vmem:[%s0 + $0x2c] sm:$0xff]
  %v22 = vld [vmem:[%s0 + $0x34] sm:$0xf]
  %v23 = vld [vmem:[%s0 + $0x38] sm:$0xff]
  %v24 = vld [vmem:[%s0 + $0x40] sm:$0xff]
  %v25 = vld [vmem:[%s0 + $0x48] sm:$0xff]
  %v26 = vld [vmem:[%s0 + $0x50] sm:$0xf]
  %v27 = vld [vmem:[%s0 + $0x54] sm:$0xff]
  %v28 = vld [vmem:[%s0 + $0x5c] sm:$0xff]
  %v29 = vld [vmem:[%s0 + $0x64] sm:$0xff]
  %v30 = vld [vmem:[%s0 + $0x6c] sm:$0xf]
  %v31 = vld [vmem:[%s0 + $0x70] sm:$0xff]
  %v32 = vld [vmem:[%s0 + $0x78] sm:$0xff]
  %v33 = vld [vmem:[%s0 + $0x80] sm:$0xff]
  %v34 = vld [vmem:[%s0 + $0x88] sm:$0xf]
  %v35 = vld [vmem:[%s0 + $0x8c] sm:$0xff]
  %v36 = vld [vmem:[%s0 + $0x94] sm:$0xff]
  %v37 = vld [vmem:[%s0 + $0x9c] sm:$0xff]
  %v38 = vld [vmem:[%s0 + $0xa4] sm:$0xf]
  %v39 = vld [vmem:[%s0 + $0xa8] sm:$0xff]
  %v40 = vld [vmem:[%s0 + $0xb0] sm:$0xff]
  %v41 = vld [vmem:[%s0 + $0xb8] sm:$0xff]
  %v42 = vld [vmem:[%s0 + $0xc0] sm:$0xf]
  %v43 = vld [vmem:[%s0 + $0xc4] sm:$0xff]
  %v44 = vld [vmem:[%s0 + $0xcc] sm:$0xff]
  %v45 = vld [vmem:[%s0 + $0xd4] sm:$0xff]
  %v46 = vld [vmem:[%s0 + $0xdc] sm:$0xf]
  %v47 = vld [vmem:[%s0 + $0xe0] sm:$0xff]
  %v48 = vld [vmem:[%s0 + $0xe8] sm:$0xff]
  %v49 = vld [vmem:[%s0 + $0xf0] sm:$0xff]
  %v50 = vld [vmem:[%s0 + $0xf8] sm:$0xf]
  %v51 = vld [vmem:[%s0 + $0xfc] sm:$0xff]
  %v52 = vld [vmem:[%s0 + $0x104] sm:$0xff]
  %v53 = vld [vmem:[%s0 + $0x10c] sm:$0xff]
  %v54 = vld [vmem:[%s0 + $0x114] sm:$0xf]
  %v55 = vld [vmem:[%s0 + $0x118] sm:$0xff]
  %v56 = vld [vmem:[%s0 + $0x120] sm:$0xff]
  %v57 = vld [vmem:[%s0 + $0x128] sm:$0xff]
  %v58 = vld [vmem:[%s0 + $0x130] sm:$0xf]
  %v59 = vld [vmem:[%s0 + $0x134] sm:$0xff]
  %v60 = vld [vmem:[%s0 + $0x13c] sm:$0xff]
  %v61 = vld [vmem:[%s0 + $0x144] sm:$0xff]
  %v62 = vld [vmem:[%s0 + $0x14c] sm:$0xf]
  %v63 = vld [vmem:[%s0 + $0x150] sm:$0xff]
  %v64 = vld [vmem:[%s0 + $0x158] sm:$0xff]
  %v65 = vld [vmem:[%s0 + $0x160] sm:$0xff]
  %v66 = vld [vmem:[%s0 + $0x168] sm:$0xf]
  %v67 = vld [vmem:[%s0 + $0x16c] sm:$0xff]
  %v68 = vld [vmem:[%s0 + $0x174] sm:$0xff]
  %v69 = vld [vmem:[%s0 + $0x17c] sm:$0xff]
  %v70 = vld [vmem:[%s0 + $0x184] sm:$0xf]
  %v71 = vld [vmem:[%s0 + $0x188] sm:$0xff]
  %v72 = vld [vmem:[%s0 + $0x190] sm:$0xff]
  %v73 = vld [vmem:[%s0 + $0x198] sm:$0xff]
  %v74 = vld [vmem:[%s0 + $0x1a0] sm:$0xf]
  %v75 = vld [vmem:[%s0 + $0x1a4] sm:$0xff]
  %v76 = vld [vmem:[%s0 + $0x1ac] sm:$0xff]
  %v77 = vld [vmem:[%s0 + $0x1b4] sm:$0xff]
  %v78 = vld [vmem:[%s0 + $0x1bc] sm:$0xf]
  %v79 = vld [vmem:[%s0 + $0x1c0] sm:$0xff]
  %v80 = vld [vmem:[%s0 + $0x1c8] sm:$0xff]
  %v81 = vld [vmem:[%s0 + $0x1d0] sm:$0xff]
  %v82 = vld [vmem:[%s0 + $0x1d8] sm:$0xf]
  %v83 = vld [vmem:[%s0 + $0x1dc] sm:$0xff]
  %v84 = vld [vmem:[%s0 + $0x1e4] sm:$0xff]
  %v85 = vld [vmem:[%s0 + $0x1ec] sm:$0xff]
  %v86 = vld [vmem:[%s0 + $0x1f4] sm:$0xf]
  %v87 = vld [vmem:[%s0 + $0x1f8] sm:$0xff]
  %v88 = vld [vmem:[%s0 + $0x200] sm:$0xff]
  %v89 = vld [vmem:[%s0 + $0x208] sm:$0xff]
  %v90 = vld [vmem:[%s0 + $0x210] sm:$0xf]
  %v91 = vld [vmem:[%s0 + $0x214] sm:$0xff]
  %v92 = vld [vmem:[%s0 + $0x21c] sm:$0xff]
  %v93 = vld [vmem:[%s0 + $0x224] sm:$0xff]
  %v94 = vld [vmem:[%s0 + $0x22c] sm:$0xf]
  %v95 = vld [vmem:[%s1] sm:$0xf]
  %v96 = vld [vmem:[%s1 + $0x4] sm:$0xf]
  %v97 = vld [vmem:[%s1 + $0x8] sm:$0xf]
  %v98 = vld [vmem:[%s1 + $0xc] sm:$0xf]
  %v99 = vld [vmem:[%s1 + $0x10] sm:$0xf]
  %v100 = vld [vmem:[%s1 + $0x14] sm:$0xf]
  %v101 = vld [vmem:[%s1 + $0x18] sm:$0xf]
  %v102 = vld [vmem:[%s1 + $0x1c] sm:$0xf]
  %v103 = vld [vmem:[%s1 + $0x20] sm:$0xf]
  %v104 = vld [vmem:[%s1 + $0x24] sm:$0xf]
  %v105 = vld [vmem:[%s1 + $0x28] sm:$0xf]
  %v106 = vld [vmem:[%s1 + $0x2c] sm:$0xf]
  %v107 = vld [vmem:[%s1 + $0x30] sm:$0xf]
  %v108 = vld [vmem:[%s1 + $0x34] sm:$0xf]
  %v109 = vld [vmem:[%s1 + $0x38] sm:$0xf]
  %v110 = vld [vmem:[%s1 + $0x3c] sm:$0xf]
  %v111 = vld [vmem:[%s1 + $0x40] sm:$0xf]
  %v112 = vld [vmem:[%s1 + $0x44] sm:$0xf]
  %v113 = vld [vmem:[%s1 + $0x48] sm:$0xf]
  %v114 = vld [vmem:[%s1 + $0x4c] sm:$0xf]
  %v115 = vld [vmem:[%s1 + $0x50] sm:$0xf]
  %v116 = vld [vmem:[%s1 + $0x54] sm:$0xf]
  %v117 = vld [vmem:[%s1 + $0x58] sm:$0xf]
  %v118 = vld [vmem:[%s1 + $0x5c] sm:$0xf]
  %v119 = vld [vmem:[%s1 + $0x60] sm:$0xf]
  %v120 = vld [vmem:[%s1 + $0x64] sm:$0xf]
  %v121 = vld [vmem:[%s1 + $0x68] sm:$0xf]
  %v122 = vld [vmem:[%s1 + $0x6c] sm:$0xf]
  %v123 = vld [vmem:[%s1 + $0x70] sm:$0xf]
  %v124 = vld [vmem:[%s1 + $0x74] sm:$0xf]
  %v125 = vld [vmem:[%s1 + $0x78] sm:$0xf]
  %v126 = vld [vmem:[%s1 + $0x7c] sm:$0xf]
  %v127 = vld [vmem:[%s1 + $0x80] sm:$0xf]
  %v128 = vld [vmem:[%s1 + $0x84] sm:$0xf]
  %v129 = vld [vmem:[%s1 + $0x88] sm:$0xf]
  %v130 = vld [vmem:[%s1 + $0x8c] sm:$0xf]
  %v131 = vld [vmem:[%s1 + $0x90] sm:$0xf]
  %v132 = vld [vmem:[%s1 + $0x94] sm:$0xf]
  %v133 = vld [vmem:[%s1 + $0x98] sm:$0xf]
  %v134 = vld [vmem:[%s1 + $0x9c] sm:$0xf]
  %v135 = vld [vmem:[%s1 + $0xa0] sm:$0xf]
  %v136 = vld [vmem:[%s1 + $0xa4] sm:$0xf]
  %v137 = vld [vmem:[%s1 + $0xa8] sm:$0xf]
  %v138 = vld [vmem:[%s1 + $0xac] sm:$0xf]
  %v139 = vld [vmem:[%s1 + $0xb0] sm:$0xf]
  %v140 = vld [vmem:[%s1 + $0xb4] sm:$0xf]
  %v141 = vld [vmem:[%s1 + $0xb8] sm:$0xf]
  %v142 = vld [vmem:[%s1 + $0xbc] sm:$0xf]
  %v143 = vld [vmem:[%s1 + $0xc0] sm:$0xf]
  %v144 = vld [vmem:[%s1 + $0xc4] sm:$0xf]
  %v145 = vld [vmem:[%s1 + $0xc8] sm:$0xf]
  %v146 = vld [vmem:[%s1 + $0xcc] sm:$0xf]
  %v147 = vld [vmem:[%s1 + $0xd0] sm:$0xf]
  %v148 = vld [vmem:[%s1 + $0xd4] sm:$0xf]
  %v149 = vld [vmem:[%s1 + $0xd8] sm:$0xf]
  %v150 = vld [vmem:[%s1 + $0xdc] sm:$0xf]
  %v151 = vld [vmem:[%s1 + $0xe0] sm:$0xf]
  %v152 = vld [vmem:[%s1 + $0xe4] sm:$0xf]
  %v153 = vld [vmem:[%s1 + $0xe8] sm:$0xf]
  %v154 = vld [vmem:[%s1 + $0xec] sm:$0xf]
  %v155 = vld [vmem:[%s1 + $0xf0] sm:$0xf]
  %v156 = vld [vmem:[%s1 + $0xf4] sm:$0xf]
  %v157 = vld [vmem:[%s1 + $0xf8] sm:$0xf]
  %v158 = vld [vmem:[%s1 + $0xfc] sm:$0xf]
  %v159 = vld [vmem:[%s1 + $0x100] sm:$0xf]
  %v160 = vld [vmem:[%s1 + $0x104] sm:$0xf]
  %v161 = vld [vmem:[%s1 + $0x108] sm:$0xf]
  %v162 = vld [vmem:[%s1 + $0x10c] sm:$0xf]
  %v163 = vld [vmem:[%s1 + $0x110] sm:$0xf]
  %v164 = vld [vmem:[%s1 + $0x114] sm:$0xf]
  %v165 = vld [vmem:[%s1 + $0x118] sm:$0xf]
  %v166 = vld [vmem:[%s1 + $0x11c] sm:$0xf]
  %v167 = vld [vmem:[%s1 + $0x120] sm:$0xf]
  %v168 = vld [vmem:[%s1 + $0x124] sm:$0xf]
  %v169 = vld [vmem:[%s1 + $0x128] sm:$0xf]
  %v170 = vld [vmem:[%s1 + $0x12c] sm:$0xf]
  %v171 = vld [vmem:[%s1 + $0x130] sm:$0xf]
  %v172 = vld [vmem:[%s1 + $0x134] sm:$0xf]
  %v173 = vld [vmem:[%s1 + $0x138] sm:$0xf]
  %v174 = vld [vmem:[%s1 + $0x13c] sm:$0xf]
  %v175 = vld [vmem:[%s1 + $0x140] sm:$0xf]
  %v176 = vld [vmem:[%s1 + $0x144] sm:$0xf]
  %v177 = vld [vmem:[%s1 + $0x148] sm:$0xf]
  %v178 = vld [vmem:[%s1 + $0x14c] sm:$0xf]
  %v179 = vld [vmem:[%s1 + $0x150] sm:$0xf]
  %v180 = vld [vmem:[%s1 + $0x154] sm:$0xf]
  %v181 = vld [vmem:[%s1 + $0x158] sm:$0xf]
  %v182 = vld [vmem:[%s1 + $0x15c] sm:$0xf]
  %v183 = vld [vmem:[%s1 + $0x160] sm:$0xf]
  %v184 = vld [vmem:[%s1 + $0x164] sm:$0xf]
  %v185 = vld [vmem:[%s1 + $0x168] sm:$0xf]
  %v186 = vld [vmem:[%s1 + $0x16c] sm:$0xf]
  %v187 = vld [vmem:[%s1 + $0x170] sm:$0xf]
  %v188 = vld [vmem:[%s1 + $0x174] sm:$0xf]
  %v189 = vld [vmem:[%s1 + $0x178] sm:$0xf]
  %v190 = vld [vmem:[%s1 + $0x17c] sm:$0xf]
  %v191 = vld [vmem:[%s1 + $0x180] sm:$0xf]
  %v192 = vld [vmem:[%s1 + $0x184] sm:$0xf]
  %v193 = vld [vmem:[%s1 + $0x188] sm:$0xf]
  %v194 = vld [vmem:[%s1 + $0x18c] sm:$0xf]
  %v275 = vunpack.c.l.b16 %v15
  %v276 = vunpack.c.h.b16 %v15
  %v277 = vunpack.c.l.b16 %v16
  %v278 = vunpack.c.h.b16 %v16
  %v279 = vunpack.c.l.b16 %v17
  %v280 = vunpack.c.h.b16 %v17
  %v281 = vunpack.c.l.b16 %v18
  %v282 = vunpack.c.l.b16 %v19
  %v283 = vunpack.c.h.b16 %v19
  %v284 = vunpack.c.l.b16 %v20
  %v285 = vunpack.c.h.b16 %v20
  %v286 = vunpack.c.l.b16 %v21
  %v287 = vunpack.c.h.b16 %v21
  %v288 = vunpack.c.l.b16 %v22
  %v289 = vunpack.c.l.b16 %v23
  %v290 = vunpack.c.h.b16 %v23
  %v291 = vunpack.c.l.b16 %v24
  %v292 = vunpack.c.h.b16 %v24
  %v293 = vunpack.c.l.b16 %v25
  %v294 = vunpack.c.h.b16 %v25
  %v295 = vunpack.c.l.b16 %v26
  %v296 = vunpack.c.l.b16 %v27
  %v297 = vunpack.c.h.b16 %v27
  %v298 = vunpack.c.l.b16 %v28
  %v299 = vunpack.c.h.b16 %v28
  %v300 = vunpack.c.l.b16 %v29
  %v301 = vunpack.c.h.b16 %v29
  %v302 = vunpack.c.l.b16 %v30
  %v303 = vunpack.c.l.b16 %v31
  %v304 = vunpack.c.h.b16 %v31
  %v305 = vunpack.c.l.b16 %v32
  %v306 = vunpack.c.h.b16 %v32
  %v307 = vunpack.c.l.b16 %v33
  %v308 = vunpack.c.h.b16 %v33
  %v309 = vunpack.c.l.b16 %v34
  %v310 = vunpack.c.l.b16 %v35
  %v311 = vunpack.c.h.b16 %v35
  %v312 = vunpack.c.l.b16 %v36
  %v313 = vunpack.c.h.b16 %v36
  %v314 = vunpack.c.l.b16 %v37
  %v315 = vunpack.c.h.b16 %v37
  %v316 = vunpack.c.l.b16 %v38
  %v317 = vunpack.c.l.b16 %v39
  %v318 = vunpack.c.h.b16 %v39
  %v319 = vunpack.c.l.b16 %v40
  %v320 = vunpack.c.h.b16 %v40
  %v321 = vunpack.c.l.b16 %v41
  %v322 = vunpack.c.h.b16 %v41
  %v323 = vunpack.c.l.b16 %v42
  %v324 = vunpack.c.l.b16 %v43
  %v325 = vunpack.c.h.b16 %v43
  %v326 = vunpack.c.l.b16 %v44
  %v327 = vunpack.c.h.b16 %v44
  %v328 = vunpack.c.l.b16 %v45
  %v329 = vunpack.c.h.b16 %v45
  %v330 = vunpack.c.l.b16 %v46
  %v331 = vunpack.c.l.b16 %v47
  %v332 = vunpack.c.h.b16 %v47
  %v333 = vunpack.c.l.b16 %v48
  %v334 = vunpack.c.h.b16 %v48
  %v335 = vunpack.c.l.b16 %v49
  %v336 = vunpack.c.h.b16 %v49
  %v337 = vunpack.c.l.b16 %v50
  %v338 = vunpack.c.l.b16 %v51
  %v339 = vunpack.c.h.b16 %v51
  %v340 = vunpack.c.l.b16 %v52
  %v341 = vunpack.c.h.b16 %v52
  %v342 = vunpack.c.l.b16 %v53
  %v343 = vunpack.c.h.b16 %v53
  %v344 = vunpack.c.l.b16 %v54
  %v345 = vunpack.c.l.b16 %v55
  %v346 = vunpack.c.h.b16 %v55
  %v347 = vunpack.c.l.b16 %v56
  %v348 = vunpack.c.h.b16 %v56
  %v349 = vunpack.c.l.b16 %v57
  %v350 = vunpack.c.h.b16 %v57
  %v351 = vunpack.c.l.b16 %v58
  %v352 = vunpack.c.l.b16 %v59
  %v353 = vunpack.c.h.b16 %v59
  %v354 = vunpack.c.l.b16 %v60
  %v355 = vunpack.c.h.b16 %v60
  %v356 = vunpack.c.l.b16 %v61
  %v357 = vunpack.c.h.b16 %v61
  %v358 = vunpack.c.l.b16 %v62
  %v359 = vunpack.c.l.b16 %v63
  %v360 = vunpack.c.h.b16 %v63
  %v361 = vunpack.c.l.b16 %v64
  %v362 = vunpack.c.h.b16 %v64
  %v363 = vunpack.c.l.b16 %v65
  %v364 = vunpack.c.h.b16 %v65
  %v365 = vunpack.c.l.b16 %v66
  %v366 = vunpack.c.l.b16 %v67
  %v367 = vunpack.c.h.b16 %v67
  %v368 = vunpack.c.l.b16 %v68
  %v369 = vunpack.c.h.b16 %v68
  %v370 = vunpack.c.l.b16 %v69
  %v371 = vunpack.c.h.b16 %v69
  %v372 = vunpack.c.l.b16 %v70
  %v373 = vunpack.c.l.b16 %v71
  %v374 = vunpack.c.h.b16 %v71
  %v375 = vunpack.c.l.b16 %v72
  %v376 = vunpack.c.h.b16 %v72
  %v377 = vunpack.c.l.b16 %v73
  %v378 = vunpack.c.h.b16 %v73
  %v379 = vunpack.c.l.b16 %v74
  %v380 = vunpack.c.l.b16 %v75
  %v381 = vunpack.c.h.b16 %v75
  %v382 = vunpack.c.l.b16 %v76
  %v383 = vunpack.c.h.b16 %v76
  %v384 = vunpack.c.l.b16 %v77
  %v385 = vunpack.c.h.b16 %v77
  %v386 = vunpack.c.l.b16 %v78
  %v387 = vunpack.c.l.b16 %v79
  %v388 = vunpack.c.h.b16 %v79
  %v389 = vunpack.c.l.b16 %v80
  %v390 = vunpack.c.h.b16 %v80
  %v391 = vunpack.c.l.b16 %v81
  %v392 = vunpack.c.h.b16 %v81
  %v393 = vunpack.c.l.b16 %v82
  %v394 = vunpack.c.l.b16 %v83
  %v395 = vunpack.c.h.b16 %v83
  %v396 = vunpack.c.l.b16 %v84
  %v397 = vunpack.c.h.b16 %v84
  %v398 = vunpack.c.l.b16 %v85
  %v399 = vunpack.c.h.b16 %v85
  %v400 = vunpack.c.l.b16 %v86
  %v401 = vunpack.c.l.b16 %v87
  %v402 = vunpack.c.h.b16 %v87
  %v403 = vunpack.c.l.b16 %v88
  %v404 = vunpack.c.h.b16 %v88
  %v405 = vunpack.c.l.b16 %v89
  %v406 = vunpack.c.h.b16 %v89
  %v407 = vunpack.c.l.b16 %v90
  %v408 = vunpack.c.l.b16 %v91
  %v409 = vunpack.c.h.b16 %v91
  %v410 = vunpack.c.l.b16 %v92
  %v411 = vunpack.c.h.b16 %v92
  %v412 = vunpack.c.l.b16 %v93
  %v413 = vunpack.c.h.b16 %v93
  %v414 = vunpack.c.l.b16 %v94
  %v415 = vpack.c.b16 %v282, %v275
  %v416 = vpack.c.b16 %v283, %v276
  %v417 = vpack.c.b16 %v284, %v277
  %v418 = vpack.c.b16 %v285, %v278
  %v419 = vpack.c.b16 %v286, %v279
  %v420 = vpack.c.b16 %v287, %v280
  %v421 = vpack.c.b16 %v288, %v281
  %v422 = vpack.c.b16 %v296, %v289
  %v423 = vpack.c.b16 %v297, %v290
  %v424 = vpack.c.b16 %v298, %v291
  %v425 = vpack.c.b16 %v299, %v292
  %v426 = vpack.c.b16 %v300, %v293
  %v427 = vpack.c.b16 %v301, %v294
  %v428 = vpack.c.b16 %v302, %v295
  %v429 = vpack.c.b16 %v310, %v303
  %v430 = vpack.c.b16 %v311, %v304
  %v431 = vpack.c.b16 %v312, %v305
  %v432 = vpack.c.b16 %v313, %v306
  %v433 = vpack.c.b16 %v314, %v307
  %v434 = vpack.c.b16 %v315, %v308
  %v435 = vpack.c.b16 %v316, %v309
  %v436 = vpack.c.b16 %v324, %v317
  %v437 = vpack.c.b16 %v325, %v318
  %v438 = vpack.c.b16 %v326, %v319
  %v439 = vpack.c.b16 %v327, %v320
  %v440 = vpack.c.b16 %v328, %v321
  %v441 = vpack.c.b16 %v329, %v322
  %v442 = vpack.c.b16 %v330, %v323
  %v443 = vpack.c.b16 %v338, %v331
  %v444 = vpack.c.b16 %v339, %v332
  %v445 = vpack.c.b16 %v340, %v333
  %v446 = vpack.c.b16 %v341, %v334
  %v447 = vpack.c.b16 %v342, %v335
  %v448 = vpack.c.b16 %v343, %v336
  %v449 = vpack.c.b16 %v344, %v337
  %v450 = vpack.c.b16 %v352, %v345
  %v451 = vpack.c.b16 %v353, %v346
  %v452 = vpack.c.b16 %v354, %v347
  %v453 = vpack.c.b16 %v355, %v348
  %v454 = vpack.c.b16 %v356, %v349
  %v455 = vpack.c.b16 %v357, %v350
  %v456 = vpack.c.b16 %v358, %v351
  %v457 = vpack.c.b16 %v366, %v359
  %v458 = vpack.c.b16 %v367, %v360
  %v459 = vpack.c.b16 %v368, %v361
  %v460 = vpack.c.b16 %v369, %v362
  %v461 = vpack.c.b16 %v370, %v363
  %v462 = vpack.c.b16 %v371, %v364
  %v463 = vpack.c.b16 %v372, %v365
  %v464 = vpack.c.b16 %v380, %v373
  %v465 = vpack.c.b16 %v381, %v374
  %v466 = vpack.c.b16 %v382, %v375
  %v467 = vpack.c.b16 %v383, %v376
  %v468 = vpack.c.b16 %v384, %v377
  %v469 = vpack.c.b16 %v385, %v378
  %v470 = vpack.c.b16 %v386, %v379
  %v471 = vpack.c.b16 %v394, %v387
  %v472 = vpack.c.b16 %v395, %v388
  %v473 = vpack.c.b16 %v396, %v389
  %v474 = vpack.c.b16 %v397, %v390
  %v475 = vpack.c.b16 %v398, %v391
  %v476 = vpack.c.b16 %v399, %v392
  %v477 = vpack.c.b16 %v400, %v393
  %v478 = vpack.c.b16 %v408, %v401
  %v479 = vpack.c.b16 %v409, %v402
  %v480 = vpack.c.b16 %v410, %v403
  %v481 = vpack.c.b16 %v411, %v404
  %v482 = vpack.c.b16 %v412, %v405
  %v483 = vpack.c.b16 %v413, %v406
  %v484 = vpack.c.b16 %v414, %v407
  %v645 = vunpack.c.l.b16 %v95
  %v646 = vunpack.c.l.b16 %v96
  %v647 = vunpack.c.l.b16 %v97
  %v648 = vunpack.c.l.b16 %v98
  %v649 = vunpack.c.l.b16 %v99
  %v650 = vunpack.c.l.b16 %v100
  %v651 = vunpack.c.l.b16 %v101
  %v652 = vunpack.c.l.b16 %v102
  %v653 = vunpack.c.l.b16 %v103
  %v654 = vunpack.c.l.b16 %v104
  %v655 = vunpack.c.l.b16 %v105
  %v656 = vunpack.c.l.b16 %v106
  %v657 = vunpack.c.l.b16 %v107
  %v658 = vunpack.c.l.b16 %v108
  %v659 = vunpack.c.l.b16 %v109
  %v660 = vunpack.c.l.b16 %v110
  %v661 = vunpack.c.l.b16 %v111
  %v662 = vunpack.c.l.b16 %v112
  %v663 = vunpack.c.l.b16 %v113
  %v664 = vunpack.c.l.b16 %v114
  %v665 = vunpack.c.l.b16 %v115
  %v666 = vunpack.c.l.b16 %v116
  %v667 = vunpack.c.l.b16 %v117
  %v668 = vunpack.c.l.b16 %v118
  %v669 = vunpack.c.l.b16 %v119
  %v670 = vunpack.c.l.b16 %v120
  %v671 = vunpack.c.l.b16 %v121
  %v672 = vunpack.c.l.b16 %v122
  %v673 = vunpack.c.l.b16 %v123
  %v674 = vunpack.c.l.b16 %v124
  %v675 = vunpack.c.l.b16 %v125
  %v676 = vunpack.c.l.b16 %v126
  %v677 = vunpack.c.l.b16 %v127
  %v678 = vunpack.c.l.b16 %v128
  %v679 = vunpack.c.l.b16 %v129
  %v680 = vunpack.c.l.b16 %v130
  %v681 = vunpack.c.l.b16 %v131
  %v682 = vunpack.c.l.b16 %v132
  %v683 = vunpack.c.l.b16 %v133
  %v684 = vunpack.c.l.b16 %v134
  %v685 = vunpack.c.l.b16 %v135
  %v686 = vunpack.c.l.b16 %v136
  %v687 = vunpack.c.l.b16 %v137
  %v688 = vunpack.c.l.b16 %v138
  %v689 = vunpack.c.l.b16 %v139
  %v690 = vunpack.c.l.b16 %v140
  %v691 = vunpack.c.l.b16 %v141
  %v692 = vunpack.c.l.b16 %v142
  %v693 = vunpack.c.l.b16 %v143
  %v694 = vunpack.c.l.b16 %v144
  %v695 = vunpack.c.l.b16 %v145
  %v696 = vunpack.c.l.b16 %v146
  %v697 = vunpack.c.l.b16 %v147
  %v698 = vunpack.c.l.b16 %v148
  %v699 = vunpack.c.l.b16 %v149
  %v700 = vunpack.c.l.b16 %v150
  %v701 = vunpack.c.l.b16 %v151
  %v702 = vunpack.c.l.b16 %v152
  %v703 = vunpack.c.l.b16 %v153
  %v704 = vunpack.c.l.b16 %v154
  %v705 = vunpack.c.l.b16 %v155
  %v706 = vunpack.c.l.b16 %v156
  %v707 = vunpack.c.l.b16 %v157
  %v708 = vunpack.c.l.b16 %v158
  %v709 = vunpack.c.l.b16 %v159
  %v710 = vunpack.c.l.b16 %v160
  %v711 = vunpack.c.l.b16 %v161
  %v712 = vunpack.c.l.b16 %v162
  %v713 = vunpack.c.l.b16 %v163
  %v714 = vunpack.c.l.b16 %v164
  %v715 = vunpack.c.l.b16 %v165
  %v716 = vunpack.c.l.b16 %v166
  %v717 = vunpack.c.l.b16 %v167
  %v718 = vunpack.c.l.b16 %v168
  %v719 = vunpack.c.l.b16 %v169
  %v720 = vunpack.c.l.b16 %v170
  %v721 = vunpack.c.l.b16 %v171
  %v722 = vunpack.c.l.b16 %v172
  %v723 = vunpack.c.l.b16 %v173
  %v724 = vunpack.c.l.b16 %v174
  %v725 = vunpack.c.l.b16 %v175
  %v726 = vunpack.c.l.b16 %v176
  %v727 = vunpack.c.l.b16 %v177
  %v728 = vunpack.c.l.b16 %v178
  %v729 = vunpack.c.l.b16 %v179
  %v730 = vunpack.c.l.b16 %v180
  %v731 = vunpack.c.l.b16 %v181
  %v732 = vunpack.c.l.b16 %v182
  %v733 = vunpack.c.l.b16 %v183
  %v734 = vunpack.c.l.b16 %v184
  %v735 = vunpack.c.l.b16 %v185
  %v736 = vunpack.c.l.b16 %v186
  %v737 = vunpack.c.l.b16 %v187
  %v738 = vunpack.c.l.b16 %v188
  %v739 = vunpack.c.l.b16 %v189
  %v740 = vunpack.c.l.b16 %v190
  %v741 = vunpack.c.l.b16 %v191
  %v742 = vunpack.c.l.b16 %v192
  %v743 = vunpack.c.l.b16 %v193
  %v744 = vunpack.c.l.b16 %v194
  %v745 = vpack.c.b16 %v646, %v645
  %v746 = vpack.c.b16 %v648, %v647
  %v747 = vpack.c.b16 %v650, %v649
  %v748 = vpack.c.b16 %v652, %v651
  %v749 = vpack.c.b16 %v654, %v653
  %v750 = vpack.c.b16 %v656, %v655
  %v751 = vpack.c.b16 %v658, %v657
  %v752 = vpack.c.b16 %v660, %v659
  %v753 = vpack.c.b16 %v662, %v661
  %v754 = vpack.c.b16 %v664, %v663
  %v755 = vpack.c.b16 %v666, %v665
  %v756 = vpack.c.b16 %v668, %v667
  %v757 = vpack.c.b16 %v670, %v669
  %v758 = vpack.c.b16 %v672, %v671
  %v759 = vpack.c.b16 %v674, %v673
  %v760 = vpack.c.b16 %v676, %v675
  %v761 = vpack.c.b16 %v678, %v677
  %v762 = vpack.c.b16 %v680, %v679
  %v763 = vpack.c.b16 %v682, %v681
  %v764 = vpack.c.b16 %v684, %v683
  %v765 = vpack.c.b16 %v686, %v685
  %v766 = vpack.c.b16 %v688, %v687
  %v767 = vpack.c.b16 %v690, %v689
  %v768 = vpack.c.b16 %v692, %v691
  %v769 = vpack.c.b16 %v694, %v693
  %v770 = vpack.c.b16 %v696, %v695
  %v771 = vpack.c.b16 %v698, %v697
  %v772 = vpack.c.b16 %v700, %v699
  %v773 = vpack.c.b16 %v702, %v701
  %v774 = vpack.c.b16 %v704, %v703
  %v775 = vpack.c.b16 %v706, %v705
  %v776 = vpack.c.b16 %v708, %v707
  %v777 = vpack.c.b16 %v710, %v709
  %v778 = vpack.c.b16 %v712, %v711
  %v779 = vpack.c.b16 %v714, %v713
  %v780 = vpack.c.b16 %v716, %v715
  %v781 = vpack.c.b16 %v718, %v717
  %v782 = vpack.c.b16 %v720, %v719
  %v783 = vpack.c.b16 %v722, %v721
  %v784 = vpack.c.b16 %v724, %v723
  %v785 = vpack.c.b16 %v726, %v725
  %v786 = vpack.c.b16 %v728, %v727
  %v787 = vpack.c.b16 %v730, %v729
  %v788 = vpack.c.b16 %v732, %v731
  %v789 = vpack.c.b16 %v734, %v733
  %v790 = vpack.c.b16 %v736, %v735
  %v791 = vpack.c.b16 %v738, %v737
  %v792 = vpack.c.b16 %v740, %v739
  %v793 = vpack.c.b16 %v742, %v741
  %v794 = vpack.c.b16 %v744, %v743
  %vm845 = vcmask 261120
  %v847 = vsel %vm845, %v421, 0
  %v850 = vsel %vm845, %v428, 0
  %v853 = vsel %vm845, %v435, 0
  %v856 = vsel %vm845, %v442, 0
  %v859 = vsel %vm845, %v449, 0
  %v862 = vsel %vm845, %v456, 0
  %v865 = vsel %vm845, %v463, 0
  %v868 = vsel %vm845, %v470, 0
  %v871 = vsel %vm845, %v477, 0
  %v874 = vsel %vm845, %v484, 0
  %876 = vmatprep.subr.bf16.mxu0 0
  %877 = vmatpush1.bf16.msra.mxu0 %v752
  %878 = vmatprep.subr.bf16.mxu0 0
  %879 = vmatpush1.bf16.msra.mxu0 %v751
  %880 = vmatprep.subr.bf16.mxu0 0
  %881 = vmatpush1.bf16.msra.mxu0 %v750
  %882 = vmatprep.subr.bf16.mxu0 0
  %883 = vmatpush1.bf16.msra.mxu0 %v749
  %884 = vmatprep.subr.bf16.mxu0 0
  %885 = vmatpush1.bf16.msra.mxu0 %v748
  %886 = vmatprep.subr.bf16.mxu0 0
  %887 = vmatpush1.bf16.msra.mxu0 %v747
  %888 = vmatprep.subr.bf16.mxu0 0
  %889 = vmatpush1.bf16.msra.mxu0 %v746
  %890 = vmatprep.subr.bf16.mxu0 0
  %891 = vmatpush1.bf16.msra.mxu0 %v745
  %892 = vmatprep.subr.bf16.mxu0 0
  %893 = vmatpush2.bf16.msra.mxu0 %v760
  %894 = vmatprep.subr.bf16.mxu0 0
  %895 = vmatpush2.bf16.msra.mxu0 %v759
  %896 = vmatprep.subr.bf16.mxu0 0
  %897 = vmatpush2.bf16.msra.mxu0 %v758
  %898 = vmatprep.subr.bf16.mxu0 0
  %899 = vmatpush2.bf16.msra.mxu0 %v757
  %900 = vmatprep.subr.bf16.mxu0 0
  %901 = vmatpush2.bf16.msra.mxu0 %v756
  %902 = vmatprep.subr.bf16.mxu0 0
  %903 = vmatpush2.bf16.msra.mxu0 %v755
  %904 = vmatprep.subr.bf16.mxu0 0
  %905 = vmatpush2.bf16.msra.mxu0 %v754
  %906 = vmatprep.subr.bf16.mxu0 0
  %907 = vmatpush2.bf16.msra.mxu0 %v753
  %908 = vmatprep.mubr.bf16.mxu0 %v416
  %909 = vmatmul.mubr.bf16.gmra.mxu0 %v415
  %v910 = vpop.f32.mrf.mxu0
  %v911 = vadd.f32 0.0, %v910
  %v912 = vpop.f32.mrf.mxu0
  %v913 = vpop.f32.mrf.mxu0
  %v914 = vadd.f32 0.0, %v913
  %v915 = vpop.f32.mrf.mxu0
  %916 = vmatprep.mubr.bf16.mxu0 %v423
  %917 = vmatmul.mubr.bf16.gmra.mxu0 %v422
  %v918 = vpop.f32.mrf.mxu0
  %v919 = vadd.f32 0.0, %v918
  %v920 = vpop.f32.mrf.mxu0
  %v921 = vpop.f32.mrf.mxu0
  %v922 = vadd.f32 0.0, %v921
  %v923 = vpop.f32.mrf.mxu0
  %924 = vmatprep.mubr.bf16.mxu0 %v430
  %925 = vmatmul.mubr.bf16.gmra.mxu0 %v429
  %v926 = vpop.f32.mrf.mxu0
  %v927 = vadd.f32 0.0, %v926
  %v928 = vpop.f32.mrf.mxu0
  %v929 = vpop.f32.mrf.mxu0
  %v930 = vadd.f32 0.0, %v929
  %v931 = vpop.f32.mrf.mxu0
  %932 = vmatprep.mubr.bf16.mxu0 %v437
  %933 = vmatmul.mubr.bf16.gmra.mxu0 %v436
  %v934 = vpop.f32.mrf.mxu0
  %v935 = vadd.f32 0.0, %v934
  %v936 = vpop.f32.mrf.mxu0
  %v937 = vpop.f32.mrf.mxu0
  %v938 = vadd.f32 0.0, %v937
  %v939 = vpop.f32.mrf.mxu0
  %940 = vmatprep.mubr.bf16.mxu0 %v444
  %941 = vmatmul.mubr.bf16.gmra.mxu0 %v443
  %v942 = vpop.f32.mrf.mxu0
  %v943 = vadd.f32 0.0, %v942
  %v944 = vpop.f32.mrf.mxu0
  %v945 = vpop.f32.mrf.mxu0
  %v946 = vadd.f32 0.0, %v945
  %v947 = vpop.f32.mrf.mxu0
  %948 = vmatprep.mubr.bf16.mxu0 %v451
  %949 = vmatmul.mubr.bf16.gmra.mxu0 %v450
  %v950 = vpop.f32.mrf.mxu0
  %v951 = vadd.f32 0.0, %v950
  %v952 = vpop.f32.mrf.mxu0
  %v953 = vpop.f32.mrf.mxu0
  %v954 = vadd.f32 0.0, %v953
  %v955 = vpop.f32.mrf.mxu0
  %956 = vmatprep.mubr.bf16.mxu0 %v458
  %957 = vmatmul.mubr.bf16.gmra.mxu0 %v457
  %v958 = vpop.f32.mrf.mxu0
  %v959 = vadd.f32 0.0, %v958
  %v960 = vpop.f32.mrf.mxu0
  %v961 = vpop.f32.mrf.mxu0
  %v962 = vadd.f32 0.0, %v961
  %v963 = vpop.f32.mrf.mxu0
  %964 = vmatprep.mubr.bf16.mxu0 %v465
  %965 = vmatmul.mubr.bf16.gmra.mxu0 %v464
  %v966 = vpop.f32.mrf.mxu0
  %v967 = vadd.f32 0.0, %v966
  %v968 = vpop.f32.mrf.mxu0
  %v969 = vpop.f32.mrf.mxu0
  %v970 = vadd.f32 0.0, %v969
  %v971 = vpop.f32.mrf.mxu0
  %972 = vmatprep.mubr.bf16.mxu0 %v472
  %973 = vmatmul.mubr.bf16.gmra.mxu0 %v471
  %v974 = vpop.f32.mrf.mxu0
  %v975 = vadd.f32 0.0, %v974
  %v976 = vpop.f32.mrf.mxu0
  %v977 = vpop.f32.mrf.mxu0
  %v978 = vadd.f32 0.0, %v977
  %v979 = vpop.f32.mrf.mxu0
  %980 = vmatprep.mubr.bf16.mxu0 %v479
  %981 = vmatmul.mubr.bf16.gmra.mxu0 %v478
  %v982 = vpop.f32.mrf.mxu0
  %v983 = vadd.f32 0.0, %v982
  %v984 = vpop.f32.mrf.mxu0
  %v985 = vpop.f32.mrf.mxu0
  %v986 = vadd.f32 0.0, %v985
  %v987 = vpop.f32.mrf.mxu0
  %988 = vdwg.mxu0
  %989 = vmatprep.subr.bf16.mxu0 0
  %990 = vmatpush1.bf16.msra.mxu0 %v768
  %991 = vmatprep.subr.bf16.mxu0 0
  %992 = vmatpush1.bf16.msra.mxu0 %v767
  %993 = vmatprep.subr.bf16.mxu0 0
  %994 = vmatpush1.bf16.msra.mxu0 %v766
  %995 = vmatprep.subr.bf16.mxu0 0
  %996 = vmatpush1.bf16.msra.mxu0 %v765
  %997 = vmatprep.subr.bf16.mxu0 0
  %998 = vmatpush1.bf16.msra.mxu0 %v764
  %999 = vmatprep.subr.bf16.mxu0 0
  %1000 = vmatpush1.bf16.msra.mxu0 %v763
  %1001 = vmatprep.subr.bf16.mxu0 0
  %1002 = vmatpush1.bf16.msra.mxu0 %v762
  %1003 = vmatprep.subr.bf16.mxu0 0
  %1004 = vmatpush1.bf16.msra.mxu0 %v761
  %1005 = vmatprep.subr.bf16.mxu0 0
  %1006 = vmatpush2.bf16.msra.mxu0 %v776
  %1007 = vmatprep.subr.bf16.mxu0 0
  %1008 = vmatpush2.bf16.msra.mxu0 %v775
  %1009 = vmatprep.subr.bf16.mxu0 0
  %1010 = vmatpush2.bf16.msra.mxu0 %v774
  %1011 = vmatprep.subr.bf16.mxu0 0
  %1012 = vmatpush2.bf16.msra.mxu0 %v773
  %1013 = vmatprep.subr.bf16.mxu0 0
  %1014 = vmatpush2.bf16.msra.mxu0 %v772
  %1015 = vmatprep.subr.bf16.mxu0 0
  %1016 = vmatpush2.bf16.msra.mxu0 %v771
  %1017 = vmatprep.subr.bf16.mxu0 0
  %1018 = vmatpush2.bf16.msra.mxu0 %v770
  %1019 = vmatprep.subr.bf16.mxu0 0
  %1020 = vmatpush2.bf16.msra.mxu0 %v769
  %1021 = vmatprep.mubr.bf16.mxu0 %v418
  %1022 = vmatmul.mubr.bf16.gmra.mxu0 %v417
  %v1023 = vpop.f32.mrf.mxu0
  %v1024 = vadd.f32 %v911, %v1023
  %v1025 = vpop.f32.mrf.mxu0
  %v1026 = vpop.f32.mrf.mxu0
  %v1027 = vadd.f32 %v914, %v1026
  %v1028 = vpop.f32.mrf.mxu0
  %1029 = vmatprep.mubr.bf16.mxu0 %v425
  %1030 = vmatmul.mubr.bf16.gmra.mxu0 %v424
  %v1031 = vpop.f32.mrf.mxu0
  %v1032 = vadd.f32 %v919, %v1031
  %v1033 = vpop.f32.mrf.mxu0
  %v1034 = vpop.f32.mrf.mxu0
  %v1035 = vadd.f32 %v922, %v1034
  %v1036 = vpop.f32.mrf.mxu0
  %1037 = vmatprep.mubr.bf16.mxu0 %v432
  %1038 = vmatmul.mubr.bf16.gmra.mxu0 %v431
  %v1039 = vpop.f32.mrf.mxu0
  %v1040 = vadd.f32 %v927, %v1039
  %v1041 = vpop.f32.mrf.mxu0
  %v1042 = vpop.f32.mrf.mxu0
  %v1043 = vadd.f32 %v930, %v1042
  %v1044 = vpop.f32.mrf.mxu0
  %1045 = vmatprep.mubr.bf16.mxu0 %v439
  %1046 = vmatmul.mubr.bf16.gmra.mxu0 %v438
  %v1047 = vpop.f32.mrf.mxu0
  %v1048 = vadd.f32 %v935, %v1047
  %v1049 = vpop.f32.mrf.mxu0
  %v1050 = vpop.f32.mrf.mxu0
  %v1051 = vadd.f32 %v938, %v1050
  %v1052 = vpop.f32.mrf.mxu0
  %1053 = vmatprep.mubr.bf16.mxu0 %v446
  %1054 = vmatmul.mubr.bf16.gmra.mxu0 %v445
  %v1055 = vpop.f32.mrf.mxu0
  %v1056 = vadd.f32 %v943, %v1055
  %v1057 = vpop.f32.mrf.mxu0
  %v1058 = vpop.f32.mrf.mxu0
  %v1059 = vadd.f32 %v946, %v1058
  %v1060 = vpop.f32.mrf.mxu0
  %1061 = vmatprep.mubr.bf16.mxu0 %v453
  %1062 = vmatmul.mubr.bf16.gmra.mxu0 %v452
  %v1063 = vpop.f32.mrf.mxu0
  %v1064 = vadd.f32 %v951, %v1063
  %v1065 = vpop.f32.mrf.mxu0
  %v1066 = vpop.f32.mrf.mxu0
  %v1067 = vadd.f32 %v954, %v1066
  %v1068 = vpop.f32.mrf.mxu0
  %1069 = vmatprep.mubr.bf16.mxu0 %v460
  %1070 = vmatmul.mubr.bf16.gmra.mxu0 %v459
  %v1071 = vpop.f32.mrf.mxu0
  %v1072 = vadd.f32 %v959, %v1071
  %v1073 = vpop.f32.mrf.mxu0
  %v1074 = vpop.f32.mrf.mxu0
  %v1075 = vadd.f32 %v962, %v1074
  %v1076 = vpop.f32.mrf.mxu0
  %1077 = vmatprep.mubr.bf16.mxu0 %v467
  %1078 = vmatmul.mubr.bf16.gmra.mxu0 %v466
  %v1079 = vpop.f32.mrf.mxu0
  %v1080 = vadd.f32 %v967, %v1079
  %v1081 = vpop.f32.mrf.mxu0
  %v1082 = vpop.f32.mrf.mxu0
  %v1083 = vadd.f32 %v970, %v1082
  %v1084 = vpop.f32.mrf.mxu0
  %1085 = vmatprep.mubr.bf16.mxu0 %v474
  %1086 = vmatmul.mubr.bf16.gmra.mxu0 %v473
  %v1087 = vpop.f32.mrf.mxu0
  %v1088 = vadd.f32 %v975, %v1087
  %v1089 = vpop.f32.mrf.mxu0
  %v1090 = vpop.f32.mrf.mxu0
  %v1091 = vadd.f32 %v978, %v1090
  %v1092 = vpop.f32.mrf.mxu0
  %1093 = vmatprep.mubr.bf16.mxu0 %v481
  %1094 = vmatmul.mubr.bf16.gmra.mxu0 %v480
  %v1095 = vpop.f32.mrf.mxu0
  %v1096 = vadd.f32 %v983, %v1095
  %v1097 = vpop.f32.mrf.mxu0
  %v1098 = vpop.f32.mrf.mxu0
  %v1099 = vadd.f32 %v986, %v1098
  %v1100 = vpop.f32.mrf.mxu0
  %1101 = vdwg.mxu0
  %1102 = vmatprep.subr.bf16.mxu0 0
  %1103 = vmatpush1.bf16.msra.mxu0 %v784
  %1104 = vmatprep.subr.bf16.mxu0 0
  %1105 = vmatpush1.bf16.msra.mxu0 %v783
  %1106 = vmatprep.subr.bf16.mxu0 0
  %1107 = vmatpush1.bf16.msra.mxu0 %v782
  %1108 = vmatprep.subr.bf16.mxu0 0
  %1109 = vmatpush1.bf16.msra.mxu0 %v781
  %1110 = vmatprep.subr.bf16.mxu0 0
  %1111 = vmatpush1.bf16.msra.mxu0 %v780
  %1112 = vmatprep.subr.bf16.mxu0 0
  %1113 = vmatpush1.bf16.msra.mxu0 %v779
  %1114 = vmatprep.subr.bf16.mxu0 0
  %1115 = vmatpush1.bf16.msra.mxu0 %v778
  %1116 = vmatprep.subr.bf16.mxu0 0
  %1117 = vmatpush1.bf16.msra.mxu0 %v777
  %1118 = vmatprep.subr.bf16.mxu0 0
  %1119 = vmatpush2.bf16.msra.mxu0 %v792
  %1120 = vmatprep.subr.bf16.mxu0 0
  %1121 = vmatpush2.bf16.msra.mxu0 %v791
  %1122 = vmatprep.subr.bf16.mxu0 0
  %1123 = vmatpush2.bf16.msra.mxu0 %v790
  %1124 = vmatprep.subr.bf16.mxu0 0
  %1125 = vmatpush2.bf16.msra.mxu0 %v789
  %1126 = vmatprep.subr.bf16.mxu0 0
  %1127 = vmatpush2.bf16.msra.mxu0 %v788
  %1128 = vmatprep.subr.bf16.mxu0 0
  %1129 = vmatpush2.bf16.msra.mxu0 %v787
  %1130 = vmatprep.subr.bf16.mxu0 0
  %1131 = vmatpush2.bf16.msra.mxu0 %v786
  %1132 = vmatprep.subr.bf16.mxu0 0
  %1133 = vmatpush2.bf16.msra.mxu0 %v785
  %1134 = vmatprep.mubr.bf16.mxu0 %v420
  %1135 = vmatmul.mubr.bf16.gmra.mxu0 %v419
  %v1136 = vpop.f32.mrf.mxu0
  %v1137 = vadd.f32 %v1024, %v1136
  %v1138 = vpop.f32.mrf.mxu0
  %v1139 = vpop.f32.mrf.mxu0
  %v1140 = vadd.f32 %v1027, %v1139
  %v1141 = vpop.f32.mrf.mxu0
  %1142 = vmatprep.mubr.bf16.mxu0 %v427
  %1143 = vmatmul.mubr.bf16.gmra.mxu0 %v426
  %v1144 = vpop.f32.mrf.mxu0
  %v1145 = vadd.f32 %v1032, %v1144
  %v1146 = vpop.f32.mrf.mxu0
  %v1147 = vpop.f32.mrf.mxu0
  %v1148 = vadd.f32 %v1035, %v1147
  %v1149 = vpop.f32.mrf.mxu0
  %1150 = vmatprep.mubr.bf16.mxu0 %v434
  %1151 = vmatmul.mubr.bf16.gmra.mxu0 %v433
  %v1152 = vpop.f32.mrf.mxu0
  %v1153 = vadd.f32 %v1040, %v1152
  %v1154 = vpop.f32.mrf.mxu0
  %v1155 = vpop.f32.mrf.mxu0
  %v1156 = vadd.f32 %v1043, %v1155
  %v1157 = vpop.f32.mrf.mxu0
  %1158 = vmatprep.mubr.bf16.mxu0 %v441
  %1159 = vmatmul.mubr.bf16.gmra.mxu0 %v440
  %v1160 = vpop.f32.mrf.mxu0
  %v1161 = vadd.f32 %v1048, %v1160
  %v1162 = vpop.f32.mrf.mxu0
  %v1163 = vpop.f32.mrf.mxu0
  %v1164 = vadd.f32 %v1051, %v1163
  %v1165 = vpop.f32.mrf.mxu0
  %1166 = vmatprep.mubr.bf16.mxu0 %v448
  %1167 = vmatmul.mubr.bf16.gmra.mxu0 %v447
  %v1168 = vpop.f32.mrf.mxu0
  %v1169 = vadd.f32 %v1056, %v1168
  %v1170 = vpop.f32.mrf.mxu0
  %v1171 = vpop.f32.mrf.mxu0
  %v1172 = vadd.f32 %v1059, %v1171
  %v1173 = vpop.f32.mrf.mxu0
  %1174 = vmatprep.mubr.bf16.mxu0 %v455
  %1175 = vmatmul.mubr.bf16.gmra.mxu0 %v454
  %v1176 = vpop.f32.mrf.mxu0
  %v1177 = vadd.f32 %v1064, %v1176
  %v1178 = vpop.f32.mrf.mxu0
  %v1179 = vpop.f32.mrf.mxu0
  %v1180 = vadd.f32 %v1067, %v1179
  %v1181 = vpop.f32.mrf.mxu0
  %1182 = vmatprep.mubr.bf16.mxu0 %v462
  %1183 = vmatmul.mubr.bf16.gmra.mxu0 %v461
  %v1184 = vpop.f32.mrf.mxu0
  %v1185 = vadd.f32 %v1072, %v1184
  %v1186 = vpop.f32.mrf.mxu0
  %v1187 = vpop.f32.mrf.mxu0
  %v1188 = vadd.f32 %v1075, %v1187
  %v1189 = vpop.f32.mrf.mxu0
  %1190 = vmatprep.mubr.bf16.mxu0 %v469
  %1191 = vmatmul.mubr.bf16.gmra.mxu0 %v468
  %v1192 = vpop.f32.mrf.mxu0
  %v1193 = vadd.f32 %v1080, %v1192
  %v1194 = vpop.f32.mrf.mxu0
  %v1195 = vpop.f32.mrf.mxu0
  %v1196 = vadd.f32 %v1083, %v1195
  %v1197 = vpop.f32.mrf.mxu0
  %1198 = vmatprep.mubr.bf16.mxu0 %v476
  %1199 = vmatmul.mubr.bf16.gmra.mxu0 %v475
  %v1200 = vpop.f32.mrf.mxu0
  %v1201 = vadd.f32 %v1088, %v1200
  %v1202 = vpop.f32.mrf.mxu0
  %v1203 = vpop.f32.mrf.mxu0
  %v1204 = vadd.f32 %v1091, %v1203
  %v1205 = vpop.f32.mrf.mxu0
  %1206 = vmatprep.mubr.bf16.mxu0 %v483
  %1207 = vmatmul.mubr.bf16.gmra.mxu0 %v482
  %v1208 = vpop.f32.mrf.mxu0
  %v1209 = vadd.f32 %v1096, %v1208
  %v1210 = vpop.f32.mrf.mxu0
  %v1211 = vpop.f32.mrf.mxu0
  %v1212 = vadd.f32 %v1099, %v1211
  %v1213 = vpop.f32.mrf.mxu0
  %1214 = vdwg.mxu0
  %1215 = vmatprep.subr.bf16.mxu0 0
  %1216 = vmatpush1.bf16.msra.mxu0 0
  %1217 = vmatprep.subr.bf16.mxu0 0
  %1218 = vmatpush1.bf16.msra.mxu0 0
  %1219 = vmatprep.subr.bf16.mxu0 0
  %1220 = vmatpush1.bf16.msra.mxu0 0
  %1221 = vmatprep.subr.bf16.mxu0 0
  %1222 = vmatpush1.bf16.msra.mxu0 0
  %1223 = vmatprep.subr.bf16.mxu0 0
  %1224 = vmatpush1.bf16.msra.mxu0 0
  %1225 = vmatprep.subr.bf16.mxu0 0
  %1226 = vmatpush1.bf16.msra.mxu0 0
  %1227 = vmatprep.subr.bf16.mxu0 0
  %1228 = vmatpush1.bf16.msra.mxu0 %v794
  %1229 = vmatprep.subr.bf16.mxu0 0
  %1230 = vmatpush1.bf16.msra.mxu0 %v793
  %1231 = vmatprep.subr.bf16.mxu0 0
  %1232 = vmatpush2.bf16.msra.mxu0 0
  %1233 = vmatprep.subr.bf16.mxu0 0
  %1234 = vmatpush2.bf16.msra.mxu0 0
  %1235 = vmatprep.subr.bf16.mxu0 0
  %1236 = vmatpush2.bf16.msra.mxu0 0
  %1237 = vmatprep.subr.bf16.mxu0 0
  %1238 = vmatpush2.bf16.msra.mxu0 0
  %1239 = vmatprep.subr.bf16.mxu0 0
  %1240 = vmatpush2.bf16.msra.mxu0 0
  %1241 = vmatprep.subr.bf16.mxu0 0
  %1242 = vmatpush2.bf16.msra.mxu0 0
  %1243 = vmatprep.subr.bf16.mxu0 0
  %1244 = vmatpush2.bf16.msra.mxu0 0
  %1245 = vmatprep.subr.bf16.mxu0 0
  %1246 = vmatpush2.bf16.msra.mxu0 0
  %1247 = vmatprep.mubr.bf16.mxu0 0
  %1248 = vmatmul.mubr.bf16.gmra.mxu0 %v847
  %v1249 = vpop.f32.mrf.mxu0
  %v1250 = vadd.f32 %v1137, %v1249
  %v1251 = vpop.f32.mrf.mxu0
  %v1252 = vpop.f32.mrf.mxu0
  %v1253 = vadd.f32 %v1140, %v1252
  %v1254 = vpop.f32.mrf.mxu0
  %1255 = vmatprep.mubr.bf16.mxu0 0
  %1256 = vmatmul.mubr.bf16.gmra.mxu0 %v850
  %v1257 = vpop.f32.mrf.mxu0
  %v1258 = vadd.f32 %v1145, %v1257
  %v1259 = vpop.f32.mrf.mxu0
  %v1260 = vpop.f32.mrf.mxu0
  %v1261 = vadd.f32 %v1148, %v1260
  %v1262 = vpop.f32.mrf.mxu0
  %1263 = vmatprep.mubr.bf16.mxu0 0
  %1264 = vmatmul.mubr.bf16.gmra.mxu0 %v853
  %v1265 = vpop.f32.mrf.mxu0
  %v1266 = vadd.f32 %v1153, %v1265
  %v1267 = vpop.f32.mrf.mxu0
  %v1268 = vpop.f32.mrf.mxu0
  %v1269 = vadd.f32 %v1156, %v1268
  %v1270 = vpop.f32.mrf.mxu0
  %1271 = vmatprep.mubr.bf16.mxu0 0
  %1272 = vmatmul.mubr.bf16.gmra.mxu0 %v856
  %v1273 = vpop.f32.mrf.mxu0
  %v1274 = vadd.f32 %v1161, %v1273
  %v1275 = vpop.f32.mrf.mxu0
  %v1276 = vpop.f32.mrf.mxu0
  %v1277 = vadd.f32 %v1164, %v1276
  %v1278 = vpop.f32.mrf.mxu0
  %1279 = vmatprep.mubr.bf16.mxu0 0
  %1280 = vmatmul.mubr.bf16.gmra.mxu0 %v859
  %v1281 = vpop.f32.mrf.mxu0
  %v1282 = vadd.f32 %v1169, %v1281
  %v1283 = vpop.f32.mrf.mxu0
  %v1284 = vpop.f32.mrf.mxu0
  %v1285 = vadd.f32 %v1172, %v1284
  %v1286 = vpop.f32.mrf.mxu0
  %1287 = vmatprep.mubr.bf16.mxu0 0
  %1288 = vmatmul.mubr.bf16.gmra.mxu0 %v862
  %v1289 = vpop.f32.mrf.mxu0
  %v1290 = vadd.f32 %v1177, %v1289
  %v1291 = vpop.f32.mrf.mxu0
  %v1292 = vpop.f32.mrf.mxu0
  %v1293 = vadd.f32 %v1180, %v1292
  %v1294 = vpop.f32.mrf.mxu0
  %1295 = vmatprep.mubr.bf16.mxu0 0
  %1296 = vmatmul.mubr.bf16.gmra.mxu0 %v865
  %v1297 = vpop.f32.mrf.mxu0
  %v1298 = vadd.f32 %v1185, %v1297
  %v1299 = vpop.f32.mrf.mxu0
  %v1300 = vpop.f32.mrf.mxu0
  %v1301 = vadd.f32 %v1188, %v1300
  %v1302 = vpop.f32.mrf.mxu0
  %1303 = vmatprep.mubr.bf16.mxu0 0
  %1304 = vmatmul.mubr.bf16.gmra.mxu0 %v868
  %v1305 = vpop.f32.mrf.mxu0
  %v1306 = vadd.f32 %v1193, %v1305
  %v1307 = vpop.f32.mrf.mxu0
  %v1308 = vpop.f32.mrf.mxu0
  %v1309 = vadd.f32 %v1196, %v1308
  %v1310 = vpop.f32.mrf.mxu0
  %1311 = vmatprep.mubr.bf16.mxu0 0
  %1312 = vmatmul.mubr.bf16.gmra.mxu0 %v871
  %v1313 = vpop.f32.mrf.mxu0
  %v1314 = vadd.f32 %v1201, %v1313
  %v1315 = vpop.f32.mrf.mxu0
  %v1316 = vpop.f32.mrf.mxu0
  %v1317 = vadd.f32 %v1204, %v1316
  %v1318 = vpop.f32.mrf.mxu0
  %1319 = vmatprep.mubr.bf16.mxu0 0
  %1320 = vmatmul.mubr.bf16.gmra.mxu0 %v874
  %v1321 = vpop.f32.mrf.mxu0
  %v1322 = vadd.f32 %v1209, %v1321
  %v1323 = vpop.f32.mrf.mxu0
  %v1324 = vpop.f32.mrf.mxu0
  %v1325 = vadd.f32 %v1212, %v1324
  %v1326 = vpop.f32.mrf.mxu0
  %1327 = vdwg.mxu0
  %v1328 = vmax.f32 %v1250, %v1269
  %v1329 = vmax.f32 %v1253, %v1274
  %v1330 = vmax.f32 %v1258, %v1277
  %v1331 = vmax.f32 %v1261, %v1282
  %v1332 = vmax.f32 %v1266, %v1285
  %v1333 = vmax.f32 %v1290, %v1309
  %v1334 = vmax.f32 %v1293, %v1314
  %v1335 = vmax.f32 %v1298, %v1317
  %v1336 = vmax.f32 %v1301, %v1322
  %v1337 = vmax.f32 %v1306, %v1325
  %v1338 = vmax.f32 %v1328, %v1333
  %v1339 = vmax.f32 %v1329, %v1334
  %v1340 = vmax.f32 %v1330, %v1335
  %v1341 = vmax.f32 %v1331, %v1336
  %v1342 = vmax.f32 %v1332, %v1337
  %v1343 = vld [vmem:[%s2] sm:$0x1]
  %v1345 = vlaneseq
  %v1346 = vshrl.u32 %v1345, 7
  %v1347 = vsub.s32 0, %v1346
  %v1348 = vrot.slane %v1343, %v1347
  %v1350 = vadd.f32 %v1338, %v1348
  %v1351 = vadd.f32 %v1339, %v1348
  %v1352 = vadd.f32 %v1340, %v1348
  %v1353 = vadd.f32 %v1341, %v1348
  %v1354 = vadd.f32 %v1342, %v1348
  %v1355 = vmax.f32 %v1350, 0.0
  %v1356 = vmax.f32 %v1351, 0.0
  %v1357 = vmax.f32 %v1352, 0.0
  %v1358 = vmax.f32 %v1353, 0.0
  %v1359 = vmax.f32 %v1354, 0.0
  %v1360 = vpack.c.bf16 %v1356, %v1355
  %v1361 = vpack.c.bf16 %v1358, %v1357
  %v1362 = vpack.c.bf16 %v1359, %v1359
  %v1366 = vunpack.c.l.b16 %v1360
  %v1367 = vunpack.c.h.b16 %v1360
  %v1368 = vunpack.c.l.b16 %v1361
  %v1369 = vunpack.c.h.b16 %v1361
  %v1370 = vunpack.c.l.b16 %v1362
  %v1371 = vpack.c.b16 %v1366, %v1366
  %v1372 = vpack.c.b16 %v1367, %v1367
  %v1373 = vpack.c.b16 %v1368, %v1368
  %v1374 = vpack.c.b16 %v1369, %v1369
  %v1375 = vpack.c.b16 %v1370, %v1370
  %vm1381 = vcmask 519168
  %1382 = vst.msk [vmem:[%s3] sm:$0xf] %vm1381, %v1371
  %1383 = vst.msk [vmem:[%s3 + $0x4] sm:$0xf] %vm1381, %v1372
  %1384 = vst.msk [vmem:[%s3 + $0x8] sm:$0xf] %vm1381, %v1373
  %1385 = vst.msk [vmem:[%s3 + $0xc] sm:$0xf] %vm1381, %v1374
  %1386 = vst.msk [vmem:[%s3 + $0x10] sm:$0xf] %vm1381, %v1375
  // Predicated region
  $region14: #{mynet_forward.4} parent=0 // pred_check
    _
  $region15: #{mynet_forward.4} parent=0 // pred_check_branch
    %1388 = sbr.rel (0) target = $region17
  $region16: #{mynet_forward.4} parent=0 // pred_region
    _
  $region17: #{mynet_forward.4} parent=0 // pred_fallthru
    _
  // Predicated region
  $region18: #{mynet_forward.4} parent=0 // pred_check
    _
  $region19: #{mynet_forward.4} parent=0 // pred_check_branch
    %1390 = sbr.rel (0) target = $region21
  $region20: #{mynet_forward.4} parent=0 // pred_region
    _
  $region21: #{mynet_forward.4} parent=0 // pred_fallthru
    _

// kernel: mynet_forward.5
$region0: #{mynet_forward.5}
  #allocation0 [shape = 'u32[]', space=smem, size = 0x4, offset = 0x4, fixed_abs, tag = 'smem constant byte address 0x4 - core index']
  #allocation1 [shape = 'u32[144,128]{1,0:T(1,128)}', space=vmem, size = 0x12000, scoped, tag = 'internal scratch']
  %s0 = inlined_call_operand.vmem [shape: bf16[1,160,576], index: 0, kind: input, shape index: {}]
  %s1 = inlined_call_operand.vmem [shape: bf16[576,64], index: 1, kind: input, shape index: {}]
  %s2 = inlined_call_operand.vmem [shape: f32[1,64], index: 2, kind: input, shape index: {}]
  %s3 = inlined_call_operand.vmem [shape: bf16[320,128], index: 3, kind: input, shape index: {}]
  %s4 = inlined_call_operand.vmem [shape: f32[1,128], index: 4, kind: input, shape index: {}]
  %s5 = inlined_call_operand.vmem [shape: bf16[128,128], index: 5, kind: input, shape index: {}]
  %s6 = inlined_call_operand.vmem [shape: f32[1,128], index: 6, kind: input, shape index: {}]
  %s7 = inlined_call_operand.vmem [shape: bf16[128,128], index: 7, kind: input, shape index: {}]
  %s8 = inlined_call_operand.vmem [shape: f32[1,128], index: 8, kind: input, shape index: {}]
  %s9 = inlined_call_operand.vmem [shape: bf16[128,48], index: 9, kind: input, shape index: {}]
  %s10 = inlined_call_operand.vmem [shape: f32[1,48], index: 10, kind: input, shape index: {}]
  %s11 = inlined_call_operand.vmem [shape: f32[8,48], index: 11, kind: output, shape index: {}]
  %s12 = sld [smem:[#allocation0]]
  $region54: #{mynet_forward.5} parent=0
    _
  %s14 = ssub.s32 1, %s12
  %s15 = scalar_select 0, %s14, %s12
  // Predicated region
  $region2: #{mynet_forward.5} parent=0 // pred_check
    _
  $region3: #{mynet_forward.5} parent=0 // pred_check_branch
    %17 = sbr.rel (0) target = $region5
  $region4: #{mynet_forward.5} parent=0 // pred_region
    _
  $region5: #{mynet_forward.5} parent=0 // pred_fallthru
    _
  // Predicated region
  $region6: #{mynet_forward.5} parent=0 // pred_check
    _
  $region7: #{mynet_forward.5} parent=0 // pred_check_branch
    %19 = sbr.rel (0) target = $region9
  $region8: #{mynet_forward.5} parent=0 // pred_region
    _
  $region9: #{mynet_forward.5} parent=0 // pred_fallthru
    _
  // Predicated region
  $region10: #{mynet_forward.5} parent=0 // pred_check
    _
  $region11: #{mynet_forward.5} parent=0 // pred_check_branch
    %21 = sbr.rel (0) target = $region13
  $region12: #{mynet_forward.5} parent=0 // pred_region
    _
  $region13: #{mynet_forward.5} parent=0 // pred_fallthru
    _
  // Predicated region
  $region14: #{mynet_forward.5} parent=0 // pred_check
    _
  $region15: #{mynet_forward.5} parent=0 // pred_check_branch
    %23 = sbr.rel (0) target = $region17
  $region16: #{mynet_forward.5} parent=0 // pred_region
    _
  $region17: #{mynet_forward.5} parent=0 // pred_fallthru
    _
  // Predicated region
  $region18: #{mynet_forward.5} parent=0 // pred_check
    _
  $region19: #{mynet_forward.5} parent=0 // pred_check_branch
    %25 = sbr.rel (0) target = $region21
  $region20: #{mynet_forward.5} parent=0 // pred_region
    _
  $region21: #{mynet_forward.5} parent=0 // pred_fallthru
    _
  // Predicated region
  $region22: #{mynet_forward.5} parent=0 // pred_check
    _
  $region23: #{mynet_forward.5} parent=0 // pred_check_branch
    %27 = sbr.rel (0) target = $region25
  $region24: #{mynet_forward.5} parent=0 // pred_region
    _
  $region25: #{mynet_forward.5} parent=0 // pred_fallthru
    _
  // Predicated region
  $region26: #{mynet_forward.5} parent=0 // pred_check
    _
  $region27: #{mynet_forward.5} parent=0 // pred_check_branch
    %29 = sbr.rel (0) target = $region29
  $region28: #{mynet_forward.5} parent=0 // pred_region
    _
  $region29: #{mynet_forward.5} parent=0 // pred_fallthru
    _
  // Predicated region
  $region30: #{mynet_forward.5} parent=0 // pred_check
    _
  $region31: #{mynet_forward.5} parent=0 // pred_check_branch
    %31 = sbr.rel (0) target = $region33
  $region32: #{mynet_forward.5} parent=0 // pred_region
    _
  $region33: #{mynet_forward.5} parent=0 // pred_fallthru
    _
  // Predicated region
  $region34: #{mynet_forward.5} parent=0 // pred_check
    _
  $region35: #{mynet_forward.5} parent=0 // pred_check_branch
    %33 = sbr.rel (0) target = $region37
  $region36: #{mynet_forward.5} parent=0 // pred_region
    _
  $region37: #{mynet_forward.5} parent=0 // pred_fallthru
    _
  // Predicated region
  $region38: #{mynet_forward.5} parent=0 // pred_check
    _
  $region39: #{mynet_forward.5} parent=0 // pred_check_branch
    %35 = sbr.rel (0) target = $region41
  $region40: #{mynet_forward.5} parent=0 // pred_region
    _
  $region41: #{mynet_forward.5} parent=0 // pred_fallthru
    _
  // Predicated region
  $region42: #{mynet_forward.5} parent=0 // pred_check
    _
  $region43: #{mynet_forward.5} parent=0 // pred_check_branch
    %37 = sbr.rel (0) target = $region45
  $region44: #{mynet_forward.5} parent=0 // pred_region
    _
  $region45: #{mynet_forward.5} parent=0 // pred_fallthru
    _
  %v39 = vld [vmem:[%s0] sm:$0xff]
  %v40 = vld [vmem:[%s0 + $0x8] sm:$0xff]
  %v41 = vld [vmem:[%s0 + $0x10] sm:$0xf]
  %v42 = vld [vmem:[%s0 + $0x14] sm:$0xff]
  %v43 = vld [vmem:[%s0 + $0x1c] sm:$0xff]
  %v44 = vld [vmem:[%s0 + $0x24] sm:$0xf]
  %v45 = vld [vmem:[%s0 + $0x28] sm:$0xff]
  %v46 = vld [vmem:[%s0 + $0x30] sm:$0xff]
  %v47 = vld [vmem:[%s0 + $0x38] sm:$0xf]
  %v48 = vld [vmem:[%s0 + $0x3c] sm:$0xff]
  %v49 = vld [vmem:[%s0 + $0x44] sm:$0xff]
  %v50 = vld [vmem:[%s0 + $0x4c] sm:$0xf]
  %v51 = vld [vmem:[%s0 + $0x50] sm:$0xff]
  %v52 = vld [vmem:[%s0 + $0x58] sm:$0xff]
  %v53 = vld [vmem:[%s0 + $0x60] sm:$0xf]
  %v54 = vld [vmem:[%s0 + $0x64] sm:$0xff]
  %v55 = vld [vmem:[%s0 + $0x6c] sm:$0xff]
  %v56 = vld [vmem:[%s0 + $0x74] sm:$0xf]
  %v57 = vld [vmem:[%s0 + $0x78] sm:$0xff]
  %v58 = vld [vmem:[%s0 + $0x80] sm:$0xff]
  %v59 = vld [vmem:[%s0 + $0x88] sm:$0xf]
  %v60 = vld [vmem:[%s0 + $0x8c] sm:$0xff]
  %v61 = vld [vmem:[%s0 + $0x94] sm:$0xff]
  %v62 = vld [vmem:[%s0 + $0x9c] sm:$0xf]
  %v63 = vld [vmem:[%s0 + $0xa0] sm:$0xff]
  %v64 = vld [vmem:[%s0 + $0xa8] sm:$0xff]
  %v65 = vld [vmem:[%s0 + $0xb0] sm:$0xf]
  %v66 = vld [vmem:[%s0 + $0xb4] sm:$0xff]
  %v67 = vld [vmem:[%s0 + $0xbc] sm:$0xff]
  %v68 = vld [vmem:[%s0 + $0xc4] sm:$0xf]
  %v69 = vld [vmem:[%s0 + $0xc8] sm:$0xff]
  %v70 = vld [vmem:[%s0 + $0xd0] sm:$0xff]
  %v71 = vld [vmem:[%s0 + $0xd8] sm:$0xf]
  %v72 = vld [vmem:[%s0 + $0xdc] sm:$0xff]
  %v73 = vld [vmem:[%s0 + $0xe4] sm:$0xff]
  %v74 = vld [vmem:[%s0 + $0xec] sm:$0xf]
  %v75 = vld [vmem:[%s0 + $0xf0] sm:$0xff]
  %v76 = vld [vmem:[%s0 + $0xf8] sm:$0xff]
  %v77 = vld [vmem:[%s0 + $0x100] sm:$0xf]
  %v78 = vld [vmem:[%s0 + $0x104] sm:$0xff]
  %v79 = vld [vmem:[%s0 + $0x10c] sm:$0xff]
  %v80 = vld [vmem:[%s0 + $0x114] sm:$0xf]
  %v81 = vld [vmem:[%s0 + $0x118] sm:$0xff]
  %v82 = vld [vmem:[%s0 + $0x120] sm:$0xff]
  %v83 = vld [vmem:[%s0 + $0x128] sm:$0xf]
  %v84 = vld [vmem:[%s0 + $0x12c] sm:$0xff]
  %v85 = vld [vmem:[%s0 + $0x134] sm:$0xff]
  %v86 = vld [vmem:[%s0 + $0x13c] sm:$0xf]
  %v87 = vld [vmem:[%s0 + $0x140] sm:$0xff]
  %v88 = vld [vmem:[%s0 + $0x148] sm:$0xff]
  %v89 = vld [vmem:[%s0 + $0x150] sm:$0xf]
  %v90 = vld [vmem:[%s0 + $0x154] sm:$0xff]
  %v91 = vld [vmem:[%s0 + $0x15c] sm:$0xff]
  %v92 = vld [vmem:[%s0 + $0x164] sm:$0xf]
  %v93 = vld [vmem:[%s0 + $0x168] sm:$0xff]
  %v94 = vld [vmem:[%s0 + $0x170] sm:$0xff]
  %v95 = vld [vmem:[%s0 + $0x178] sm:$0xf]
  %v96 = vld [vmem:[%s0 + $0x17c] sm:$0xff]
  %v97 = vld [vmem:[%s0 + $0x184] sm:$0xff]
  %v98 = vld [vmem:[%s0 + $0x18c] sm:$0xf]
  %v99 = vld [vmem:[%s1] sm:$0xf]
  %v100 = vld [vmem:[%s1 + $0x4] sm:$0xf]
  %v101 = vld [vmem:[%s1 + $0x8] sm:$0xf]
  %v102 = vld [vmem:[%s1 + $0xc] sm:$0xf]
  %v103 = vld [vmem:[%s1 + $0x10] sm:$0xf]
  %v104 = vld [vmem:[%s1 + $0x14] sm:$0xf]
  %v105 = vld [vmem:[%s1 + $0x18] sm:$0xf]
  %v106 = vld [vmem:[%s1 + $0x1c] sm:$0xf]
  %v107 = vld [vmem:[%s1 + $0x20] sm:$0xf]
  %v108 = vld [vmem:[%s1 + $0x24] sm:$0xf]
  %v109 = vld [vmem:[%s1 + $0x28] sm:$0xf]
  %v110 = vld [vmem:[%s1 + $0x2c] sm:$0xf]
  %v111 = vld [vmem:[%s1 + $0x30] sm:$0xf]
  %v112 = vld [vmem:[%s1 + $0x34] sm:$0xf]
  %v113 = vld [vmem:[%s1 + $0x38] sm:$0xf]
  %v114 = vld [vmem:[%s1 + $0x3c] sm:$0xf]
  %v115 = vld [vmem:[%s1 + $0x40] sm:$0xf]
  %v116 = vld [vmem:[%s1 + $0x44] sm:$0xf]
  %v117 = vld [vmem:[%s1 + $0x48] sm:$0xf]
  %v118 = vld [vmem:[%s1 + $0x4c] sm:$0xf]
  %v119 = vld [vmem:[%s1 + $0x50] sm:$0xf]
  %v120 = vld [vmem:[%s1 + $0x54] sm:$0xf]
  %v121 = vld [vmem:[%s1 + $0x58] sm:$0xf]
  %v122 = vld [vmem:[%s1 + $0x5c] sm:$0xf]
  %v123 = vld [vmem:[%s1 + $0x60] sm:$0xf]
  %v124 = vld [vmem:[%s1 + $0x64] sm:$0xf]
  %v125 = vld [vmem:[%s1 + $0x68] sm:$0xf]
  %v126 = vld [vmem:[%s1 + $0x6c] sm:$0xf]
  %v127 = vld [vmem:[%s1 + $0x70] sm:$0xf]
  %v128 = vld [vmem:[%s1 + $0x74] sm:$0xf]
  %v129 = vld [vmem:[%s1 + $0x78] sm:$0xf]
  %v130 = vld [vmem:[%s1 + $0x7c] sm:$0xf]
  %v131 = vld [vmem:[%s1 + $0x80] sm:$0xf]
  %v132 = vld [vmem:[%s1 + $0x84] sm:$0xf]
  %v133 = vld [vmem:[%s1 + $0x88] sm:$0xf]
  %v134 = vld [vmem:[%s1 + $0x8c] sm:$0xf]
  %v135 = vld [vmem:[%s1 + $0x90] sm:$0xf]
  %v136 = vld [vmem:[%s1 + $0x94] sm:$0xf]
  %v137 = vld [vmem:[%s1 + $0x98] sm:$0xf]
  %v138 = vld [vmem:[%s1 + $0x9c] sm:$0xf]
  %v139 = vld [vmem:[%s1 + $0xa0] sm:$0xf]
  %v140 = vld [vmem:[%s1 + $0xa4] sm:$0xf]
  %v141 = vld [vmem:[%s1 + $0xa8] sm:$0xf]
  %v142 = vld [vmem:[%s1 + $0xac] sm:$0xf]
  %v143 = vld [vmem:[%s1 + $0xb0] sm:$0xf]
  %v144 = vld [vmem:[%s1 + $0xb4] sm:$0xf]
  %v145 = vld [vmem:[%s1 + $0xb8] sm:$0xf]
  %v146 = vld [vmem:[%s1 + $0xbc] sm:$0xf]
  %v147 = vld [vmem:[%s1 + $0xc0] sm:$0xf]
  %v148 = vld [vmem:[%s1 + $0xc4] sm:$0xf]
  %v149 = vld [vmem:[%s1 + $0xc8] sm:$0xf]
  %v150 = vld [vmem:[%s1 + $0xcc] sm:$0xf]
  %v151 = vld [vmem:[%s1 + $0xd0] sm:$0xf]
  %v152 = vld [vmem:[%s1 + $0xd4] sm:$0xf]
  %v153 = vld [vmem:[%s1 + $0xd8] sm:$0xf]
  %v154 = vld [vmem:[%s1 + $0xdc] sm:$0xf]
  %v155 = vld [vmem:[%s1 + $0xe0] sm:$0xf]
  %v156 = vld [vmem:[%s1 + $0xe4] sm:$0xf]
  %v157 = vld [vmem:[%s1 + $0xe8] sm:$0xf]
  %v158 = vld [vmem:[%s1 + $0xec] sm:$0xf]
  %v159 = vld [vmem:[%s1 + $0xf0] sm:$0xf]
  %v160 = vld [vmem:[%s1 + $0xf4] sm:$0xf]
  %v161 = vld [vmem:[%s1 + $0xf8] sm:$0xf]
  %v162 = vld [vmem:[%s1 + $0xfc] sm:$0xf]
  %v163 = vld [vmem:[%s1 + $0x100] sm:$0xf]
  %v164 = vld [vmem:[%s1 + $0x104] sm:$0xf]
  %v165 = vld [vmem:[%s1 + $0x108] sm:$0xf]
  %v166 = vld [vmem:[%s1 + $0x10c] sm:$0xf]
  %v167 = vld [vmem:[%s1 + $0x110] sm:$0xf]
  %v168 = vld [vmem:[%s1 + $0x114] sm:$0xf]
  %v169 = vld [vmem:[%s1 + $0x118] sm:$0xf]
  %v170 = vld [vmem:[%s1 + $0x11c] sm:$0xf]
  %v231 = vunpack.c.l.b16 %v39
  %v232 = vunpack.c.h.b16 %v39
  %v233 = vunpack.c.l.b16 %v40
  %v234 = vunpack.c.h.b16 %v40
  %v235 = vunpack.c.l.b16 %v41
  %v236 = vunpack.c.l.b16 %v42
  %v237 = vunpack.c.h.b16 %v42
  %v238 = vunpack.c.l.b16 %v43
  %v239 = vunpack.c.h.b16 %v43
  %v240 = vunpack.c.l.b16 %v44
  %v241 = vunpack.c.l.b16 %v45
  %v242 = vunpack.c.h.b16 %v45
  %v243 = vunpack.c.l.b16 %v46
  %v244 = vunpack.c.h.b16 %v46
  %v245 = vunpack.c.l.b16 %v47
  %v246 = vunpack.c.l.b16 %v48
  %v247 = vunpack.c.h.b16 %v48
  %v248 = vunpack.c.l.b16 %v49
  %v249 = vunpack.c.h.b16 %v49
  %v250 = vunpack.c.l.b16 %v50
  %v251 = vunpack.c.l.b16 %v51
  %v252 = vunpack.c.h.b16 %v51
  %v253 = vunpack.c.l.b16 %v52
  %v254 = vunpack.c.h.b16 %v52
  %v255 = vunpack.c.l.b16 %v53
  %v256 = vunpack.c.l.b16 %v54
  %v257 = vunpack.c.h.b16 %v54
  %v258 = vunpack.c.l.b16 %v55
  %v259 = vunpack.c.h.b16 %v55
  %v260 = vunpack.c.l.b16 %v56
  %v261 = vunpack.c.l.b16 %v57
  %v262 = vunpack.c.h.b16 %v57
  %v263 = vunpack.c.l.b16 %v58
  %v264 = vunpack.c.h.b16 %v58
  %v265 = vunpack.c.l.b16 %v59
  %v266 = vunpack.c.l.b16 %v60
  %v267 = vunpack.c.h.b16 %v60
  %v268 = vunpack.c.l.b16 %v61
  %v269 = vunpack.c.h.b16 %v61
  %v270 = vunpack.c.l.b16 %v62
  %v271 = vunpack.c.l.b16 %v63
  %v272 = vunpack.c.h.b16 %v63
  %v273 = vunpack.c.l.b16 %v64
  %v274 = vunpack.c.h.b16 %v64
  %v275 = vunpack.c.l.b16 %v65
  %v276 = vunpack.c.l.b16 %v66
  %v277 = vunpack.c.h.b16 %v66
  %v278 = vunpack.c.l.b16 %v67
  %v279 = vunpack.c.h.b16 %v67
  %v280 = vunpack.c.l.b16 %v68
  %v281 = vunpack.c.l.b16 %v69
  %v282 = vunpack.c.h.b16 %v69
  %v283 = vunpack.c.l.b16 %v70
  %v284 = vunpack.c.h.b16 %v70
  %v285 = vunpack.c.l.b16 %v71
  %v286 = vunpack.c.l.b16 %v72
  %v287 = vunpack.c.h.b16 %v72
  %v288 = vunpack.c.l.b16 %v73
  %v289 = vunpack.c.h.b16 %v73
  %v290 = vunpack.c.l.b16 %v74
  %v291 = vunpack.c.l.b16 %v75
  %v292 = vunpack.c.h.b16 %v75
  %v293 = vunpack.c.l.b16 %v76
  %v294 = vunpack.c.h.b16 %v76
  %v295 = vunpack.c.l.b16 %v77
  %v296 = vunpack.c.l.b16 %v78
  %v297 = vunpack.c.h.b16 %v78
  %v298 = vunpack.c.l.b16 %v79
  %v299 = vunpack.c.h.b16 %v79
  %v300 = vunpack.c.l.b16 %v80
  %v301 = vunpack.c.l.b16 %v81
  %v302 = vunpack.c.h.b16 %v81
  %v303 = vunpack.c.l.b16 %v82
  %v304 = vunpack.c.h.b16 %v82
  %v305 = vunpack.c.l.b16 %v83
  %v306 = vunpack.c.l.b16 %v84
  %v307 = vunpack.c.h.b16 %v84
  %v308 = vunpack.c.l.b16 %v85
  %v309 = vunpack.c.h.b16 %v85
  %v310 = vunpack.c.l.b16 %v86
  %v311 = vunpack.c.l.b16 %v87
  %v312 = vunpack.c.h.b16 %v87
  %v313 = vunpack.c.l.b16 %v88
  %v314 = vunpack.c.h.b16 %v88
  %v315 = vunpack.c.l.b16 %v89
  %v316 = vunpack.c.l.b16 %v90
  %v317 = vunpack.c.h.b16 %v90
  %v318 = vunpack.c.l.b16 %v91
  %v319 = vunpack.c.h.b16 %v91
  %v320 = vunpack.c.l.b16 %v92
  %v321 = vunpack.c.l.b16 %v93
  %v322 = vunpack.c.h.b16 %v93
  %v323 = vunpack.c.l.b16 %v94
  %v324 = vunpack.c.h.b16 %v94
  %v325 = vunpack.c.l.b16 %v95
  %v326 = vunpack.c.l.b16 %v96
  %v327 = vunpack.c.h.b16 %v96
  %v328 = vunpack.c.l.b16 %v97
  %v329 = vunpack.c.h.b16 %v97
  %v330 = vunpack.c.l.b16 %v98
  %v331 = vpack.c.b16 %v236, %v231
  %v332 = vpack.c.b16 %v237, %v232
  %v333 = vpack.c.b16 %v238, %v233
  %v334 = vpack.c.b16 %v239, %v234
  %v335 = vpack.c.b16 %v240, %v235
  %v336 = vpack.c.b16 %v246, %v241
  %v337 = vpack.c.b16 %v247, %v242
  %v338 = vpack.c.b16 %v248, %v243
  %v339 = vpack.c.b16 %v249, %v244
  %v340 = vpack.c.b16 %v250, %v245
  %v341 = vpack.c.b16 %v256, %v251
  %v342 = vpack.c.b16 %v257, %v252
  %v343 = vpack.c.b16 %v258, %v253
  %v344 = vpack.c.b16 %v259, %v254
  %v345 = vpack.c.b16 %v260, %v255
  %v346 = vpack.c.b16 %v266, %v261
  %v347 = vpack.c.b16 %v267, %v262
  %v348 = vpack.c.b16 %v268, %v263
  %v349 = vpack.c.b16 %v269, %v264
  %v350 = vpack.c.b16 %v270, %v265
  %v351 = vpack.c.b16 %v276, %v271
  %v352 = vpack.c.b16 %v277, %v272
  %v353 = vpack.c.b16 %v278, %v273
  %v354 = vpack.c.b16 %v279, %v274
  %v355 = vpack.c.b16 %v280, %v275
  %v356 = vpack.c.b16 %v286, %v281
  %v357 = vpack.c.b16 %v287, %v282
  %v358 = vpack.c.b16 %v288, %v283
  %v359 = vpack.c.b16 %v289, %v284
  %v360 = vpack.c.b16 %v290, %v285
  %v361 = vpack.c.b16 %v296, %v291
  %v362 = vpack.c.b16 %v297, %v292
  %v363 = vpack.c.b16 %v298, %v293
  %v364 = vpack.c.b16 %v299, %v294
  %v365 = vpack.c.b16 %v300, %v295
  %v366 = vpack.c.b16 %v306, %v301
  %v367 = vpack.c.b16 %v307, %v302
  %v368 = vpack.c.b16 %v308, %v303
  %v369 = vpack.c.b16 %v309, %v304
  %v370 = vpack.c.b16 %v310, %v305
  %v371 = vpack.c.b16 %v316, %v311
  %v372 = vpack.c.b16 %v317, %v312
  %v373 = vpack.c.b16 %v318, %v313
  %v374 = vpack.c.b16 %v319, %v314
  %v375 = vpack.c.b16 %v320, %v315
  %v376 = vpack.c.b16 %v326, %v321
  %v377 = vpack.c.b16 %v327, %v322
  %v378 = vpack.c.b16 %v328, %v323
  %v379 = vpack.c.b16 %v329, %v324
  %v380 = vpack.c.b16 %v330, %v325
  %v493 = vunpack.c.l.b16 %v99
  %v494 = vunpack.c.l.b16 %v100
  %v495 = vunpack.c.l.b16 %v101
  %v496 = vunpack.c.l.b16 %v102
  %v497 = vunpack.c.l.b16 %v103
  %v498 = vunpack.c.l.b16 %v104
  %v499 = vunpack.c.l.b16 %v105
  %v500 = vunpack.c.l.b16 %v106
  %v501 = vunpack.c.l.b16 %v107
  %v502 = vunpack.c.l.b16 %v108
  %v503 = vunpack.c.l.b16 %v109
  %v504 = vunpack.c.l.b16 %v110
  %v505 = vunpack.c.l.b16 %v111
  %v506 = vunpack.c.l.b16 %v112
  %v507 = vunpack.c.l.b16 %v113
  %v508 = vunpack.c.l.b16 %v114
  %v509 = vunpack.c.l.b16 %v115
  %v510 = vunpack.c.l.b16 %v116
  %v511 = vunpack.c.l.b16 %v117
  %v512 = vunpack.c.l.b16 %v118
  %v513 = vunpack.c.l.b16 %v119
  %v514 = vunpack.c.l.b16 %v120
  %v515 = vunpack.c.l.b16 %v121
  %v516 = vunpack.c.l.b16 %v122
  %v517 = vunpack.c.l.b16 %v123
  %v518 = vunpack.c.l.b16 %v124
  %v519 = vunpack.c.l.b16 %v125
  %v520 = vunpack.c.l.b16 %v126
  %v521 = vunpack.c.l.b16 %v127
  %v522 = vunpack.c.l.b16 %v128
  %v523 = vunpack.c.l.b16 %v129
  %v524 = vunpack.c.l.b16 %v130
  %v525 = vunpack.c.l.b16 %v131
  %v526 = vunpack.c.l.b16 %v132
  %v527 = vunpack.c.l.b16 %v133
  %v528 = vunpack.c.l.b16 %v134
  %v529 = vunpack.c.l.b16 %v135
  %v530 = vunpack.c.l.b16 %v136
  %v531 = vunpack.c.l.b16 %v137
  %v532 = vunpack.c.l.b16 %v138
  %v533 = vunpack.c.l.b16 %v139
  %v534 = vunpack.c.l.b16 %v140
  %v535 = vunpack.c.l.b16 %v141
  %v536 = vunpack.c.l.b16 %v142
  %v537 = vunpack.c.l.b16 %v143
  %v538 = vunpack.c.l.b16 %v144
  %v539 = vunpack.c.l.b16 %v145
  %v540 = vunpack.c.l.b16 %v146
  %v541 = vunpack.c.l.b16 %v147
  %v542 = vunpack.c.l.b16 %v148
  %v543 = vunpack.c.l.b16 %v149
  %v544 = vunpack.c.l.b16 %v150
  %v545 = vunpack.c.l.b16 %v151
  %v546 = vunpack.c.l.b16 %v152
  %v547 = vunpack.c.l.b16 %v153
  %v548 = vunpack.c.l.b16 %v154
  %v549 = vunpack.c.l.b16 %v155
  %v550 = vunpack.c.l.b16 %v156
  %v551 = vunpack.c.l.b16 %v157
  %v552 = vunpack.c.l.b16 %v158
  %v553 = vunpack.c.l.b16 %v159
  %v554 = vunpack.c.l.b16 %v160
  %v555 = vunpack.c.l.b16 %v161
  %v556 = vunpack.c.l.b16 %v162
  %v557 = vunpack.c.l.b16 %v163
  %v558 = vunpack.c.l.b16 %v164
  %v559 = vunpack.c.l.b16 %v165
  %v560 = vunpack.c.l.b16 %v166
  %v561 = vunpack.c.l.b16 %v167
  %v562 = vunpack.c.l.b16 %v168
  %v563 = vunpack.c.l.b16 %v169
  %v564 = vunpack.c.l.b16 %v170
  %v565 = vpack.c.b16 %v494, %v493
  %v566 = vpack.c.b16 %v496, %v495
  %v567 = vpack.c.b16 %v498, %v497
  %v568 = vpack.c.b16 %v500, %v499
  %v569 = vpack.c.b16 %v502, %v501
  %v570 = vpack.c.b16 %v504, %v503
  %v571 = vpack.c.b16 %v506, %v505
  %v572 = vpack.c.b16 %v508, %v507
  %v573 = vpack.c.b16 %v510, %v509
  %v574 = vpack.c.b16 %v512, %v511
  %v575 = vpack.c.b16 %v514, %v513
  %v576 = vpack.c.b16 %v516, %v515
  %v577 = vpack.c.b16 %v518, %v517
  %v578 = vpack.c.b16 %v520, %v519
  %v579 = vpack.c.b16 %v522, %v521
  %v580 = vpack.c.b16 %v524, %v523
  %v581 = vpack.c.b16 %v526, %v525
  %v582 = vpack.c.b16 %v528, %v527
  %v583 = vpack.c.b16 %v530, %v529
  %v584 = vpack.c.b16 %v532, %v531
  %v585 = vpack.c.b16 %v534, %v533
  %v586 = vpack.c.b16 %v536, %v535
  %v587 = vpack.c.b16 %v538, %v537
  %v588 = vpack.c.b16 %v540, %v539
  %v589 = vpack.c.b16 %v542, %v541
  %v590 = vpack.c.b16 %v544, %v543
  %v591 = vpack.c.b16 %v546, %v545
  %v592 = vpack.c.b16 %v548, %v547
  %v593 = vpack.c.b16 %v550, %v549
  %v594 = vpack.c.b16 %v552, %v551
  %v595 = vpack.c.b16 %v554, %v553
  %v596 = vpack.c.b16 %v556, %v555
  %v597 = vpack.c.b16 %v558, %v557
  %v598 = vpack.c.b16 %v560, %v559
  %v599 = vpack.c.b16 %v562, %v561
  %v600 = vpack.c.b16 %v564, %v563
  %vm637 = vcmask 523264
  %v639 = vsel %vm637, %v335, 0
  %v642 = vsel %vm637, %v340, 0
  %v645 = vsel %vm637, %v345, 0
  %v648 = vsel %vm637, %v350, 0
  %v651 = vsel %vm637, %v355, 0
  %v654 = vsel %vm637, %v360, 0
  %v657 = vsel %vm637, %v365, 0
  %v660 = vsel %vm637, %v370, 0
  %v663 = vsel %vm637, %v375, 0
  %v666 = vsel %vm637, %v380, 0
  %668 = vmatprep.subr.bf16.mxu0 0
  %669 = vmatpush1.bf16.msra.mxu0 %v572
  %670 = vmatprep.subr.bf16.mxu0 0
  %671 = vmatpush1.bf16.msra.mxu0 %v571
  %672 = vmatprep.subr.bf16.mxu0 0
  %673 = vmatpush1.bf16.msra.mxu0 %v570
  %674 = vmatprep.subr.bf16.mxu0 0
  %675 = vmatpush1.bf16.msra.mxu0 %v569
  %676 = vmatprep.subr.bf16.mxu0 0
  %677 = vmatpush1.bf16.msra.mxu0 %v568
  %678 = vmatprep.subr.bf16.mxu0 0
  %679 = vmatpush1.bf16.msra.mxu0 %v567
  %680 = vmatprep.subr.bf16.mxu0 0
  %681 = vmatpush1.bf16.msra.mxu0 %v566
  %682 = vmatprep.subr.bf16.mxu0 0
  %683 = vmatpush1.bf16.msra.mxu0 %v565
  %684 = vmatprep.subr.bf16.mxu0 0
  %685 = vmatpush2.bf16.msra.mxu0 %v580
  %686 = vmatprep.subr.bf16.mxu0 0
  %687 = vmatpush2.bf16.msra.mxu0 %v579
  %688 = vmatprep.subr.bf16.mxu0 0
  %689 = vmatpush2.bf16.msra.mxu0 %v578
  %690 = vmatprep.subr.bf16.mxu0 0
  %691 = vmatpush2.bf16.msra.mxu0 %v577
  %692 = vmatprep.subr.bf16.mxu0 0
  %693 = vmatpush2.bf16.msra.mxu0 %v576
  %694 = vmatprep.subr.bf16.mxu0 0
  %695 = vmatpush2.bf16.msra.mxu0 %v575
  %696 = vmatprep.subr.bf16.mxu0 0
  %697 = vmatpush2.bf16.msra.mxu0 %v574
  %698 = vmatprep.subr.bf16.mxu0 0
  %699 = vmatpush2.bf16.msra.mxu0 %v573
  %700 = vmatprep.mubr.bf16.mxu0 %v332
  %701 = vmatmul.mubr.bf16.gmra.mxu0 %v331
  %v702 = vpop.f32.mrf.mxu0
  %v703 = vadd.f32 0.0, %v702
  %v704 = vpop.f32.mrf.mxu0
  %v705 = vpop.f32.mrf.mxu0
  %v706 = vadd.f32 0.0, %v705
  %v707 = vpop.f32.mrf.mxu0
  %708 = vmatprep.mubr.bf16.mxu0 %v337
  %709 = vmatmul.mubr.bf16.gmra.mxu0 %v336
  %v710 = vpop.f32.mrf.mxu0
  %v711 = vadd.f32 0.0, %v710
  %v712 = vpop.f32.mrf.mxu0
  %v713 = vpop.f32.mrf.mxu0
  %v714 = vadd.f32 0.0, %v713
  %v715 = vpop.f32.mrf.mxu0
  %716 = vmatprep.mubr.bf16.mxu0 %v342
  %717 = vmatmul.mubr.bf16.gmra.mxu0 %v341
  %v718 = vpop.f32.mrf.mxu0
  %v719 = vadd.f32 0.0, %v718
  %v720 = vpop.f32.mrf.mxu0
  %v721 = vpop.f32.mrf.mxu0
  %v722 = vadd.f32 0.0, %v721
  %v723 = vpop.f32.mrf.mxu0
  %724 = vmatprep.mubr.bf16.mxu0 %v347
  %725 = vmatmul.mubr.bf16.gmra.mxu0 %v346
  %v726 = vpop.f32.mrf.mxu0
  %v727 = vadd.f32 0.0, %v726
  %v728 = vpop.f32.mrf.mxu0
  %v729 = vpop.f32.mrf.mxu0
  %v730 = vadd.f32 0.0, %v729
  %v731 = vpop.f32.mrf.mxu0
  %732 = vmatprep.mubr.bf16.mxu0 %v352
  %733 = vmatmul.mubr.bf16.gmra.mxu0 %v351
  %v734 = vpop.f32.mrf.mxu0
  %v735 = vadd.f32 0.0, %v734
  %v736 = vpop.f32.mrf.mxu0
  %v737 = vpop.f32.mrf.mxu0
  %v738 = vadd.f32 0.0, %v737
  %v739 = vpop.f32.mrf.mxu0
  %740 = vmatprep.mubr.bf16.mxu0 %v357
  %741 = vmatmul.mubr.bf16.gmra.mxu0 %v356
  %v742 = vpop.f32.mrf.mxu0
  %v743 = vadd.f32 0.0, %v742
  %v744 = vpop.f32.mrf.mxu0
  %v745 = vpop.f32.mrf.mxu0
  %v746 = vadd.f32 0.0, %v745
  %v747 = vpop.f32.mrf.mxu0
  %748 = vmatprep.mubr.bf16.mxu0 %v362
  %749 = vmatmul.mubr.bf16.gmra.mxu0 %v361
  %v750 = vpop.f32.mrf.mxu0
  %v751 = vadd.f32 0.0, %v750
  %v752 = vpop.f32.mrf.mxu0
  %v753 = vpop.f32.mrf.mxu0
  %v754 = vadd.f32 0.0, %v753
  %v755 = vpop.f32.mrf.mxu0
  %756 = vmatprep.mubr.bf16.mxu0 %v367
  %757 = vmatmul.mubr.bf16.gmra.mxu0 %v366
  %v758 = vpop.f32.mrf.mxu0
  %v759 = vadd.f32 0.0, %v758
  %v760 = vpop.f32.mrf.mxu0
  %v761 = vpop.f32.mrf.mxu0
  %v762 = vadd.f32 0.0, %v761
  %v763 = vpop.f32.mrf.mxu0
  %764 = vmatprep.mubr.bf16.mxu0 %v372
  %765 = vmatmul.mubr.bf16.gmra.mxu0 %v371
  %v766 = vpop.f32.mrf.mxu0
  %v767 = vadd.f32 0.0, %v766
  %v768 = vpop.f32.mrf.mxu0
  %v769 = vpop.f32.mrf.mxu0
  %v770 = vadd.f32 0.0, %v769
  %v771 = vpop.f32.mrf.mxu0
  %772 = vmatprep.mubr.bf16.mxu0 %v377
  %773 = vmatmul.mubr.bf16.gmra.mxu0 %v376
  %v774 = vpop.f32.mrf.mxu0
  %v775 = vadd.f32 0.0, %v774
  %v776 = vpop.f32.mrf.mxu0
  %v777 = vpop.f32.mrf.mxu0
  %v778 = vadd.f32 0.0, %v777
  %v779 = vpop.f32.mrf.mxu0
  %780 = vdwg.mxu0
  %781 = vmatprep.subr.bf16.mxu0 0
  %782 = vmatpush1.bf16.msra.mxu0 %v588
  %783 = vmatprep.subr.bf16.mxu0 0
  %784 = vmatpush1.bf16.msra.mxu0 %v587
  %785 = vmatprep.subr.bf16.mxu0 0
  %786 = vmatpush1.bf16.msra.mxu0 %v586
  %787 = vmatprep.subr.bf16.mxu0 0
  %788 = vmatpush1.bf16.msra.mxu0 %v585
  %789 = vmatprep.subr.bf16.mxu0 0
  %790 = vmatpush1.bf16.msra.mxu0 %v584
  %791 = vmatprep.subr.bf16.mxu0 0
  %792 = vmatpush1.bf16.msra.mxu0 %v583
  %793 = vmatprep.subr.bf16.mxu0 0
  %794 = vmatpush1.bf16.msra.mxu0 %v582
  %795 = vmatprep.subr.bf16.mxu0 0
  %796 = vmatpush1.bf16.msra.mxu0 %v581
  %797 = vmatprep.subr.bf16.mxu0 0
  %798 = vmatpush2.bf16.msra.mxu0 %v596
  %799 = vmatprep.subr.bf16.mxu0 0
  %800 = vmatpush2.bf16.msra.mxu0 %v595
  %801 = vmatprep.subr.bf16.mxu0 0
  %802 = vmatpush2.bf16.msra.mxu0 %v594
  %803 = vmatprep.subr.bf16.mxu0 0
  %804 = vmatpush2.bf16.msra.mxu0 %v593
  %805 = vmatprep.subr.bf16.mxu0 0
  %806 = vmatpush2.bf16.msra.mxu0 %v592
  %807 = vmatprep.subr.bf16.mxu0 0
  %808 = vmatpush2.bf16.msra.mxu0 %v591
  %809 = vmatprep.subr.bf16.mxu0 0
  %810 = vmatpush2.bf16.msra.mxu0 %v590
  %811 = vmatprep.subr.bf16.mxu0 0
  %812 = vmatpush2.bf16.msra.mxu0 %v589
  %813 = vmatprep.mubr.bf16.mxu0 %v334
  %814 = vmatmul.mubr.bf16.gmra.mxu0 %v333
  %v815 = vpop.f32.mrf.mxu0
  %v816 = vadd.f32 %v703, %v815
  %v817 = vpop.f32.mrf.mxu0
  %v818 = vpop.f32.mrf.mxu0
  %v819 = vadd.f32 %v706, %v818
  %v820 = vpop.f32.mrf.mxu0
  %821 = vmatprep.mubr.bf16.mxu0 %v339
  %822 = vmatmul.mubr.bf16.gmra.mxu0 %v338
  %v823 = vpop.f32.mrf.mxu0
  %v824 = vadd.f32 %v711, %v823
  %v825 = vpop.f32.mrf.mxu0
  %v826 = vpop.f32.mrf.mxu0
  %v827 = vadd.f32 %v714, %v826
  %v828 = vpop.f32.mrf.mxu0
  %829 = vmatprep.mubr.bf16.mxu0 %v344
  %830 = vmatmul.mubr.bf16.gmra.mxu0 %v343
  %v831 = vpop.f32.mrf.mxu0
  %v832 = vadd.f32 %v719, %v831
  %v833 = vpop.f32.mrf.mxu0
  %v834 = vpop.f32.mrf.mxu0
  %v835 = vadd.f32 %v722, %v834
  %v836 = vpop.f32.mrf.mxu0
  %837 = vmatprep.mubr.bf16.mxu0 %v349
  %838 = vmatmul.mubr.bf16.gmra.mxu0 %v348
  %v839 = vpop.f32.mrf.mxu0
  %v840 = vadd.f32 %v727, %v839
  %v841 = vpop.f32.mrf.mxu0
  %v842 = vpop.f32.mrf.mxu0
  %v843 = vadd.f32 %v730, %v842
  %v844 = vpop.f32.mrf.mxu0
  %845 = vmatprep.mubr.bf16.mxu0 %v354
  %846 = vmatmul.mubr.bf16.gmra.mxu0 %v353
  %v847 = vpop.f32.mrf.mxu0
  %v848 = vadd.f32 %v735, %v847
  %v849 = vpop.f32.mrf.mxu0
  %v850 = vpop.f32.mrf.mxu0
  %v851 = vadd.f32 %v738, %v850
  %v852 = vpop.f32.mrf.mxu0
  %853 = vmatprep.mubr.bf16.mxu0 %v359
  %854 = vmatmul.mubr.bf16.gmra.mxu0 %v358
  %v855 = vpop.f32.mrf.mxu0
  %v856 = vadd.f32 %v743, %v855
  %v857 = vpop.f32.mrf.mxu0
  %v858 = vpop.f32.mrf.mxu0
  %v859 = vadd.f32 %v746, %v858
  %v860 = vpop.f32.mrf.mxu0
  %861 = vmatprep.mubr.bf16.mxu0 %v364
  %862 = vmatmul.mubr.bf16.gmra.mxu0 %v363
  %v863 = vpop.f32.mrf.mxu0
  %v864 = vadd.f32 %v751, %v863
  %v865 = vpop.f32.mrf.mxu0
  %v866 = vpop.f32.mrf.mxu0
  %v867 = vadd.f32 %v754, %v866
  %v868 = vpop.f32.mrf.mxu0
  %869 = vmatprep.mubr.bf16.mxu0 %v369
  %870 = vmatmul.mubr.bf16.gmra.mxu0 %v368
  %v871 = vpop.f32.mrf.mxu0
  %v872 = vadd.f32 %v759, %v871
  %v873 = vpop.f32.mrf.mxu0
  %v874 = vpop.f32.mrf.mxu0
  %v875 = vadd.f32 %v762, %v874
  %v876 = vpop.f32.mrf.mxu0
  %877 = vmatprep.mubr.bf16.mxu0 %v374
  %878 = vmatmul.mubr.bf16.gmra.mxu0 %v373
  %v879 = vpop.f32.mrf.mxu0
  %v880 = vadd.f32 %v767, %v879
  %v881 = vpop.f32.mrf.mxu0
  %v882 = vpop.f32.mrf.mxu0
  %v883 = vadd.f32 %v770, %v882
  %v884 = vpop.f32.mrf.mxu0
  %885 = vmatprep.mubr.bf16.mxu0 %v379
  %886 = vmatmul.mubr.bf16.gmra.mxu0 %v378
  %v887 = vpop.f32.mrf.mxu0
  %v888 = vadd.f32 %v775, %v887
  %v889 = vpop.f32.mrf.mxu0
  %v890 = vpop.f32.mrf.mxu0
  %v891 = vadd.f32 %v778, %v890
  %v892 = vpop.f32.mrf.mxu0
  %893 = vdwg.mxu0
  %894 = vmatprep.subr.bf16.mxu0 0
  %895 = vmatpush1.bf16.msra.mxu0 0
  %896 = vmatprep.subr.bf16.mxu0 0
  %897 = vmatpush1.bf16.msra.mxu0 0
  %898 = vmatprep.subr.bf16.mxu0 0
  %899 = vmatpush1.bf16.msra.mxu0 0
  %900 = vmatprep.subr.bf16.mxu0 0
  %901 = vmatpush1.bf16.msra.mxu0 0
  %902 = vmatprep.subr.bf16.mxu0 0
  %903 = vmatpush1.bf16.msra.mxu0 %v600
  %904 = vmatprep.subr.bf16.mxu0 0
  %905 = vmatpush1.bf16.msra.mxu0 %v599
  %906 = vmatprep.subr.bf16.mxu0 0
  %907 = vmatpush1.bf16.msra.mxu0 %v598
  %908 = vmatprep.subr.bf16.mxu0 0
  %909 = vmatpush1.bf16.msra.mxu0 %v597
  %910 = vmatprep.subr.bf16.mxu0 0
  %911 = vmatpush2.bf16.msra.mxu0 0
  %912 = vmatprep.subr.bf16.mxu0 0
  %913 = vmatpush2.bf16.msra.mxu0 0
  %914 = vmatprep.subr.bf16.mxu0 0
  %915 = vmatpush2.bf16.msra.mxu0 0
  %916 = vmatprep.subr.bf16.mxu0 0
  %917 = vmatpush2.bf16.msra.mxu0 0
  %918 = vmatprep.subr.bf16.mxu0 0
  %919 = vmatpush2.bf16.msra.mxu0 0
  %920 = vmatprep.subr.bf16.mxu0 0
  %921 = vmatpush2.bf16.msra.mxu0 0
  %922 = vmatprep.subr.bf16.mxu0 0
  %923 = vmatpush2.bf16.msra.mxu0 0
  %924 = vmatprep.subr.bf16.mxu0 0
  %925 = vmatpush2.bf16.msra.mxu0 0
  %926 = vmatprep.mubr.bf16.mxu0 0
  %927 = vmatmul.mubr.bf16.gmra.mxu0 %v639
  %v928 = vpop.f32.mrf.mxu0
  %v929 = vadd.f32 %v816, %v928
  %v930 = vpop.f32.mrf.mxu0
  %v931 = vpop.f32.mrf.mxu0
  %v932 = vadd.f32 %v819, %v931
  %v933 = vpop.f32.mrf.mxu0
  %934 = vmatprep.mubr.bf16.mxu0 0
  %935 = vmatmul.mubr.bf16.gmra.mxu0 %v642
  %v936 = vpop.f32.mrf.mxu0
  %v937 = vadd.f32 %v824, %v936
  %v938 = vpop.f32.mrf.mxu0
  %v939 = vpop.f32.mrf.mxu0
  %v940 = vadd.f32 %v827, %v939
  %v941 = vpop.f32.mrf.mxu0
  %942 = vmatprep.mubr.bf16.mxu0 0
  %943 = vmatmul.mubr.bf16.gmra.mxu0 %v645
  %v944 = vpop.f32.mrf.mxu0
  %v945 = vadd.f32 %v832, %v944
  %v946 = vpop.f32.mrf.mxu0
  %v947 = vpop.f32.mrf.mxu0
  %v948 = vadd.f32 %v835, %v947
  %v949 = vpop.f32.mrf.mxu0
  %950 = vmatprep.mubr.bf16.mxu0 0
  %951 = vmatmul.mubr.bf16.gmra.mxu0 %v648
  %v952 = vpop.f32.mrf.mxu0
  %v953 = vadd.f32 %v840, %v952
  %v954 = vpop.f32.mrf.mxu0
  %v955 = vpop.f32.mrf.mxu0
  %v956 = vadd.f32 %v843, %v955
  %v957 = vpop.f32.mrf.mxu0
  %958 = vmatprep.mubr.bf16.mxu0 0
  %959 = vmatmul.mubr.bf16.gmra.mxu0 %v651
  %v960 = vpop.f32.mrf.mxu0
  %v961 = vadd.f32 %v848, %v960
  %v962 = vpop.f32.mrf.mxu0
  %v963 = vpop.f32.mrf.mxu0
  %v964 = vadd.f32 %v851, %v963
  %v965 = vpop.f32.mrf.mxu0
  %966 = vmatprep.mubr.bf16.mxu0 0
  %967 = vmatmul.mubr.bf16.gmra.mxu0 %v654
  %v968 = vpop.f32.mrf.mxu0
  %v969 = vadd.f32 %v856, %v968
  %v970 = vpop.f32.mrf.mxu0
  %v971 = vpop.f32.mrf.mxu0
  %v972 = vadd.f32 %v859, %v971
  %v973 = vpop.f32.mrf.mxu0
  %974 = vmatprep.mubr.bf16.mxu0 0
  %975 = vmatmul.mubr.bf16.gmra.mxu0 %v657
  %v976 = vpop.f32.mrf.mxu0
  %v977 = vadd.f32 %v864, %v976
  %v978 = vpop.f32.mrf.mxu0
  %v979 = vpop.f32.mrf.mxu0
  %v980 = vadd.f32 %v867, %v979
  %v981 = vpop.f32.mrf.mxu0
  %982 = vmatprep.mubr.bf16.mxu0 0
  %983 = vmatmul.mubr.bf16.gmra.mxu0 %v660
  %v984 = vpop.f32.mrf.mxu0
  %v985 = vadd.f32 %v872, %v984
  %v986 = vpop.f32.mrf.mxu0
  %v987 = vpop.f32.mrf.mxu0
  %v988 = vadd.f32 %v875, %v987
  %v989 = vpop.f32.mrf.mxu0
  %990 = vmatprep.mubr.bf16.mxu0 0
  %991 = vmatmul.mubr.bf16.gmra.mxu0 %v663
  %v992 = vpop.f32.mrf.mxu0
  %v993 = vadd.f32 %v880, %v992
  %v994 = vpop.f32.mrf.mxu0
  %v995 = vpop.f32.mrf.mxu0
  %v996 = vadd.f32 %v883, %v995
  %v997 = vpop.f32.mrf.mxu0
  %998 = vmatprep.mubr.bf16.mxu0 0
  %999 = vmatmul.mubr.bf16.gmra.mxu0 %v666
  %v1000 = vpop.f32.mrf.mxu0
  %v1001 = vadd.f32 %v888, %v1000
  %v1002 = vpop.f32.mrf.mxu0
  %v1003 = vpop.f32.mrf.mxu0
  %v1004 = vadd.f32 %v891, %v1003
  %v1005 = vpop.f32.mrf.mxu0
  %1006 = vdwg.mxu0
  %v1007 = vmax.f32 %v929, %v948
  %v1008 = vmax.f32 %v932, %v953
  %v1009 = vmax.f32 %v937, %v956
  %v1010 = vmax.f32 %v940, %v961
  %v1011 = vmax.f32 %v945, %v964
  %v1012 = vmax.f32 %v969, %v988
  %v1013 = vmax.f32 %v972, %v993
  %v1014 = vmax.f32 %v977, %v996
  %v1015 = vmax.f32 %v980, %v1001
  %v1016 = vmax.f32 %v985, %v1004
  %v1017 = vmax.f32 %v1007, %v1012
  %v1018 = vmax.f32 %v1008, %v1013
  %v1019 = vmax.f32 %v1009, %v1014
  %v1020 = vmax.f32 %v1010, %v1015
  %v1021 = vmax.f32 %v1011, %v1016
  %v1022 = vld [vmem:[%s2] sm:$0x1]
  %v1024 = vlaneseq
  %v1025 = vshrl.u32 %v1024, 7
  %v1026 = vsub.s32 0, %v1025
  %v1027 = vrot.slane %v1022, %v1026
  %v1029 = vadd.f32 %v1017, %v1027
  %v1030 = vadd.f32 %v1018, %v1027
  %v1031 = vadd.f32 %v1019, %v1027
  %v1032 = vadd.f32 %v1020, %v1027
  %v1033 = vadd.f32 %v1021, %v1027
  %v1034 = vmax.f32 %v1029, 0.0
  %v1035 = vmax.f32 %v1030, 0.0
  %v1036 = vmax.f32 %v1031, 0.0
  %v1037 = vmax.f32 %v1032, 0.0
  %v1038 = vmax.f32 %v1033, 0.0
  %v1039 = vpack.c.bf16 %v1035, %v1034
  %v1040 = vpack.c.bf16 %v1037, %v1036
  %v1041 = vpack.c.bf16 %v1038, %v1038
  %v1042 = vld [vmem:[%s3] sm:$0xf]
  %v1043 = vld [vmem:[%s3 + $0x4] sm:$0xf]
  %v1044 = vld [vmem:[%s3 + $0x8] sm:$0xf]
  %v1045 = vld [vmem:[%s3 + $0xc] sm:$0xf]
  %v1046 = vld [vmem:[%s3 + $0x10] sm:$0xf]
  %v1047 = vld [vmem:[%s3 + $0x14] sm:$0xf]
  %v1048 = vld [vmem:[%s3 + $0x18] sm:$0xf]
  %v1049 = vld [vmem:[%s3 + $0x1c] sm:$0xf]
  %v1050 = vld [vmem:[%s3 + $0x20] sm:$0xf]
  %v1051 = vld [vmem:[%s3 + $0x24] sm:$0xf]
  %v1052 = vld [vmem:[%s3 + $0x28] sm:$0xf]
  %v1053 = vld [vmem:[%s3 + $0x2c] sm:$0xf]
  %v1054 = vld [vmem:[%s3 + $0x30] sm:$0xf]
  %v1055 = vld [vmem:[%s3 + $0x34] sm:$0xf]
  %v1056 = vld [vmem:[%s3 + $0x38] sm:$0xf]
  %v1057 = vld [vmem:[%s3 + $0x3c] sm:$0xf]
  %v1058 = vld [vmem:[%s3 + $0x40] sm:$0xf]
  %v1059 = vld [vmem:[%s3 + $0x44] sm:$0xf]
  %v1060 = vld [vmem:[%s3 + $0x48] sm:$0xf]
  %v1061 = vld [vmem:[%s3 + $0x4c] sm:$0xf]
  %v1062 = vld [vmem:[%s3 + $0x50] sm:$0xf]
  %v1063 = vld [vmem:[%s3 + $0x54] sm:$0xf]
  %v1064 = vld [vmem:[%s3 + $0x58] sm:$0xf]
  %v1065 = vld [vmem:[%s3 + $0x5c] sm:$0xf]
  %v1066 = vld [vmem:[%s3 + $0x60] sm:$0xf]
  %v1067 = vld [vmem:[%s3 + $0x64] sm:$0xf]
  %v1068 = vld [vmem:[%s3 + $0x68] sm:$0xf]
  %v1069 = vld [vmem:[%s3 + $0x6c] sm:$0xf]
  %v1070 = vld [vmem:[%s3 + $0x70] sm:$0xf]
  %v1071 = vld [vmem:[%s3 + $0x74] sm:$0xf]
  %v1072 = vld [vmem:[%s3 + $0x78] sm:$0xf]
  %v1073 = vld [vmem:[%s3 + $0x7c] sm:$0xf]
  %v1074 = vld [vmem:[%s3 + $0x80] sm:$0xf]
  %v1075 = vld [vmem:[%s3 + $0x84] sm:$0xf]
  %v1076 = vld [vmem:[%s3 + $0x88] sm:$0xf]
  %v1077 = vld [vmem:[%s3 + $0x8c] sm:$0xf]
  %v1078 = vld [vmem:[%s3 + $0x90] sm:$0xf]
  %v1079 = vld [vmem:[%s3 + $0x94] sm:$0xf]
  %v1080 = vld [vmem:[%s3 + $0x98] sm:$0xf]
  %v1081 = vld [vmem:[%s3 + $0x9c] sm:$0xf]
  %v1083 = vrot.slane %v1039, 4
  %v1092 = vunpack.c.l.b16 %v1050
  %v1093 = vunpack.c.l.b16 %v1051
  %v1094 = vunpack.c.l.b16 %v1052
  %v1095 = vunpack.c.l.b16 %v1053
  %v1096 = vunpack.c.l.b16 %v1054
  %v1097 = vunpack.c.l.b16 %v1055
  %v1098 = vunpack.c.l.b16 %v1056
  %v1099 = vunpack.c.l.b16 %v1057
  %v1100 = vpack.c.b16 %v1093, %v1092
  %v1101 = vpack.c.b16 %v1095, %v1094
  %v1102 = vpack.c.b16 %v1097, %v1096
  %v1103 = vpack.c.b16 %v1099, %v1098
  %v1109 = vsel %vm637, %v1083, 0
  %1111 = vmatprep.subr.bf16.mxu0 0
  %1112 = vmatpush1.bf16.msra.mxu0 0
  %1113 = vmatprep.subr.bf16.mxu0 0
  %1114 = vmatpush1.bf16.msra.mxu0 0
  %1115 = vmatprep.subr.bf16.mxu0 0
  %1116 = vmatpush1.bf16.msra.mxu0 0
  %1117 = vmatprep.subr.bf16.mxu0 0
  %1118 = vmatpush1.bf16.msra.mxu0 0
  %1119 = vmatprep.subr.bf16.mxu0 0
  %1120 = vmatpush1.bf16.msra.mxu0 %v1103
  %1121 = vmatprep.subr.bf16.mxu0 0
  %1122 = vmatpush1.bf16.msra.mxu0 %v1102
  %1123 = vmatprep.subr.bf16.mxu0 0
  %1124 = vmatpush1.bf16.msra.mxu0 %v1101
  %1125 = vmatprep.subr.bf16.mxu0 0
  %1126 = vmatpush1.bf16.msra.mxu0 %v1100
  %1127 = vmatprep.subr.bf16.mxu0 0
  %1128 = vmatpush2.bf16.msra.mxu0 0
  %1129 = vmatprep.subr.bf16.mxu0 0
  %1130 = vmatpush2.bf16.msra.mxu0 0
  %1131 = vmatprep.subr.bf16.mxu0 0
  %1132 = vmatpush2.bf16.msra.mxu0 0
  %1133 = vmatprep.subr.bf16.mxu0 0
  %1134 = vmatpush2.bf16.msra.mxu0 0
  %1135 = vmatprep.subr.bf16.mxu0 0
  %1136 = vmatpush2.bf16.msra.mxu0 0
  %1137 = vmatprep.subr.bf16.mxu0 0
  %1138 = vmatpush2.bf16.msra.mxu0 0
  %1139 = vmatprep.subr.bf16.mxu0 0
  %1140 = vmatpush2.bf16.msra.mxu0 0
  %1141 = vmatprep.subr.bf16.mxu0 0
  %1142 = vmatpush2.bf16.msra.mxu0 0
  %1143 = vmatprep.mubr.bf16.mxu0 0
  %1144 = vmatmul.mubr.bf16.gmra.mxu0 %v1109
  %v1145 = vpop.f32.mrf.mxu0
  %v1146 = vadd.f32 0.0, %v1145
  %v1147 = vpop.f32.mrf.mxu0
  %v1148 = vpop.f32.mrf.mxu0
  %v1149 = vpop.f32.mrf.mxu0
  %1150 = vdwg.mxu0
  %v1159 = vunpack.c.l.b16 %v1042
  %v1160 = vunpack.c.l.b16 %v1043
  %v1161 = vunpack.c.l.b16 %v1044
  %v1162 = vunpack.c.l.b16 %v1045
  %v1163 = vunpack.c.l.b16 %v1046
  %v1164 = vunpack.c.l.b16 %v1047
  %v1165 = vunpack.c.l.b16 %v1048
  %v1166 = vunpack.c.l.b16 %v1049
  %v1167 = vpack.c.b16 %v1160, %v1159
  %v1168 = vpack.c.b16 %v1162, %v1161
  %v1169 = vpack.c.b16 %v1164, %v1163
  %v1170 = vpack.c.b16 %v1166, %v1165
  %v1176 = vsel %vm637, %v1039, 0
  %1178 = vmatprep.subr.bf16.mxu0 0
  %1179 = vmatpush1.bf16.msra.mxu0 0
  %1180 = vmatprep.subr.bf16.mxu0 0
  %1181 = vmatpush1.bf16.msra.mxu0 0
  %1182 = vmatprep.subr.bf16.mxu0 0
  %1183 = vmatpush1.bf16.msra.mxu0 0
  %1184 = vmatprep.subr.bf16.mxu0 0
  %1185 = vmatpush1.bf16.msra.mxu0 0
  %1186 = vmatprep.subr.bf16.mxu0 0
  %1187 = vmatpush1.bf16.msra.mxu0 %v1170
  %1188 = vmatprep.subr.bf16.mxu0 0
  %1189 = vmatpush1.bf16.msra.mxu0 %v1169
  %1190 = vmatprep.subr.bf16.mxu0 0
  %1191 = vmatpush1.bf16.msra.mxu0 %v1168
  %1192 = vmatprep.subr.bf16.mxu0 0
  %1193 = vmatpush1.bf16.msra.mxu0 %v1167
  %1194 = vmatprep.subr.bf16.mxu0 0
  %1195 = vmatpush2.bf16.msra.mxu0 0
  %1196 = vmatprep.subr.bf16.mxu0 0
  %1197 = vmatpush2.bf16.msra.mxu0 0
  %1198 = vmatprep.subr.bf16.mxu0 0
  %1199 = vmatpush2.bf16.msra.mxu0 0
  %1200 = vmatprep.subr.bf16.mxu0 0
  %1201 = vmatpush2.bf16.msra.mxu0 0
  %1202 = vmatprep.subr.bf16.mxu0 0
  %1203 = vmatpush2.bf16.msra.mxu0 0
  %1204 = vmatprep.subr.bf16.mxu0 0
  %1205 = vmatpush2.bf16.msra.mxu0 0
  %1206 = vmatprep.subr.bf16.mxu0 0
  %1207 = vmatpush2.bf16.msra.mxu0 0
  %1208 = vmatprep.subr.bf16.mxu0 0
  %1209 = vmatpush2.bf16.msra.mxu0 0
  %1210 = vmatprep.mubr.bf16.mxu0 0
  %1211 = vmatmul.mubr.bf16.gmra.mxu0 %v1176
  %v1212 = vpop.f32.mrf.mxu0
  %v1213 = vadd.f32 %v1146, %v1212
  %v1214 = vpop.f32.mrf.mxu0
  %v1215 = vpop.f32.mrf.mxu0
  %v1216 = vpop.f32.mrf.mxu0
  %1217 = vdwg.mxu0
  %v1226 = vunpack.c.l.b16 %v1058
  %v1227 = vunpack.c.l.b16 %v1059
  %v1228 = vunpack.c.l.b16 %v1060
  %v1229 = vunpack.c.l.b16 %v1061
  %v1230 = vunpack.c.l.b16 %v1062
  %v1231 = vunpack.c.l.b16 %v1063
  %v1232 = vunpack.c.l.b16 %v1064
  %v1233 = vunpack.c.l.b16 %v1065
  %v1234 = vpack.c.b16 %v1227, %v1226
  %v1235 = vpack.c.b16 %v1229, %v1228
  %v1236 = vpack.c.b16 %v1231, %v1230
  %v1237 = vpack.c.b16 %v1233, %v1232
  %v1243 = vsel %vm637, %v1040, 0
  %1245 = vmatprep.subr.bf16.mxu0 0
  %1246 = vmatpush1.bf16.msra.mxu0 0
  %1247 = vmatprep.subr.bf16.mxu0 0
  %1248 = vmatpush1.bf16.msra.mxu0 0
  %1249 = vmatprep.subr.bf16.mxu0 0
  %1250 = vmatpush1.bf16.msra.mxu0 0
  %1251 = vmatprep.subr.bf16.mxu0 0
  %1252 = vmatpush1.bf16.msra.mxu0 0
  %1253 = vmatprep.subr.bf16.mxu0 0
  %1254 = vmatpush1.bf16.msra.mxu0 %v1237
  %1255 = vmatprep.subr.bf16.mxu0 0
  %1256 = vmatpush1.bf16.msra.mxu0 %v1236
  %1257 = vmatprep.subr.bf16.mxu0 0
  %1258 = vmatpush1.bf16.msra.mxu0 %v1235
  %1259 = vmatprep.subr.bf16.mxu0 0
  %1260 = vmatpush1.bf16.msra.mxu0 %v1234
  %1261 = vmatprep.subr.bf16.mxu0 0
  %1262 = vmatpush2.bf16.msra.mxu0 0
  %1263 = vmatprep.subr.bf16.mxu0 0
  %1264 = vmatpush2.bf16.msra.mxu0 0
  %1265 = vmatprep.subr.bf16.mxu0 0
  %1266 = vmatpush2.bf16.msra.mxu0 0
  %1267 = vmatprep.subr.bf16.mxu0 0
  %1268 = vmatpush2.bf16.msra.mxu0 0
  %1269 = vmatprep.subr.bf16.mxu0 0
  %1270 = vmatpush2.bf16.msra.mxu0 0
  %1271 = vmatprep.subr.bf16.mxu0 0
  %1272 = vmatpush2.bf16.msra.mxu0 0
  %1273 = vmatprep.subr.bf16.mxu0 0
  %1274 = vmatpush2.bf16.msra.mxu0 0
  %1275 = vmatprep.subr.bf16.mxu0 0
  %1276 = vmatpush2.bf16.msra.mxu0 0
  %1277 = vmatprep.mubr.bf16.mxu0 0
  %1278 = vmatmul.mubr.bf16.gmra.mxu0 %v1243
  %v1279 = vpop.f32.mrf.mxu0
  %v1280 = vadd.f32 0.0, %v1279
  %v1281 = vpop.f32.mrf.mxu0
  %v1282 = vpop.f32.mrf.mxu0
  %v1283 = vpop.f32.mrf.mxu0
  %1284 = vdwg.mxu0
  %v1285 = vadd.f32 %v1213, %v1280
  %v1287 = vrot.slane %v1040, 4
  %v1296 = vunpack.c.l.b16 %v1066
  %v1297 = vunpack.c.l.b16 %v1067
  %v1298 = vunpack.c.l.b16 %v1068
  %v1299 = vunpack.c.l.b16 %v1069
  %v1300 = vunpack.c.l.b16 %v1070
  %v1301 = vunpack.c.l.b16 %v1071
  %v1302 = vunpack.c.l.b16 %v1072
  %v1303 = vunpack.c.l.b16 %v1073
  %v1304 = vpack.c.b16 %v1297, %v1296
  %v1305 = vpack.c.b16 %v1299, %v1298
  %v1306 = vpack.c.b16 %v1301, %v1300
  %v1307 = vpack.c.b16 %v1303, %v1302
  %v1313 = vsel %vm637, %v1287, 0
  %1315 = vmatprep.subr.bf16.mxu0 0
  %1316 = vmatpush1.bf16.msra.mxu0 0
  %1317 = vmatprep.subr.bf16.mxu0 0
  %1318 = vmatpush1.bf16.msra.mxu0 0
  %1319 = vmatprep.subr.bf16.mxu0 0
  %1320 = vmatpush1.bf16.msra.mxu0 0
  %1321 = vmatprep.subr.bf16.mxu0 0
  %1322 = vmatpush1.bf16.msra.mxu0 0
  %1323 = vmatprep.subr.bf16.mxu0 0
  %1324 = vmatpush1.bf16.msra.mxu0 %v1307
  %1325 = vmatprep.subr.bf16.mxu0 0
  %1326 = vmatpush1.bf16.msra.mxu0 %v1306
  %1327 = vmatprep.subr.bf16.mxu0 0
  %1328 = vmatpush1.bf16.msra.mxu0 %v1305
  %1329 = vmatprep.subr.bf16.mxu0 0
  %1330 = vmatpush1.bf16.msra.mxu0 %v1304
  %1331 = vmatprep.subr.bf16.mxu0 0
  %1332 = vmatpush2.bf16.msra.mxu0 0
  %1333 = vmatprep.subr.bf16.mxu0 0
  %1334 = vmatpush2.bf16.msra.mxu0 0
  %1335 = vmatprep.subr.bf16.mxu0 0
  %1336 = vmatpush2.bf16.msra.mxu0 0
  %1337 = vmatprep.subr.bf16.mxu0 0
  %1338 = vmatpush2.bf16.msra.mxu0 0
  %1339 = vmatprep.subr.bf16.mxu0 0
  %1340 = vmatpush2.bf16.msra.mxu0 0
  %1341 = vmatprep.subr.bf16.mxu0 0
  %1342 = vmatpush2.bf16.msra.mxu0 0
  %1343 = vmatprep.subr.bf16.mxu0 0
  %1344 = vmatpush2.bf16.msra.mxu0 0
  %1345 = vmatprep.subr.bf16.mxu0 0
  %1346 = vmatpush2.bf16.msra.mxu0 0
  %1347 = vmatprep.mubr.bf16.mxu0 0
  %1348 = vmatmul.mubr.bf16.gmra.mxu0 %v1313
  %v1349 = vpop.f32.mrf.mxu0
  %v1350 = vadd.f32 0.0, %v1349
  %v1351 = vpop.f32.mrf.mxu0
  %v1352 = vpop.f32.mrf.mxu0
  %v1353 = vpop.f32.mrf.mxu0
  %1354 = vdwg.mxu0
  %v1355 = vadd.f32 %v1285, %v1350
  %v1364 = vunpack.c.l.b16 %v1074
  %v1365 = vunpack.c.l.b16 %v1075
  %v1366 = vunpack.c.l.b16 %v1076
  %v1367 = vunpack.c.l.b16 %v1077
  %v1368 = vunpack.c.l.b16 %v1078
  %v1369 = vunpack.c.l.b16 %v1079
  %v1370 = vunpack.c.l.b16 %v1080
  %v1371 = vunpack.c.l.b16 %v1081
  %v1372 = vpack.c.b16 %v1365, %v1364
  %v1373 = vpack.c.b16 %v1367, %v1366
  %v1374 = vpack.c.b16 %v1369, %v1368
  %v1375 = vpack.c.b16 %v1371, %v1370
  %v1381 = vsel %vm637, %v1041, 0
  %1383 = vmatprep.subr.bf16.mxu0 0
  %1384 = vmatpush1.bf16.msra.mxu0 0
  %1385 = vmatprep.subr.bf16.mxu0 0
  %1386 = vmatpush1.bf16.msra.mxu0 0
  %1387 = vmatprep.subr.bf16.mxu0 0
  %1388 = vmatpush1.bf16.msra.mxu0 0
  %1389 = vmatprep.subr.bf16.mxu0 0
  %1390 = vmatpush1.bf16.msra.mxu0 0
  %1391 = vmatprep.subr.bf16.mxu0 0
  %1392 = vmatpush1.bf16.msra.mxu0 %v1375
  %1393 = vmatprep.subr.bf16.mxu0 0
  %1394 = vmatpush1.bf16.msra.mxu0 %v1374
  %1395 = vmatprep.subr.bf16.mxu0 0
  %1396 = vmatpush1.bf16.msra.mxu0 %v1373
  %1397 = vmatprep.subr.bf16.mxu0 0
  %1398 = vmatpush1.bf16.msra.mxu0 %v1372
  %1399 = vmatprep.subr.bf16.mxu0 0
  %1400 = vmatpush2.bf16.msra.mxu0 0
  %1401 = vmatprep.subr.bf16.mxu0 0
  %1402 = vmatpush2.bf16.msra.mxu0 0
  %1403 = vmatprep.subr.bf16.mxu0 0
  %1404 = vmatpush2.bf16.msra.mxu0 0
  %1405 = vmatprep.subr.bf16.mxu0 0
  %1406 = vmatpush2.bf16.msra.mxu0 0
  %1407 = vmatprep.subr.bf16.mxu0 0
  %1408 = vmatpush2.bf16.msra.mxu0 0
  %1409 = vmatprep.subr.bf16.mxu0 0
  %1410 = vmatpush2.bf16.msra.mxu0 0
  %1411 = vmatprep.subr.bf16.mxu0 0
  %1412 = vmatpush2.bf16.msra.mxu0 0
  %1413 = vmatprep.subr.bf16.mxu0 0
  %1414 = vmatpush2.bf16.msra.mxu0 0
  %1415 = vmatprep.mubr.bf16.mxu0 0
  %1416 = vmatmul.mubr.bf16.gmra.mxu0 %v1381
  %v1417 = vpop.f32.mrf.mxu0
  %v1418 = vadd.f32 0.0, %v1417
  %v1419 = vpop.f32.mrf.mxu0
  %v1420 = vpop.f32.mrf.mxu0
  %v1421 = vpop.f32.mrf.mxu0
  %1422 = vdwg.mxu0
  %v1423 = vadd.f32 %v1355, %v1418
  %v1424 = vld [vmem:[%s4] sm:$0x1]
  %v1426 = vlaneseq
  %v1427 = vshrl.u32 %v1426, 7
  %v1428 = vsub.s32 0, %v1427
  %v1429 = vrot.slane %v1424, %v1428
  %v1431 = vadd.f32 %v1423, %v1429
  %v1432 = vmax.f32 %v1431, 0.0
  %v1433 = vpack.c.bf16 %v1432, %v1432
  %v1434 = vld [vmem:[%s5] sm:$0xf]
  %v1435 = vld [vmem:[%s5 + $0x4] sm:$0xf]
  %v1436 = vld [vmem:[%s5 + $0x8] sm:$0xf]
  %v1437 = vld [vmem:[%s5 + $0xc] sm:$0xf]
  %v1438 = vld [vmem:[%s5 + $0x10] sm:$0xf]
  %v1439 = vld [vmem:[%s5 + $0x14] sm:$0xf]
  %v1440 = vld [vmem:[%s5 + $0x18] sm:$0xf]
  %v1441 = vld [vmem:[%s5 + $0x1c] sm:$0xf]
  %v1442 = vld [vmem:[%s5 + $0x20] sm:$0xf]
  %v1443 = vld [vmem:[%s5 + $0x24] sm:$0xf]
  %v1444 = vld [vmem:[%s5 + $0x28] sm:$0xf]
  %v1445 = vld [vmem:[%s5 + $0x2c] sm:$0xf]
  %v1446 = vld [vmem:[%s5 + $0x30] sm:$0xf]
  %v1447 = vld [vmem:[%s5 + $0x34] sm:$0xf]
  %v1448 = vld [vmem:[%s5 + $0x38] sm:$0xf]
  %v1449 = vld [vmem:[%s5 + $0x3c] sm:$0xf]
  %v1450 = vld [vmem:[%s6] sm:$0x1]
  %v1452 = vlaneseq
  %v1453 = vshrl.u32 %v1452, 7
  %v1454 = vsub.s32 0, %v1453
  %v1455 = vrot.slane %v1450, %v1454
  %v1473 = vunpack.c.l.b16 %v1434
  %v1474 = vunpack.c.l.b16 %v1435
  %v1475 = vunpack.c.l.b16 %v1436
  %v1476 = vunpack.c.l.b16 %v1437
  %v1477 = vunpack.c.l.b16 %v1438
  %v1478 = vunpack.c.l.b16 %v1439
  %v1479 = vunpack.c.l.b16 %v1440
  %v1480 = vunpack.c.l.b16 %v1441
  %v1481 = vunpack.c.l.b16 %v1442
  %v1482 = vunpack.c.l.b16 %v1443
  %v1483 = vunpack.c.l.b16 %v1444
  %v1484 = vunpack.c.l.b16 %v1445
  %v1485 = vunpack.c.l.b16 %v1446
  %v1486 = vunpack.c.l.b16 %v1447
  %v1487 = vunpack.c.l.b16 %v1448
  %v1488 = vunpack.c.l.b16 %v1449
  %v1489 = vpack.c.b16 %v1474, %v1473
  %v1490 = vpack.c.b16 %v1476, %v1475
  %v1491 = vpack.c.b16 %v1478, %v1477
  %v1492 = vpack.c.b16 %v1480, %v1479
  %v1493 = vpack.c.b16 %v1482, %v1481
  %v1494 = vpack.c.b16 %v1484, %v1483
  %v1495 = vpack.c.b16 %v1486, %v1485
  %v1496 = vpack.c.b16 %v1488, %v1487
  %1505 = vmatprep.subr.bf16.mxu0 0
  %1506 = vmatpush1.bf16.msra.mxu0 %v1496
  %1507 = vmatprep.subr.bf16.mxu0 0
  %1508 = vmatpush1.bf16.msra.mxu0 %v1495
  %1509 = vmatprep.subr.bf16.mxu0 0
  %1510 = vmatpush1.bf16.msra.mxu0 %v1494
  %1511 = vmatprep.subr.bf16.mxu0 0
  %1512 = vmatpush1.bf16.msra.mxu0 %v1493
  %1513 = vmatprep.subr.bf16.mxu0 0
  %1514 = vmatpush1.bf16.msra.mxu0 %v1492
  %1515 = vmatprep.subr.bf16.mxu0 0
  %1516 = vmatpush1.bf16.msra.mxu0 %v1491
  %1517 = vmatprep.subr.bf16.mxu0 0
  %1518 = vmatpush1.bf16.msra.mxu0 %v1490
  %1519 = vmatprep.subr.bf16.mxu0 0
  %1520 = vmatpush1.bf16.msra.mxu0 %v1489
  %1521 = vmatprep.subr.bf16.mxu0 0
  %1522 = vmatpush2.bf16.msra.mxu0 0
  %1523 = vmatprep.subr.bf16.mxu0 0
  %1524 = vmatpush2.bf16.msra.mxu0 0
  %1525 = vmatprep.subr.bf16.mxu0 0
  %1526 = vmatpush2.bf16.msra.mxu0 0
  %1527 = vmatprep.subr.bf16.mxu0 0
  %1528 = vmatpush2.bf16.msra.mxu0 0
  %1529 = vmatprep.subr.bf16.mxu0 0
  %1530 = vmatpush2.bf16.msra.mxu0 0
  %1531 = vmatprep.subr.bf16.mxu0 0
  %1532 = vmatpush2.bf16.msra.mxu0 0
  %1533 = vmatprep.subr.bf16.mxu0 0
  %1534 = vmatpush2.bf16.msra.mxu0 0
  %1535 = vmatprep.subr.bf16.mxu0 0
  %1536 = vmatpush2.bf16.msra.mxu0 0
  %1537 = vmatprep.mubr.bf16.mxu0 0
  %1538 = vmatmul.mubr.bf16.gmra.mxu0 %v1433
  %v1539 = vpop.f32.mrf.mxu0
  %v1540 = vadd.f32 %v1455, %v1539
  %v1541 = vpop.f32.mrf.mxu0
  %v1542 = vpop.f32.mrf.mxu0
  %v1543 = vpop.f32.mrf.mxu0
  %1544 = vdwg.mxu0
  %v1545 = vmax.f32 %v1540, 0.0
  %v1546 = vpack.c.bf16 %v1545, %v1545
  %v1547 = vld [vmem:[%s7] sm:$0xf]
  %v1548 = vld [vmem:[%s7 + $0x4] sm:$0xf]
  %v1549 = vld [vmem:[%s7 + $0x8] sm:$0xf]
  %v1550 = vld [vmem:[%s7 + $0xc] sm:$0xf]
  %v1551 = vld [vmem:[%s7 + $0x10] sm:$0xf]
  %v1552 = vld [vmem:[%s7 + $0x14] sm:$0xf]
  %v1553 = vld [vmem:[%s7 + $0x18] sm:$0xf]
  %v1554 = vld [vmem:[%s7 + $0x1c] sm:$0xf]
  %v1555 = vld [vmem:[%s7 + $0x20] sm:$0xf]
  %v1556 = vld [vmem:[%s7 + $0x24] sm:$0xf]
  %v1557 = vld [vmem:[%s7 + $0x28] sm:$0xf]
  %v1558 = vld [vmem:[%s7 + $0x2c] sm:$0xf]
  %v1559 = vld [vmem:[%s7 + $0x30] sm:$0xf]
  %v1560 = vld [vmem:[%s7 + $0x34] sm:$0xf]
  %v1561 = vld [vmem:[%s7 + $0x38] sm:$0xf]
  %v1562 = vld [vmem:[%s7 + $0x3c] sm:$0xf]
  %v1563 = vld [vmem:[%s8] sm:$0x1]
  %v1565 = vlaneseq
  %v1566 = vshrl.u32 %v1565, 7
  %v1567 = vsub.s32 0, %v1566
  %v1568 = vrot.slane %v1563, %v1567
  %v1586 = vunpack.c.l.b16 %v1547
  %v1587 = vunpack.c.l.b16 %v1548
  %v1588 = vunpack.c.l.b16 %v1549
  %v1589 = vunpack.c.l.b16 %v1550
  %v1590 = vunpack.c.l.b16 %v1551
  %v1591 = vunpack.c.l.b16 %v1552
  %v1592 = vunpack.c.l.b16 %v1553
  %v1593 = vunpack.c.l.b16 %v1554
  %v1594 = vunpack.c.l.b16 %v1555
  %v1595 = vunpack.c.l.b16 %v1556
  %v1596 = vunpack.c.l.b16 %v1557
  %v1597 = vunpack.c.l.b16 %v1558
  %v1598 = vunpack.c.l.b16 %v1559
  %v1599 = vunpack.c.l.b16 %v1560
  %v1600 = vunpack.c.l.b16 %v1561
  %v1601 = vunpack.c.l.b16 %v1562
  %v1602 = vpack.c.b16 %v1587, %v1586
  %v1603 = vpack.c.b16 %v1589, %v1588
  %v1604 = vpack.c.b16 %v1591, %v1590
  %v1605 = vpack.c.b16 %v1593, %v1592
  %v1606 = vpack.c.b16 %v1595, %v1594
  %v1607 = vpack.c.b16 %v1597, %v1596
  %v1608 = vpack.c.b16 %v1599, %v1598
  %v1609 = vpack.c.b16 %v1601, %v1600
  %1618 = vmatprep.subr.bf16.mxu0 0
  %1619 = vmatpush1.bf16.msra.mxu0 %v1609
  %1620 = vmatprep.subr.bf16.mxu0 0
  %1621 = vmatpush1.bf16.msra.mxu0 %v1608
  %1622 = vmatprep.subr.bf16.mxu0 0
  %1623 = vmatpush1.bf16.msra.mxu0 %v1607
  %1624 = vmatprep.subr.bf16.mxu0 0
  %1625 = vmatpush1.bf16.msra.mxu0 %v1606
  %1626 = vmatprep.subr.bf16.mxu0 0
  %1627 = vmatpush1.bf16.msra.mxu0 %v1605
  %1628 = vmatprep.subr.bf16.mxu0 0
  %1629 = vmatpush1.bf16.msra.mxu0 %v1604
  %1630 = vmatprep.subr.bf16.mxu0 0
  %1631 = vmatpush1.bf16.msra.mxu0 %v1603
  %1632 = vmatprep.subr.bf16.mxu0 0
  %1633 = vmatpush1.bf16.msra.mxu0 %v1602
  %1634 = vmatprep.subr.bf16.mxu0 0
  %1635 = vmatpush2.bf16.msra.mxu0 0
  %1636 = vmatprep.subr.bf16.mxu0 0
  %1637 = vmatpush2.bf16.msra.mxu0 0
  %1638 = vmatprep.subr.bf16.mxu0 0
  %1639 = vmatpush2.bf16.msra.mxu0 0
  %1640 = vmatprep.subr.bf16.mxu0 0
  %1641 = vmatpush2.bf16.msra.mxu0 0
  %1642 = vmatprep.subr.bf16.mxu0 0
  %1643 = vmatpush2.bf16.msra.mxu0 0
  %1644 = vmatprep.subr.bf16.mxu0 0
  %1645 = vmatpush2.bf16.msra.mxu0 0
  %1646 = vmatprep.subr.bf16.mxu0 0
  %1647 = vmatpush2.bf16.msra.mxu0 0
  %1648 = vmatprep.subr.bf16.mxu0 0
  %1649 = vmatpush2.bf16.msra.mxu0 0
  %1650 = vmatprep.mubr.bf16.mxu0 0
  %1651 = vmatmul.mubr.bf16.gmra.mxu0 %v1546
  %v1652 = vpop.f32.mrf.mxu0
  %v1653 = vadd.f32 %v1568, %v1652
  %v1654 = vpop.f32.mrf.mxu0
  %v1655 = vpop.f32.mrf.mxu0
  %v1656 = vpop.f32.mrf.mxu0
  %1657 = vdwg.mxu0
  %v1658 = vmax.f32 %v1653, 0.0
  %v1659 = vpack.c.bf16 %v1658, %v1658
  %v1660 = vld [vmem:[%s9] sm:$0xf]
  %v1661 = vld [vmem:[%s9 + $0x4] sm:$0xf]
  %v1662 = vld [vmem:[%s9 + $0x8] sm:$0xf]
  %v1663 = vld [vmem:[%s9 + $0xc] sm:$0xf]
  %v1664 = vld [vmem:[%s9 + $0x10] sm:$0xf]
  %v1665 = vld [vmem:[%s9 + $0x14] sm:$0xf]
  %v1666 = vld [vmem:[%s9 + $0x18] sm:$0xf]
  %v1667 = vld [vmem:[%s9 + $0x1c] sm:$0xf]
  %v1668 = vld [vmem:[%s9 + $0x20] sm:$0xf]
  %v1669 = vld [vmem:[%s9 + $0x24] sm:$0xf]
  %v1670 = vld [vmem:[%s9 + $0x28] sm:$0xf]
  %v1671 = vld [vmem:[%s9 + $0x2c] sm:$0xf]
  %v1672 = vld [vmem:[%s9 + $0x30] sm:$0xf]
  %v1673 = vld [vmem:[%s9 + $0x34] sm:$0xf]
  %v1674 = vld [vmem:[%s9 + $0x38] sm:$0xf]
  %v1675 = vld [vmem:[%s9 + $0x3c] sm:$0xf]
  %v1676 = vld [vmem:[%s10] sm:$0x1]
  %v1678 = vlaneseq
  %v1679 = vshrl.u32 %v1678, 7
  %v1680 = vsub.s32 0, %v1679
  %v1681 = vrot.slane %v1676, %v1680
  %v1699 = vunpack.c.l.b16 %v1660
  %v1700 = vunpack.c.l.b16 %v1661
  %v1701 = vunpack.c.l.b16 %v1662
  %v1702 = vunpack.c.l.b16 %v1663
  %v1703 = vunpack.c.l.b16 %v1664
  %v1704 = vunpack.c.l.b16 %v1665
  %v1705 = vunpack.c.l.b16 %v1666
  %v1706 = vunpack.c.l.b16 %v1667
  %v1707 = vunpack.c.l.b16 %v1668
  %v1708 = vunpack.c.l.b16 %v1669
  %v1709 = vunpack.c.l.b16 %v1670
  %v1710 = vunpack.c.l.b16 %v1671
  %v1711 = vunpack.c.l.b16 %v1672
  %v1712 = vunpack.c.l.b16 %v1673
  %v1713 = vunpack.c.l.b16 %v1674
  %v1714 = vunpack.c.l.b16 %v1675
  %v1715 = vpack.c.b16 %v1700, %v1699
  %v1716 = vpack.c.b16 %v1702, %v1701
  %v1717 = vpack.c.b16 %v1704, %v1703
  %v1718 = vpack.c.b16 %v1706, %v1705
  %v1719 = vpack.c.b16 %v1708, %v1707
  %v1720 = vpack.c.b16 %v1710, %v1709
  %v1721 = vpack.c.b16 %v1712, %v1711
  %v1722 = vpack.c.b16 %v1714, %v1713
  %1731 = vmatprep.subr.bf16.mxu0 0
  %1732 = vmatpush1.bf16.msra.mxu0 %v1722
  %1733 = vmatprep.subr.bf16.mxu0 0
  %1734 = vmatpush1.bf16.msra.mxu0 %v1721
  %1735 = vmatprep.subr.bf16.mxu0 0
  %1736 = vmatpush1.bf16.msra.mxu0 %v1720
  %1737 = vmatprep.subr.bf16.mxu0 0
  %1738 = vmatpush1.bf16.msra.mxu0 %v1719
  %1739 = vmatprep.subr.bf16.mxu0 0
  %1740 = vmatpush1.bf16.msra.mxu0 %v1718
  %1741 = vmatprep.subr.bf16.mxu0 0
  %1742 = vmatpush1.bf16.msra.mxu0 %v1717
  %1743 = vmatprep.subr.bf16.mxu0 0
  %1744 = vmatpush1.bf16.msra.mxu0 %v1716
  %1745 = vmatprep.subr.bf16.mxu0 0
  %1746 = vmatpush1.bf16.msra.mxu0 %v1715
  %1747 = vmatprep.subr.bf16.mxu0 0
  %1748 = vmatpush2.bf16.msra.mxu0 0
  %1749 = vmatprep.subr.bf16.mxu0 0
  %1750 = vmatpush2.bf16.msra.mxu0 0
  %1751 = vmatprep.subr.bf16.mxu0 0
  %1752 = vmatpush2.bf16.msra.mxu0 0
  %1753 = vmatprep.subr.bf16.mxu0 0
  %1754 = vmatpush2.bf16.msra.mxu0 0
  %1755 = vmatprep.subr.bf16.mxu0 0
  %1756 = vmatpush2.bf16.msra.mxu0 0
  %1757 = vmatprep.subr.bf16.mxu0 0
  %1758 = vmatpush2.bf16.msra.mxu0 0
  %1759 = vmatprep.subr.bf16.mxu0 0
  %1760 = vmatpush2.bf16.msra.mxu0 0
  %1761 = vmatprep.subr.bf16.mxu0 0
  %1762 = vmatpush2.bf16.msra.mxu0 0
  %1763 = vmatprep.mubr.bf16.mxu0 0
  %1764 = vmatmul.mubr.bf16.gmra.mxu0 %v1659
  %v1765 = vpop.f32.mrf.mxu0
  %v1766 = vadd.f32 %v1681, %v1765
  %v1767 = vpop.f32.mrf.mxu0
  %v1768 = vpop.f32.mrf.mxu0
  %v1769 = vpop.f32.mrf.mxu0
  %1770 = vdwg.mxu0
  %vm1771 = vcmask 392192
  %v1772 = vsel %vm1771, %v1766, -inf
  %1773 = vmax.xlane.f32.xlu0 %v1772
  %v1774 = vpop.xlane.xlu0 %1773
  %v1775 = vsub.f32 %v1766, %v1774
  %v1776 = vmul.f32 %v1775, 1.442695
  %v1777 = vpow.pop %v1776
  %v1778 = vsel %vm1771, %v1777, 0.0
  %1779 = vadd.xlane.f32.xlu0 %v1778
  %v1780 = vpop.xlane.xlu0 %1779
  %v1781 = vlog2.pop %v1780
  %v1782 = vmul.f32 %v1781, 0.6931472
  %v1783 = vsub.f32 %v1775, %v1782
  %1784 = vst.msk [vmem:[%s11] sm:$0xff] %vm1771, %v1783
  // Predicated region
  $region46: #{mynet_forward.5} parent=0 // pred_check
    _
  $region47: #{mynet_forward.5} parent=0 // pred_check_branch
    %1786 = sbr.rel (0) target = $region49
  $region48: #{mynet_forward.5} parent=0 // pred_region
    _
  $region49: #{mynet_forward.5} parent=0 // pred_fallthru
    _
  // Predicated region
  $region50: #{mynet_forward.5} parent=0 // pred_check
    _
  $region51: #{mynet_forward.5} parent=0 // pred_check_branch
    %1788 = sbr.rel (0) target = $region53
  $region52: #{mynet_forward.5} parent=0 // pred_region
    _
  $region53: #{mynet_forward.5} parent=0 // pred_fallthru
    _

</llo_original>
